<compile_context>
chip_gen: v5e
topology: v5e:2x2
jax: 0.10.0
libtpu: 0.0.40
codegen_flags: <defaults>
</compile_context>

<pallas_src>
import functools

import jax
import jax.numpy as jnp
import numpy as np
from jax.experimental import pallas as pl
from jax.experimental.pallas import tpu as pltpu


# ----------------------------------------------------------------------------
# Fused BasicRFB kernel (one grid step == one batch element)
# ----------------------------------------------------------------------------
def _rfb_kernel(*refs, cfg, H, W):
    """Ref order:
       x_ref,
       per branch: (w, b) per inner conv, then the folded final-conv weight,
       pool_w, pool_b, wlin4, short_w, b_total,
       o_ref, col (im2col VMEM scratch).
    """
    HW = H * W
    f32 = jnp.float32

    it = iter(refs)
    x_ref = next(it)
    br_refs = []
    for inner_cfg, _ in cfg:
        ws = [(next(it), next(it)) for _ in inner_cfg]
        br_refs.append((ws, next(it)))
    pool_w, pool_b, wlin4 = next(it), next(it), next(it)
    short_w, b_total = next(it), next(it)
    o_ref = next(it)
    col = next(it)                                  # (max_kc, HW) f32 im2col scratch

    x = x_ref[0]                                    # (Cin, HW) f32, channels on sublanes

    # flat lane-position iota, hoisted once; used to build zero-padding border masks
    p_idx = jax.lax.broadcasted_iota(jnp.int32, (1, HW), 1)
    if W & (W - 1) == 0:
        w_idx = jnp.bitwise_and(p_idx, W - 1)       # w = p % W  (W power of two)
    else:
        w_idx = p_idx % W

    def lane_shift(v, s):
        """out[:, p] = v[:, (p + s) mod HW] for a static shift s (lane rotation)."""
        k = s % HW
        if k == 0:
            return v
        return jnp.concatenate([v[:, k:], v[:, :k]], axis=1)

    def conv_same(a, w_ref, bias_ref=None, relu=False, K=1, dil=1, pad=0):
        """Stride-1 'same' conv of a (Cin, HW) activation -> (Cout, HW), one MXU dot."""
        cin = a.shape[0]
        if K == 1:
            acc = jnp.dot(w_ref[...], a, preferred_element_type=f32)
        else:
            offs = [kh * dil - pad for kh in range(K)]
            # one-comparison row/col validity masks per non-zero offset (hoisted)
            row_m = {o: (p_idx >= (-o) * W) if o < 0 else
                        (p_idx < (H - o) * W) if o > 0 else None for o in offs}
            col_m = {o: (w_idx >= -o) if o < 0 else
                        (w_idx < (W - o)) if o > 0 else None for o in offs}
            for kh in range(K):
                for kw in range(K):
                    v = lane_shift(a, offs[kh] * W + offs[kw])
                    m_r, m_c = row_m[offs[kh]], col_m[offs[kw]]
                    m = m_r if m_c is None else (m_c if m_r is None
                                                 else jnp.logical_and(m_r, m_c))
                    if m is not None:
                        v = jnp.where(m, v, 0.0)    # exact zero padding at borders
                    t = kh * K + kw
                    col[t * cin:(t + 1) * cin, :] = v
            acc = jnp.dot(w_ref[...], col[0:K * K * cin, :],
                          preferred_element_type=f32)
        if bias_ref is not None:
            acc = acc + bias_ref[...]               # folded-BN bias, (Cout,1) bcast
        if relu:
            acc = jnp.maximum(acc, 0.0)
        return acc

    # shortcut 1x1 conv; its bias, the ConvLinear bias and the folded final-conv
    # biases of all four branches are pre-summed into b_total.
    out = jnp.dot(short_w[...], x, preferred_element_type=f32) + b_total[...]

    # 4 dilated-conv branches.  Each branch's final relu-less conv is folded into
    # its ConvLinear slice, so its single dot accumulates straight into `out`.
    for (inner_cfg, final_cfg), (ws, wf) in zip(cfg, br_refs):
        a = x
        for (K, dil, pad, relu), (w_r, b_r) in zip(inner_cfg, ws):
            a = conv_same(a, w_r, b_r, relu, K, dil, pad)
        Kf, dilf, padf = final_cfg
        out = out + conv_same(a, wf, None, False, Kf, dilf, padf)

    # image-pool branch: global mean -> 1x1 conv(+BN) -> ReLU; bilinear upsample from
    # a 1x1 source (align_corners=False) is an exact broadcast, so the ConvLinear
    # slice is applied to the lane-broadcast pooled vector.
    m = jnp.sum(x, axis=1, keepdims=True) * (1.0 / HW)               # (Cin, 1)
    mb = jnp.broadcast_to(m, (m.shape[0], HW))                       # (Cin, HW)
    y4 = jnp.maximum(jnp.dot(pool_w[...], mb, preferred_element_type=f32)
                     + pool_b[...], 0.0)                             # (2*inter, HW)
    out = out + jnp.dot(wlin4[...], y4, preferred_element_type=f32)

    # NOTE: BasicRFB.forward does NOT apply the final self.relu (and scale is unused).
    o_ref[0] = out.astype(o_ref.dtype)


# ----------------------------------------------------------------------------
# Wrapper: fold / flatten weights to C-major layouts and launch one pallas_call
# ----------------------------------------------------------------------------
def prepare_kernel_args(params):
    branches = params["branches"]
    hi = jax.lax.Precision.HIGHEST
    wlin = params["convlinear"]["w"][0, 0]           # (10*inter, out_planes)
    out_planes = wlin.shape[1]
    wlin_t = wlin.T                                  # (out_planes, 10*inter)
    cb = branches[0][-1]["w"].shape[3]               # 2*inter (per-branch width)

    def w_1x1(c):                                    # (Cout, Cin)
        return c["w"][0, 0].T

    def w_flat(c):                                   # (Cout, K*K*Cin), taps row-major
        K, _, cin, cout = c["w"].shape
        return jnp.transpose(c["w"], (3, 0, 1, 2)).reshape(cout, K * K * cin)

    args, cfg = [], []
    max_kc = 8
    b_total = params["convlinear"]["b"] + params["shortcut"]["b"]
    for i, br in enumerate(branches):
        inner, last = br[:-1], br[-1]
        assert not last["relu"], "cannot fold a final conv that has a ReLU"
        inner_cfg = []
        for c in inner:
            if c["k"] == 1:
                assert c["pad"] == 0
                w = w_1x1(c)
            else:
                assert 2 * c["pad"] == c["dil"] * (c["k"] - 1), "only 'same' convs"
                w = w_flat(c)
                max_kc = max(max_kc, w.shape[1])
            args += [w, c["b"].reshape(-1, 1)]
            inner_cfg.append((c["k"], c["dil"], c["pad"], bool(c["relu"])))
        assert 2 * last["pad"] == last["dil"] * (last["k"] - 1)
        wlin_i = wlin_t[:, i * cb:(i + 1) * cb]                       # (out, cb)
        w_fold = jnp.matmul(wlin_i, w_flat(last), precision=hi)      # (out, 9*Cin)
        b_total = b_total + jnp.matmul(wlin_i, last["b"], precision=hi)
        args.append(w_fold)
        max_kc = max(max_kc, w_fold.shape[1])
        cfg.append((tuple(inner_cfg), (last["k"], last["dil"], last["pad"])))
    args += [w_1x1(params["pool"]), params["pool"]["b"].reshape(-1, 1),
             wlin_t[:, 4 * cb:5 * cb]]
    args += [w_1x1(params["shortcut"]), b_total.reshape(-1, 1)]
    max_kc = -(-max_kc // 8) * 8
    return args, tuple(cfg), max_kc, out_planes


def basic_rfb_forward(x_nchw, params):
    N, Cin, H, W = x_nchw.shape
    HW = H * W
    args, cfg, max_kc, out_planes = prepare_kernel_args(params)
    x = x_nchw.reshape(N, Cin, HW).astype(jnp.float32)   # free reshape, no transpose

    def full_spec(a):
        nd = a.ndim
        return pl.BlockSpec(a.shape, lambda n, _nd=nd: (0,) * _nd)

    in_specs = [pl.BlockSpec((1, Cin, HW), lambda n: (n, 0, 0))]
    in_specs += [full_spec(a) for a in args]

    kern = functools.partial(_rfb_kernel, cfg=cfg, H=H, W=W)
    out = pl.pallas_call(
        kern,
        out_shape=jax.ShapeDtypeStruct((N, out_planes, HW), jnp.float32),
        grid=(N,),
        in_specs=in_specs,
        out_specs=pl.BlockSpec((1, out_planes, HW), lambda n: (n, 0, 0)),
        scratch_shapes=[pltpu.VMEM((max_kc, HW), jnp.float32)],
        compiler_params=pltpu.CompilerParams(dimension_semantics=("parallel",)),
    )(x, *args)
    return out.reshape(N, out_planes, H, W)               # free reshape back to NCHW


# ----------------------------------------------------------------------------
# Deterministic parameter construction (Conv + BatchNorm folded, eval mode, f32)
# ----------------------------------------------------------------------------
def init_basic_conv(key, cin, cout, ksize, relu, pad=0, dil=1):
    kcv, kg, kb, km, kv = jax.random.split(key, 5)
    w = 0.2 * jax.random.normal(kcv, (ksize, ksize, cin, cout), jnp.float32)
    gamma = 1.0 + 0.1 * jax.random.normal(kg, (cout,), jnp.float32)
    beta = 0.1 * jax.random.normal(kb, (cout,), jnp.float32)
    rmean = 0.1 * jax.random.normal(km, (cout,), jnp.float32)
    rvar = 1.0 + 0.1 * jax.random.uniform(kv, (cout,), jnp.float32)
    scale = gamma * jax.lax.rsqrt(rvar + 1e-5)
    # BN (eval mode, eps=1e-5) folded into weight/bias.
    return {"w": w * scale, "b": beta - rmean * scale,
            "k": ksize, "pad": pad, "dil": dil, "relu": relu}


def build_params(key, in_planes, out_planes, map_reduce=8, vision=1):
    inter = in_planes // map_reduce
    it = iter(jax.random.split(key, 20))

    def bc(cin, cout, k, relu, pad=0, dil=1):
        return init_basic_conv(next(it), cin, cout, k, relu, pad, dil)

    branches = [
        [bc(in_planes, inter, 1, False),
         bc(inter, 2 * inter, 3, True, pad=1),
         bc(2 * inter, 2 * inter, 3, False, pad=vision + 1, dil=vision + 1)],
        [bc(in_planes, inter, 1, False),
         bc(inter, 2 * inter, 3, True, pad=1),
         bc(2 * inter, 2 * inter, 3, False, pad=vision + 2, dil=vision + 2)],
        [bc(in_planes, inter, 1, False),
         bc(inter, inter // 2 * 3, 3, True, pad=1),
         bc(inter // 2 * 3, 2 * inter, 3, True, pad=1),
         bc(2 * inter, 2 * inter, 3, False, pad=vision + 4, dil=vision + 4)],
        [bc(in_planes, inter, 1, False),
         bc(inter, inter // 2 * 3, 3, True, pad=1),
         bc(inter // 2 * 3, 2 * inter, 3, True, pad=1),
         bc(2 * inter, 2 * inter, 3, False, pad=vision + 6, dil=vision + 6)],
    ]
    # TODO(synk): _ConvBnReLU is not defined in the source file; assumed to be the
    # standard Conv2d(bias=False) + BatchNorm2d(eps=1e-5) + ReLU (DeepLab convention).
    pool = bc(in_planes, 2 * inter, 1, True)
    convlinear = bc(10 * inter, out_planes, 1, False)
    shortcut = bc(in_planes, out_planes, 1, False)
    return {"branches": branches, "pool": pool,
            "convlinear": convlinear, "shortcut": shortcut}


# ----------------------------------------------------------------------------
# Pure-JAX reference (f32, unfolded: conv per layer, concat, ConvLinear, shortcut)
# ----------------------------------------------------------------------------
def conv2d_ref(x, w, b, padding, dilation, relu):
    y = jax.lax.conv_general_dilated(
        x, w, window_strides=(1, 1),
        padding=[(padding, padding), (padding, padding)],
        rhs_dilation=(dilation, dilation),
        dimension_numbers=("NHWC", "HWIO", "NHWC"),
        precision=jax.lax.Precision.HIGHEST,
        preferred_element_type=jnp.float32)
    y = y + b.reshape(1, 1, 1, -1)
    return jnp.maximum(y, 0.0) if relu else y


def basic_rfb_ref(x_nchw, params):
    x = jnp.transpose(x_nchw, (0, 2, 3, 1)).astype(jnp.float32)
    N, H, W, _ = x.shape

    def run_branch(convs):
        h = x
        for c in convs:
            h = conv2d_ref(h, c["w"], c["b"], c["pad"], c["dil"], c["relu"])
        return h

    xs = [run_branch(br) for br in params["branches"]]
    p4 = params["pool"]
    m = jnp.mean(x, axis=(1, 2), keepdims=True)
    y4 = conv2d_ref(m, p4["w"], p4["b"], 0, 1, True)
    xs.append(jnp.broadcast_to(y4, (N, H, W, y4.shape[-1])))

    out = jnp.concatenate(xs, axis=-1)
    pc = params["convlinear"]
    out = conv2d_ref(out, pc["w"], pc["b"], 0, 1, False)
    ps = params["shortcut"]
    out = out + conv2d_ref(x, ps["w"], ps["b"], 0, 1, False)
    return jnp.transpose(out, (0, 3, 1, 2))


# ----------------------------------------------------------------------------
if __name__ == "__main__":
    key = jax.random.PRNGKey(0)
    kx, kp = jax.random.split(key)

    # BasicRFB(in_planes=16, out_planes=16, stride=1, map_reduce=8, vision=1)
    # (in_planes must be >= map_reduce so inter_planes > 0).
    N, C, H, W = 2, 16, 16, 16
    out_planes = 16
    x = jax.random.normal(kx, (N, C, H, W), jnp.float32)          # NCHW like PyTorch
    params = build_params(kp, in_planes=C, out_planes=out_planes,
                          map_reduce=8, vision=1)

    out = jax.block_until_ready(basic_rfb_forward(x, params))
    assert out.shape == (N, out_planes, H, W), out.shape

    ref = basic_rfb_ref(x, params)
    err = float(jnp.max(jnp.abs(out - ref)))
    # f32 operands on both sides; tolerance is generous to cover MXU pass choices.
    if not np.isfinite(err) or err > 2e-2:
        raise SystemExit(f"mismatch vs reference: max abs err = {err}")

    print("KERNEL_OK")
</pallas_src>

<mosaic_0001>
module attributes {stable_mosaic.version = 11 : i64} {
  func.func @_rfb_kernel(%arg0: i32, %arg1: memref<1x16x256xf32, #tpu.memory_space<vmem>>, %arg2: memref<2x16xf32, #tpu.memory_space<vmem>>, %arg3: memref<2x1xf32, #tpu.memory_space<vmem>>, %arg4: memref<4x18xf32, #tpu.memory_space<vmem>>, %arg5: memref<4x1xf32, #tpu.memory_space<vmem>>, %arg6: memref<16x36xf32, #tpu.memory_space<vmem>>, %arg7: memref<2x16xf32, #tpu.memory_space<vmem>>, %arg8: memref<2x1xf32, #tpu.memory_space<vmem>>, %arg9: memref<4x18xf32, #tpu.memory_space<vmem>>, %arg10: memref<4x1xf32, #tpu.memory_space<vmem>>, %arg11: memref<16x36xf32, #tpu.memory_space<vmem>>, %arg12: memref<2x16xf32, #tpu.memory_space<vmem>>, %arg13: memref<2x1xf32, #tpu.memory_space<vmem>>, %arg14: memref<3x18xf32, #tpu.memory_space<vmem>>, %arg15: memref<3x1xf32, #tpu.memory_space<vmem>>, %arg16: memref<4x27xf32, #tpu.memory_space<vmem>>, %arg17: memref<4x1xf32, #tpu.memory_space<vmem>>, %arg18: memref<16x36xf32, #tpu.memory_space<vmem>>, %arg19: memref<2x16xf32, #tpu.memory_space<vmem>>, %arg20: memref<2x1xf32, #tpu.memory_space<vmem>>, %arg21: memref<3x18xf32, #tpu.memory_space<vmem>>, %arg22: memref<3x1xf32, #tpu.memory_space<vmem>>, %arg23: memref<4x27xf32, #tpu.memory_space<vmem>>, %arg24: memref<4x1xf32, #tpu.memory_space<vmem>>, %arg25: memref<16x36xf32, #tpu.memory_space<vmem>>, %arg26: memref<4x16xf32, #tpu.memory_space<vmem>>, %arg27: memref<4x1xf32, #tpu.memory_space<vmem>>, %arg28: memref<16x4xf32, #tpu.memory_space<vmem>>, %arg29: memref<16x16xf32, #tpu.memory_space<vmem>>, %arg30: memref<16x1xf32, #tpu.memory_space<vmem>>, %arg31: memref<1x16x256xf32, #tpu.memory_space<vmem>>, %arg32: memref<40x256xf32, #tpu.memory_space<vmem>>) attributes {dimension_semantics = [#tpu.dimension_semantics<parallel>], iteration_bounds = array<i64: 2>, scalar_prefetch = 0 : i64, scratch_operands = 1 : i64, tpu.core_type = #tpu.core_type<tc>, window_params = [{transform_indices = @transform_0, window_bounds = array<i64: 1, 16, 256>}, {pipeline_mode = #tpu.pipeline_mode<synchronous>, transform_indices = @transform_1, window_bounds = array<i64: 2, 16>}, {pipeline_mode = #tpu.pipeline_mode<synchronous>, transform_indices = @transform_2, window_bounds = array<i64: 2, 1>}, {pipeline_mode = #tpu.pipeline_mode<synchronous>, transform_indices = @transform_3, window_bounds = array<i64: 4, 18>}, {pipeline_mode = #tpu.pipeline_mode<synchronous>, transform_indices = @transform_4, window_bounds = array<i64: 4, 1>}, {pipeline_mode = #tpu.pipeline_mode<synchronous>, transform_indices = @transform_5, window_bounds = array<i64: 16, 36>}, {pipeline_mode = #tpu.pipeline_mode<synchronous>, transform_indices = @transform_6, window_bounds = array<i64: 2, 16>}, {pipeline_mode = #tpu.pipeline_mode<synchronous>, transform_indices = @transform_7, window_bounds = array<i64: 2, 1>}, {pipeline_mode = #tpu.pipeline_mode<synchronous>, transform_indices = @transform_8, window_bounds = array<i64: 4, 18>}, {pipeline_mode = #tpu.pipeline_mode<synchronous>, transform_indices = @transform_9, window_bounds = array<i64: 4, 1>}, {pipeline_mode = #tpu.pipeline_mode<synchronous>, transform_indices = @transform_10, window_bounds = array<i64: 16, 36>}, {pipeline_mode = #tpu.pipeline_mode<synchronous>, transform_indices = @transform_11, window_bounds = array<i64: 2, 16>}, {pipeline_mode = #tpu.pipeline_mode<synchronous>, transform_indices = @transform_12, window_bounds = array<i64: 2, 1>}, {pipeline_mode = #tpu.pipeline_mode<synchronous>, transform_indices = @transform_13, window_bounds = array<i64: 3, 18>}, {pipeline_mode = #tpu.pipeline_mode<synchronous>, transform_indices = @transform_14, window_bounds = array<i64: 3, 1>}, {pipeline_mode = #tpu.pipeline_mode<synchronous>, transform_indices = @transform_15, window_bounds = array<i64: 4, 27>}, {pipeline_mode = #tpu.pipeline_mode<synchronous>, transform_indices = @transform_16, window_bounds = array<i64: 4, 1>}, {pipeline_mode = #tpu.pipeline_mode<synchronous>, transform_indices = @transform_17, window_bounds = array<i64: 16, 36>}, {pipeline_mode = #tpu.pipeline_mode<synchronous>, transform_indices = @transform_18, window_bounds = array<i64: 2, 16>}, {pipeline_mode = #tpu.pipeline_mode<synchronous>, transform_indices = @transform_19, window_bounds = array<i64: 2, 1>}, {pipeline_mode = #tpu.pipeline_mode<synchronous>, transform_indices = @transform_20, window_bounds = array<i64: 3, 18>}, {pipeline_mode = #tpu.pipeline_mode<synchronous>, transform_indices = @transform_21, window_bounds = array<i64: 3, 1>}, {pipeline_mode = #tpu.pipeline_mode<synchronous>, transform_indices = @transform_22, window_bounds = array<i64: 4, 27>}, {pipeline_mode = #tpu.pipeline_mode<synchronous>, transform_indices = @transform_23, window_bounds = array<i64: 4, 1>}, {pipeline_mode = #tpu.pipeline_mode<synchronous>, transform_indices = @transform_24, window_bounds = array<i64: 16, 36>}, {pipeline_mode = #tpu.pipeline_mode<synchronous>, transform_indices = @transform_25, window_bounds = array<i64: 4, 16>}, {pipeline_mode = #tpu.pipeline_mode<synchronous>, transform_indices = @transform_26, window_bounds = array<i64: 4, 1>}, {pipeline_mode = #tpu.pipeline_mode<synchronous>, transform_indices = @transform_27, window_bounds = array<i64: 16, 4>}, {pipeline_mode = #tpu.pipeline_mode<synchronous>, transform_indices = @transform_28, window_bounds = array<i64: 16, 16>}, {pipeline_mode = #tpu.pipeline_mode<synchronous>, transform_indices = @transform_29, window_bounds = array<i64: 16, 1>}, {transform_indices = @transform_30, window_bounds = array<i64: 1, 16, 256>}]} {
    %c0 = arith.constant 0 : index
    %c0_0 = arith.constant 0 : index
    %c0_1 = arith.constant 0 : index
    %0 = vector.load %arg1[%c0, %c0_0, %c0_1] : memref<1x16x256xf32, #tpu.memory_space<vmem>>, vector<1x16x256xf32>
    %1 = vector.shape_cast %0 : vector<1x16x256xf32> to vector<16x256xf32>
    %2 = tpu.iota {dimensions = array<i32: 1>} : vector<1x256xi32>
    %c15_i32 = arith.constant 15 : i32
    %3 = vector.broadcast %c15_i32 : i32 to vector<1x256xi32>
    %4 = arith.andi %2, %3 : vector<1x256xi32>
    %c0_2 = arith.constant 0 : index
    %c0_3 = arith.constant 0 : index
    %5 = vector.load %arg29[%c0_2, %c0_3] : memref<16x16xf32, #tpu.memory_space<vmem>>, vector<16x16xf32>
    %cst = arith.constant dense<0.000000e+00> : vector<16x256xf32>
    %6 = tpu.matmul %5, %1, %cst {dimension_numbers = #tpu.dot_dimension_numbers<[1], [0], [0], [1], [0, 0, 1, 1], [], []>} : vector<16x16xf32>, vector<16x256xf32>, vector<16x256xf32> -> vector<16x256xf32>
    %c0_4 = arith.constant 0 : index
    %c0_5 = arith.constant 0 : index
    %7 = vector.load %arg30[%c0_4, %c0_5] : memref<16x1xf32, #tpu.memory_space<vmem>>, vector<16x1xf32>
    %8 = vector.broadcast %7 : vector<16x1xf32> to vector<16x256xf32>
    %9 = arith.addf %6, %8 : vector<16x256xf32>
    %c0_6 = arith.constant 0 : index
    %c0_7 = arith.constant 0 : index
    %10 = vector.load %arg2[%c0_6, %c0_7] : memref<2x16xf32, #tpu.memory_space<vmem>>, vector<2x16xf32>
    %cst_8 = arith.constant dense<0.000000e+00> : vector<2x256xf32>
    %11 = tpu.matmul %10, %1, %cst_8 {dimension_numbers = #tpu.dot_dimension_numbers<[1], [0], [0], [1], [0, 0, 1, 1], [], []>} : vector<2x16xf32>, vector<16x256xf32>, vector<2x256xf32> -> vector<2x256xf32>
    %c0_9 = arith.constant 0 : index
    %c0_10 = arith.constant 0 : index
    %12 = vector.load %arg3[%c0_9, %c0_10] : memref<2x1xf32, #tpu.memory_space<vmem>>, vector<2x1xf32>
    %13 = vector.broadcast %12 : vector<2x1xf32> to vector<2x256xf32>
    %14 = arith.addf %11, %13 : vector<2x256xf32>
    %c16_i32 = arith.constant 16 : i32
    %15 = vector.broadcast %c16_i32 : i32 to vector<1x256xi32>
    %16 = arith.cmpi sge, %2, %15 : vector<1x256xi32>
    %c240_i32 = arith.constant 240 : i32
    %17 = vector.broadcast %c240_i32 : i32 to vector<1x256xi32>
    %18 = arith.cmpi slt, %2, %17 : vector<1x256xi32>
    %c1_i32 = arith.constant 1 : i32
    %19 = vector.broadcast %c1_i32 : i32 to vector<1x256xi32>
    %20 = arith.cmpi sge, %4, %19 : vector<1x256xi32>
    %c15_i32_11 = arith.constant 15 : i32
    %21 = vector.broadcast %c15_i32_11 : i32 to vector<1x256xi32>
    %22 = arith.cmpi slt, %4, %21 : vector<1x256xi32>
    %23 = vector.extract_strided_slice %14 {offsets = [0, 239], sizes = [2, 17], strides = [1, 1]} : vector<2x256xf32> to vector<2x17xf32>
    %24 = vector.extract_strided_slice %14 {offsets = [0, 0], sizes = [2, 239], strides = [1, 1]} : vector<2x256xf32> to vector<2x239xf32>
    %25 = tpu.concatenate %23, %24 in 1 : vector<2x17xf32>, vector<2x239xf32> -> vector<2x256xf32>
    %26 = arith.andi %16, %20 : vector<1x256xi1>
    %cst_12 = arith.constant 0.000000e+00 : f32
    %27 = vector.shape_cast %26 : vector<1x256xi1> to vector<1x256xi1>
    %28 = vector.broadcast %27 : vector<1x256xi1> to vector<2x256xi1>
    %29 = vector.broadcast %cst_12 : f32 to vector<2x256xf32>
    %30 = arith.select %28, %25, %29 : vector<2x256xi1>, vector<2x256xf32>
    %c0_13 = arith.constant 0 : index
    %c0_14 = arith.constant 0 : index
    %31 = vector.load %arg32[%c0_13, %c0_14] : memref<40x256xf32, #tpu.memory_space<vmem>>, vector<2x256xf32>
    tpu.vector_store %arg32[%c0_13, %c0_14], %30 {strides = array<i32>} : memref<40x256xf32, #tpu.memory_space<vmem>>, vector<2x256xf32>,
    %32 = vector.extract_strided_slice %14 {offsets = [0, 240], sizes = [2, 16], strides = [1, 1]} : vector<2x256xf32> to vector<2x16xf32>
    %33 = vector.extract_strided_slice %14 {offsets = [0, 0], sizes = [2, 240], strides = [1, 1]} : vector<2x256xf32> to vector<2x240xf32>
    %34 = tpu.concatenate %32, %33 in 1 : vector<2x16xf32>, vector<2x240xf32> -> vector<2x256xf32>
    %cst_15 = arith.constant 0.000000e+00 : f32
    %35 = vector.shape_cast %16 : vector<1x256xi1> to vector<1x256xi1>
    %36 = vector.broadcast %35 : vector<1x256xi1> to vector<2x256xi1>
    %37 = vector.broadcast %cst_15 : f32 to vector<2x256xf32>
    %38 = arith.select %36, %34, %37 : vector<2x256xi1>, vector<2x256xf32>
    %c2 = arith.constant 2 : index
    %c0_16 = arith.constant 0 : index
    %39 = vector.load %arg32[%c2, %c0_16] : memref<40x256xf32, #tpu.memory_space<vmem>>, vector<2x256xf32>
    tpu.vector_store %arg32[%c2, %c0_16], %38 {strides = array<i32>} : memref<40x256xf32, #tpu.memory_space<vmem>>, vector<2x256xf32>,
    %40 = vector.extract_strided_slice %14 {offsets = [0, 241], sizes = [2, 15], strides = [1, 1]} : vector<2x256xf32> to vector<2x15xf32>
    %41 = vector.extract_strided_slice %14 {offsets = [0, 0], sizes = [2, 241], strides = [1, 1]} : vector<2x256xf32> to vector<2x241xf32>
    %42 = tpu.concatenate %40, %41 in 1 : vector<2x15xf32>, vector<2x241xf32> -> vector<2x256xf32>
    %43 = arith.andi %16, %22 : vector<1x256xi1>
    %cst_17 = arith.constant 0.000000e+00 : f32
    %44 = vector.shape_cast %43 : vector<1x256xi1> to vector<1x256xi1>
    %45 = vector.broadcast %44 : vector<1x256xi1> to vector<2x256xi1>
    %46 = vector.broadcast %cst_17 : f32 to vector<2x256xf32>
    %47 = arith.select %45, %42, %46 : vector<2x256xi1>, vector<2x256xf32>
    %c4 = arith.constant 4 : index
    %c0_18 = arith.constant 0 : index
    %48 = vector.load %arg32[%c4, %c0_18] : memref<40x256xf32, #tpu.memory_space<vmem>>, vector<2x256xf32>
    tpu.vector_store %arg32[%c4, %c0_18], %47 {strides = array<i32>} : memref<40x256xf32, #tpu.memory_space<vmem>>, vector<2x256xf32>,
    %49 = vector.extract_strided_slice %14 {offsets = [0, 255], sizes = [2, 1], strides = [1, 1]} : vector<2x256xf32> to vector<2x1xf32>
    %50 = vector.extract_strided_slice %14 {offsets = [0, 0], sizes = [2, 255], strides = [1, 1]} : vector<2x256xf32> to vector<2x255xf32>
    %51 = tpu.concatenate %49, %50 in 1 : vector<2x1xf32>, vector<2x255xf32> -> vector<2x256xf32>
    %cst_19 = arith.constant 0.000000e+00 : f32
    %52 = vector.shape_cast %20 : vector<1x256xi1> to vector<1x256xi1>
    %53 = vector.broadcast %52 : vector<1x256xi1> to vector<2x256xi1>
    %54 = vector.broadcast %cst_19 : f32 to vector<2x256xf32>
    %55 = arith.select %53, %51, %54 : vector<2x256xi1>, vector<2x256xf32>
    %c6 = arith.constant 6 : index
    %c0_20 = arith.constant 0 : index
    %56 = vector.load %arg32[%c6, %c0_20] : memref<40x256xf32, #tpu.memory_space<vmem>>, vector<2x256xf32>
    tpu.vector_store %arg32[%c6, %c0_20], %55 {strides = array<i32>} : memref<40x256xf32, #tpu.memory_space<vmem>>, vector<2x256xf32>,
    %c8 = arith.constant 8 : index
    %c0_21 = arith.constant 0 : index
    %57 = vector.load %arg32[%c8, %c0_21] : memref<40x256xf32, #tpu.memory_space<vmem>>, vector<2x256xf32>
    tpu.vector_store %arg32[%c8, %c0_21], %14 {strides = array<i32>} : memref<40x256xf32, #tpu.memory_space<vmem>>, vector<2x256xf32>,
    %58 = vector.extract_strided_slice %14 {offsets = [0, 1], sizes = [2, 255], strides = [1, 1]} : vector<2x256xf32> to vector<2x255xf32>
    %59 = vector.extract_strided_slice %14 {offsets = [0, 0], sizes = [2, 1], strides = [1, 1]} : vector<2x256xf32> to vector<2x1xf32>
    %60 = tpu.concatenate %58, %59 in 1 : vector<2x255xf32>, vector<2x1xf32> -> vector<2x256xf32>
    %cst_22 = arith.constant 0.000000e+00 : f32
    %61 = vector.shape_cast %22 : vector<1x256xi1> to vector<1x256xi1>
    %62 = vector.broadcast %61 : vector<1x256xi1> to vector<2x256xi1>
    %63 = vector.broadcast %cst_22 : f32 to vector<2x256xf32>
    %64 = arith.select %62, %60, %63 : vector<2x256xi1>, vector<2x256xf32>
    %c10 = arith.constant 10 : index
    %c0_23 = arith.constant 0 : index
    %65 = vector.load %arg32[%c10, %c0_23] : memref<40x256xf32, #tpu.memory_space<vmem>>, vector<2x256xf32>
    tpu.vector_store %arg32[%c10, %c0_23], %64 {strides = array<i32>} : memref<40x256xf32, #tpu.memory_space<vmem>>, vector<2x256xf32>,
    %66 = vector.extract_strided_slice %14 {offsets = [0, 15], sizes = [2, 241], strides = [1, 1]} : vector<2x256xf32> to vector<2x241xf32>
    %67 = vector.extract_strided_slice %14 {offsets = [0, 0], sizes = [2, 15], strides = [1, 1]} : vector<2x256xf32> to vector<2x15xf32>
    %68 = tpu.concatenate %66, %67 in 1 : vector<2x241xf32>, vector<2x15xf32> -> vector<2x256xf32>
    %69 = arith.andi %18, %20 : vector<1x256xi1>
    %cst_24 = arith.constant 0.000000e+00 : f32
    %70 = vector.shape_cast %69 : vector<1x256xi1> to vector<1x256xi1>
    %71 = vector.broadcast %70 : vector<1x256xi1> to vector<2x256xi1>
    %72 = vector.broadcast %cst_24 : f32 to vector<2x256xf32>
    %73 = arith.select %71, %68, %72 : vector<2x256xi1>, vector<2x256xf32>
    %c12 = arith.constant 12 : index
    %c0_25 = arith.constant 0 : index
    %74 = vector.load %arg32[%c12, %c0_25] : memref<40x256xf32, #tpu.memory_space<vmem>>, vector<2x256xf32>
    tpu.vector_store %arg32[%c12, %c0_25], %73 {strides = array<i32>} : memref<40x256xf32, #tpu.memory_space<vmem>>, vector<2x256xf32>,
    %75 = vector.extract_strided_slice %14 {offsets = [0, 16], sizes = [2, 240], strides = [1, 1]} : vector<2x256xf32> to vector<2x240xf32>
    %76 = vector.extract_strided_slice %14 {offsets = [0, 0], sizes = [2, 16], strides = [1, 1]} : vector<2x256xf32> to vector<2x16xf32>
    %77 = tpu.concatenate %75, %76 in 1 : vector<2x240xf32>, vector<2x16xf32> -> vector<2x256xf32>
    %cst_26 = arith.constant 0.000000e+00 : f32
    %78 = vector.shape_cast %18 : vector<1x256xi1> to vector<1x256xi1>
    %79 = vector.broadcast %78 : vector<1x256xi1> to vector<2x256xi1>
    %80 = vector.broadcast %cst_26 : f32 to vector<2x256xf32>
    %81 = arith.select %79, %77, %80 : vector<2x256xi1>, vector<2x256xf32>
    %c14 = arith.constant 14 : index
    %c0_27 = arith.constant 0 : index
    %82 = vector.load %arg32[%c14, %c0_27] : memref<40x256xf32, #tpu.memory_space<vmem>>, vector<2x256xf32>
    tpu.vector_store %arg32[%c14, %c0_27], %81 {strides = array<i32>} : memref<40x256xf32, #tpu.memory_space<vmem>>, vector<2x256xf32>,
    %83 = vector.extract_strided_slice %14 {offsets = [0, 17], sizes = [2, 239], strides = [1, 1]} : vector<2x256xf32> to vector<2x239xf32>
    %84 = vector.extract_strided_slice %14 {offsets = [0, 0], sizes = [2, 17], strides = [1, 1]} : vector<2x256xf32> to vector<2x17xf32>
    %85 = tpu.concatenate %83, %84 in 1 : vector<2x239xf32>, vector<2x17xf32> -> vector<2x256xf32>
    %86 = arith.andi %18, %22 : vector<1x256xi1>
    %cst_28 = arith.constant 0.000000e+00 : f32
    %87 = vector.shape_cast %86 : vector<1x256xi1> to vector<1x256xi1>
    %88 = vector.broadcast %87 : vector<1x256xi1> to vector<2x256xi1>
    %89 = vector.broadcast %cst_28 : f32 to vector<2x256xf32>
    %90 = arith.select %88, %85, %89 : vector<2x256xi1>, vector<2x256xf32>
    %c16 = arith.constant 16 : index
    %c0_29 = arith.constant 0 : index
    %91 = vector.load %arg32[%c16, %c0_29] : memref<40x256xf32, #tpu.memory_space<vmem>>, vector<2x256xf32>
    tpu.vector_store %arg32[%c16, %c0_29], %90 {strides = array<i32>} : memref<40x256xf32, #tpu.memory_space<vmem>>, vector<2x256xf32>,
    %c0_30 = arith.constant 0 : index
    %c0_31 = arith.constant 0 : index
    %92 = vector.load %arg4[%c0_30, %c0_31] : memref<4x18xf32, #tpu.memory_space<vmem>>, vector<4x18xf32>
    %c0_32 = arith.constant 0 : index
    %c0_33 = arith.constant 0 : index
    %93 = vector.load %arg32[%c0_32, %c0_33] : memref<40x256xf32, #tpu.memory_space<vmem>>, vector<18x256xf32>
    %cst_34 = arith.constant dense<0.000000e+00> : vector<4x256xf32>
    %94 = tpu.matmul %92, %93, %cst_34 {dimension_numbers = #tpu.dot_dimension_numbers<[1], [0], [0], [1], [0, 0, 1, 1], [], []>} : vector<4x18xf32>, vector<18x256xf32>, vector<4x256xf32> -> vector<4x256xf32>
    %c0_35 = arith.constant 0 : index
    %c0_36 = arith.constant 0 : index
    %95 = vector.load %arg5[%c0_35, %c0_36] : memref<4x1xf32, #tpu.memory_space<vmem>>, vector<4x1xf32>
    %96 = vector.broadcast %95 : vector<4x1xf32> to vector<4x256xf32>
    %97 = arith.addf %94, %96 : vector<4x256xf32>
    %cst_37 = arith.constant 0.000000e+00 : f32
    %98 = vector.broadcast %cst_37 : f32 to vector<4x256xf32>
    %99 = arith.maximumf %97, %98 : vector<4x256xf32>
    %c32_i32 = arith.constant 32 : i32
    %100 = vector.broadcast %c32_i32 : i32 to vector<1x256xi32>
    %101 = arith.cmpi sge, %2, %100 : vector<1x256xi32>
    %c224_i32 = arith.constant 224 : i32
    %102 = vector.broadcast %c224_i32 : i32 to vector<1x256xi32>
    %103 = arith.cmpi slt, %2, %102 : vector<1x256xi32>
    %c2_i32 = arith.constant 2 : i32
    %104 = vector.broadcast %c2_i32 : i32 to vector<1x256xi32>
    %105 = arith.cmpi sge, %4, %104 : vector<1x256xi32>
    %c14_i32 = arith.constant 14 : i32
    %106 = vector.broadcast %c14_i32 : i32 to vector<1x256xi32>
    %107 = arith.cmpi slt, %4, %106 : vector<1x256xi32>
    %108 = vector.extract_strided_slice %99 {offsets = [0, 222], sizes = [4, 34], strides = [1, 1]} : vector<4x256xf32> to vector<4x34xf32>
    %109 = vector.extract_strided_slice %99 {offsets = [0, 0], sizes = [4, 222], strides = [1, 1]} : vector<4x256xf32> to vector<4x222xf32>
    %110 = tpu.concatenate %108, %109 in 1 : vector<4x34xf32>, vector<4x222xf32> -> vector<4x256xf32>
    %111 = arith.andi %101, %105 : vector<1x256xi1>
    %cst_38 = arith.constant 0.000000e+00 : f32
    %112 = vector.shape_cast %111 : vector<1x256xi1> to vector<1x256xi1>
    %113 = vector.broadcast %112 : vector<1x256xi1> to vector<4x256xi1>
    %114 = vector.broadcast %cst_38 : f32 to vector<4x256xf32>
    %115 = arith.select %113, %110, %114 : vector<4x256xi1>, vector<4x256xf32>
    %c0_39 = arith.constant 0 : index
    %c0_40 = arith.constant 0 : index
    %116 = vector.load %arg32[%c0_39, %c0_40] : memref<40x256xf32, #tpu.memory_space<vmem>>, vector<4x256xf32>
    tpu.vector_store %arg32[%c0_39, %c0_40], %115 {strides = array<i32>} : memref<40x256xf32, #tpu.memory_space<vmem>>, vector<4x256xf32>,
    %117 = vector.extract_strided_slice %99 {offsets = [0, 224], sizes = [4, 32], strides = [1, 1]} : vector<4x256xf32> to vector<4x32xf32>
    %118 = vector.extract_strided_slice %99 {offsets = [0, 0], sizes = [4, 224], strides = [1, 1]} : vector<4x256xf32> to vector<4x224xf32>
    %119 = tpu.concatenate %117, %118 in 1 : vector<4x32xf32>, vector<4x224xf32> -> vector<4x256xf32>
    %cst_41 = arith.constant 0.000000e+00 : f32
    %120 = vector.shape_cast %101 : vector<1x256xi1> to vector<1x256xi1>
    %121 = vector.broadcast %120 : vector<1x256xi1> to vector<4x256xi1>
    %122 = vector.broadcast %cst_41 : f32 to vector<4x256xf32>
    %123 = arith.select %121, %119, %122 : vector<4x256xi1>, vector<4x256xf32>
    %c4_42 = arith.constant 4 : index
    %c0_43 = arith.constant 0 : index
    %124 = vector.load %arg32[%c4_42, %c0_43] : memref<40x256xf32, #tpu.memory_space<vmem>>, vector<4x256xf32>
    tpu.vector_store %arg32[%c4_42, %c0_43], %123 {strides = array<i32>} : memref<40x256xf32, #tpu.memory_space<vmem>>, vector<4x256xf32>,
    %125 = vector.extract_strided_slice %99 {offsets = [0, 226], sizes = [4, 30], strides = [1, 1]} : vector<4x256xf32> to vector<4x30xf32>
    %126 = vector.extract_strided_slice %99 {offsets = [0, 0], sizes = [4, 226], strides = [1, 1]} : vector<4x256xf32> to vector<4x226xf32>
    %127 = tpu.concatenate %125, %126 in 1 : vector<4x30xf32>, vector<4x226xf32> -> vector<4x256xf32>
    %128 = arith.andi %101, %107 : vector<1x256xi1>
    %cst_44 = arith.constant 0.000000e+00 : f32
    %129 = vector.shape_cast %128 : vector<1x256xi1> to vector<1x256xi1>
    %130 = vector.broadcast %129 : vector<1x256xi1> to vector<4x256xi1>
    %131 = vector.broadcast %cst_44 : f32 to vector<4x256xf32>
    %132 = arith.select %130, %127, %131 : vector<4x256xi1>, vector<4x256xf32>
    %c8_45 = arith.constant 8 : index
    %c0_46 = arith.constant 0 : index
    %133 = vector.load %arg32[%c8_45, %c0_46] : memref<40x256xf32, #tpu.memory_space<vmem>>, vector<4x256xf32>
    tpu.vector_store %arg32[%c8_45, %c0_46], %132 {strides = array<i32>} : memref<40x256xf32, #tpu.memory_space<vmem>>, vector<4x256xf32>,
    %134 = vector.extract_strided_slice %99 {offsets = [0, 254], sizes = [4, 2], strides = [1, 1]} : vector<4x256xf32> to vector<4x2xf32>
    %135 = vector.extract_strided_slice %99 {offsets = [0, 0], sizes = [4, 254], strides = [1, 1]} : vector<4x256xf32> to vector<4x254xf32>
    %136 = tpu.concatenate %134, %135 in 1 : vector<4x2xf32>, vector<4x254xf32> -> vector<4x256xf32>
    %cst_47 = arith.constant 0.000000e+00 : f32
    %137 = vector.shape_cast %105 : vector<1x256xi1> to vector<1x256xi1>
    %138 = vector.broadcast %137 : vector<1x256xi1> to vector<4x256xi1>
    %139 = vector.broadcast %cst_47 : f32 to vector<4x256xf32>
    %140 = arith.select %138, %136, %139 : vector<4x256xi1>, vector<4x256xf32>
    %c12_48 = arith.constant 12 : index
    %c0_49 = arith.constant 0 : index
    %141 = vector.load %arg32[%c12_48, %c0_49] : memref<40x256xf32, #tpu.memory_space<vmem>>, vector<4x256xf32>
    tpu.vector_store %arg32[%c12_48, %c0_49], %140 {strides = array<i32>} : memref<40x256xf32, #tpu.memory_space<vmem>>, vector<4x256xf32>,
    %c16_50 = arith.constant 16 : index
    %c0_51 = arith.constant 0 : index
    %142 = vector.load %arg32[%c16_50, %c0_51] : memref<40x256xf32, #tpu.memory_space<vmem>>, vector<4x256xf32>
    tpu.vector_store %arg32[%c16_50, %c0_51], %99 {strides = array<i32>} : memref<40x256xf32, #tpu.memory_space<vmem>>, vector<4x256xf32>,
    %143 = vector.extract_strided_slice %99 {offsets = [0, 2], sizes = [4, 254], strides = [1, 1]} : vector<4x256xf32> to vector<4x254xf32>
    %144 = vector.extract_strided_slice %99 {offsets = [0, 0], sizes = [4, 2], strides = [1, 1]} : vector<4x256xf32> to vector<4x2xf32>
    %145 = tpu.concatenate %143, %144 in 1 : vector<4x254xf32>, vector<4x2xf32> -> vector<4x256xf32>
    %cst_52 = arith.constant 0.000000e+00 : f32
    %146 = vector.shape_cast %107 : vector<1x256xi1> to vector<1x256xi1>
    %147 = vector.broadcast %146 : vector<1x256xi1> to vector<4x256xi1>
    %148 = vector.broadcast %cst_52 : f32 to vector<4x256xf32>
    %149 = arith.select %147, %145, %148 : vector<4x256xi1>, vector<4x256xf32>
    %c20 = arith.constant 20 : index
    %c0_53 = arith.constant 0 : index
    %150 = vector.load %arg32[%c20, %c0_53] : memref<40x256xf32, #tpu.memory_space<vmem>>, vector<4x256xf32>
    tpu.vector_store %arg32[%c20, %c0_53], %149 {strides = array<i32>} : memref<40x256xf32, #tpu.memory_space<vmem>>, vector<4x256xf32>,
    %151 = vector.extract_strided_slice %99 {offsets = [0, 30], sizes = [4, 226], strides = [1, 1]} : vector<4x256xf32> to vector<4x226xf32>
    %152 = vector.extract_strided_slice %99 {offsets = [0, 0], sizes = [4, 30], strides = [1, 1]} : vector<4x256xf32> to vector<4x30xf32>
    %153 = tpu.concatenate %151, %152 in 1 : vector<4x226xf32>, vector<4x30xf32> -> vector<4x256xf32>
    %154 = arith.andi %103, %105 : vector<1x256xi1>
    %cst_54 = arith.constant 0.000000e+00 : f32
    %155 = vector.shape_cast %154 : vector<1x256xi1> to vector<1x256xi1>
    %156 = vector.broadcast %155 : vector<1x256xi1> to vector<4x256xi1>
    %157 = vector.broadcast %cst_54 : f32 to vector<4x256xf32>
    %158 = arith.select %156, %153, %157 : vector<4x256xi1>, vector<4x256xf32>
    %c24 = arith.constant 24 : index
    %c0_55 = arith.constant 0 : index
    %159 = vector.load %arg32[%c24, %c0_55] : memref<40x256xf32, #tpu.memory_space<vmem>>, vector<4x256xf32>
    tpu.vector_store %arg32[%c24, %c0_55], %158 {strides = array<i32>} : memref<40x256xf32, #tpu.memory_space<vmem>>, vector<4x256xf32>,
    %160 = vector.extract_strided_slice %99 {offsets = [0, 32], sizes = [4, 224], strides = [1, 1]} : vector<4x256xf32> to vector<4x224xf32>
    %161 = vector.extract_strided_slice %99 {offsets = [0, 0], sizes = [4, 32], strides = [1, 1]} : vector<4x256xf32> to vector<4x32xf32>
    %162 = tpu.concatenate %160, %161 in 1 : vector<4x224xf32>, vector<4x32xf32> -> vector<4x256xf32>
    %cst_56 = arith.constant 0.000000e+00 : f32
    %163 = vector.shape_cast %103 : vector<1x256xi1> to vector<1x256xi1>
    %164 = vector.broadcast %163 : vector<1x256xi1> to vector<4x256xi1>
    %165 = vector.broadcast %cst_56 : f32 to vector<4x256xf32>
    %166 = arith.select %164, %162, %165 : vector<4x256xi1>, vector<4x256xf32>
    %c28 = arith.constant 28 : index
    %c0_57 = arith.constant 0 : index
    %167 = vector.load %arg32[%c28, %c0_57] : memref<40x256xf32, #tpu.memory_space<vmem>>, vector<4x256xf32>
    tpu.vector_store %arg32[%c28, %c0_57], %166 {strides = array<i32>} : memref<40x256xf32, #tpu.memory_space<vmem>>, vector<4x256xf32>,
    %168 = vector.extract_strided_slice %99 {offsets = [0, 34], sizes = [4, 222], strides = [1, 1]} : vector<4x256xf32> to vector<4x222xf32>
    %169 = vector.extract_strided_slice %99 {offsets = [0, 0], sizes = [4, 34], strides = [1, 1]} : vector<4x256xf32> to vector<4x34xf32>
    %170 = tpu.concatenate %168, %169 in 1 : vector<4x222xf32>, vector<4x34xf32> -> vector<4x256xf32>
    %171 = arith.andi %103, %107 : vector<1x256xi1>
    %cst_58 = arith.constant 0.000000e+00 : f32
    %172 = vector.shape_cast %171 : vector<1x256xi1> to vector<1x256xi1>
    %173 = vector.broadcast %172 : vector<1x256xi1> to vector<4x256xi1>
    %174 = vector.broadcast %cst_58 : f32 to vector<4x256xf32>
    %175 = arith.select %173, %170, %174 : vector<4x256xi1>, vector<4x256xf32>
    %c32 = arith.constant 32 : index
    %c0_59 = arith.constant 0 : index
    %176 = vector.load %arg32[%c32, %c0_59] : memref<40x256xf32, #tpu.memory_space<vmem>>, vector<4x256xf32>
    tpu.vector_store %arg32[%c32, %c0_59], %175 {strides = array<i32>} : memref<40x256xf32, #tpu.memory_space<vmem>>, vector<4x256xf32>,
    %c0_60 = arith.constant 0 : index
    %c0_61 = arith.constant 0 : index
    %177 = vector.load %arg6[%c0_60, %c0_61] : memref<16x36xf32, #tpu.memory_space<vmem>>, vector<16x36xf32>
    %c0_62 = arith.constant 0 : index
    %c0_63 = arith.constant 0 : index
    %178 = vector.load %arg32[%c0_62, %c0_63] : memref<40x256xf32, #tpu.memory_space<vmem>>, vector<36x256xf32>
    %cst_64 = arith.constant dense<0.000000e+00> : vector<16x256xf32>
    %179 = tpu.matmul %177, %178, %cst_64 {dimension_numbers = #tpu.dot_dimension_numbers<[1], [0], [0], [1], [0, 0, 1, 1], [], []>} : vector<16x36xf32>, vector<36x256xf32>, vector<16x256xf32> -> vector<16x256xf32>
    %180 = arith.addf %9, %179 : vector<16x256xf32>
    %c0_65 = arith.constant 0 : index
    %c0_66 = arith.constant 0 : index
    %181 = vector.load %arg7[%c0_65, %c0_66] : memref<2x16xf32, #tpu.memory_space<vmem>>, vector<2x16xf32>
    %cst_67 = arith.constant dense<0.000000e+00> : vector<2x256xf32>
    %182 = tpu.matmul %181, %1, %cst_67 {dimension_numbers = #tpu.dot_dimension_numbers<[1], [0], [0], [1], [0, 0, 1, 1], [], []>} : vector<2x16xf32>, vector<16x256xf32>, vector<2x256xf32> -> vector<2x256xf32>
    %c0_68 = arith.constant 0 : index
    %c0_69 = arith.constant 0 : index
    %183 = vector.load %arg8[%c0_68, %c0_69] : memref<2x1xf32, #tpu.memory_space<vmem>>, vector<2x1xf32>
    %184 = vector.broadcast %183 : vector<2x1xf32> to vector<2x256xf32>
    %185 = arith.addf %182, %184 : vector<2x256xf32>
    %c16_i32_70 = arith.constant 16 : i32
    %186 = vector.broadcast %c16_i32_70 : i32 to vector<1x256xi32>
    %187 = arith.cmpi sge, %2, %186 : vector<1x256xi32>
    %c240_i32_71 = arith.constant 240 : i32
    %188 = vector.broadcast %c240_i32_71 : i32 to vector<1x256xi32>
    %189 = arith.cmpi slt, %2, %188 : vector<1x256xi32>
    %c1_i32_72 = arith.constant 1 : i32
    %190 = vector.broadcast %c1_i32_72 : i32 to vector<1x256xi32>
    %191 = arith.cmpi sge, %4, %190 : vector<1x256xi32>
    %c15_i32_73 = arith.constant 15 : i32
    %192 = vector.broadcast %c15_i32_73 : i32 to vector<1x256xi32>
    %193 = arith.cmpi slt, %4, %192 : vector<1x256xi32>
    %194 = vector.extract_strided_slice %185 {offsets = [0, 239], sizes = [2, 17], strides = [1, 1]} : vector<2x256xf32> to vector<2x17xf32>
    %195 = vector.extract_strided_slice %185 {offsets = [0, 0], sizes = [2, 239], strides = [1, 1]} : vector<2x256xf32> to vector<2x239xf32>
    %196 = tpu.concatenate %194, %195 in 1 : vector<2x17xf32>, vector<2x239xf32> -> vector<2x256xf32>
    %197 = arith.andi %187, %191 : vector<1x256xi1>
    %cst_74 = arith.constant 0.000000e+00 : f32
    %198 = vector.shape_cast %197 : vector<1x256xi1> to vector<1x256xi1>
    %199 = vector.broadcast %198 : vector<1x256xi1> to vector<2x256xi1>
    %200 = vector.broadcast %cst_74 : f32 to vector<2x256xf32>
    %201 = arith.select %199, %196, %200 : vector<2x256xi1>, vector<2x256xf32>
    %c0_75 = arith.constant 0 : index
    %c0_76 = arith.constant 0 : index
    %202 = vector.load %arg32[%c0_75, %c0_76] : memref<40x256xf32, #tpu.memory_space<vmem>>, vector<2x256xf32>
    tpu.vector_store %arg32[%c0_75, %c0_76], %201 {strides = array<i32>} : memref<40x256xf32, #tpu.memory_space<vmem>>, vector<2x256xf32>,
    %203 = vector.extract_strided_slice %185 {offsets = [0, 240], sizes = [2, 16], strides = [1, 1]} : vector<2x256xf32> to vector<2x16xf32>
    %204 = vector.extract_strided_slice %185 {offsets = [0, 0], sizes = [2, 240], strides = [1, 1]} : vector<2x256xf32> to vector<2x240xf32>
    %205 = tpu.concatenate %203, %204 in 1 : vector<2x16xf32>, vector<2x240xf32> -> vector<2x256xf32>
    %cst_77 = arith.constant 0.000000e+00 : f32
    %206 = vector.shape_cast %187 : vector<1x256xi1> to vector<1x256xi1>
    %207 = vector.broadcast %206 : vector<1x256xi1> to vector<2x256xi1>
    %208 = vector.broadcast %cst_77 : f32 to vector<2x256xf32>
    %209 = arith.select %207, %205, %208 : vector<2x256xi1>, vector<2x256xf32>
    %c2_78 = arith.constant 2 : index
    %c0_79 = arith.constant 0 : index
    %210 = vector.load %arg32[%c2_78, %c0_79] : memref<40x256xf32, #tpu.memory_space<vmem>>, vector<2x256xf32>
    tpu.vector_store %arg32[%c2_78, %c0_79], %209 {strides = array<i32>} : memref<40x256xf32, #tpu.memory_space<vmem>>, vector<2x256xf32>,
    %211 = vector.extract_strided_slice %185 {offsets = [0, 241], sizes = [2, 15], strides = [1, 1]} : vector<2x256xf32> to vector<2x15xf32>
    %212 = vector.extract_strided_slice %185 {offsets = [0, 0], sizes = [2, 241], strides = [1, 1]} : vector<2x256xf32> to vector<2x241xf32>
    %213 = tpu.concatenate %211, %212 in 1 : vector<2x15xf32>, vector<2x241xf32> -> vector<2x256xf32>
    %214 = arith.andi %187, %193 : vector<1x256xi1>
    %cst_80 = arith.constant 0.000000e+00 : f32
    %215 = vector.shape_cast %214 : vector<1x256xi1> to vector<1x256xi1>
    %216 = vector.broadcast %215 : vector<1x256xi1> to vector<2x256xi1>
    %217 = vector.broadcast %cst_80 : f32 to vector<2x256xf32>
    %218 = arith.select %216, %213, %217 : vector<2x256xi1>, vector<2x256xf32>
    %c4_81 = arith.constant 4 : index
    %c0_82 = arith.constant 0 : index
    %219 = vector.load %arg32[%c4_81, %c0_82] : memref<40x256xf32, #tpu.memory_space<vmem>>, vector<2x256xf32>
    tpu.vector_store %arg32[%c4_81, %c0_82], %218 {strides = array<i32>} : memref<40x256xf32, #tpu.memory_space<vmem>>, vector<2x256xf32>,
    %220 = vector.extract_strided_slice %185 {offsets = [0, 255], sizes = [2, 1], strides = [1, 1]} : vector<2x256xf32> to vector<2x1xf32>
    %221 = vector.extract_strided_slice %185 {offsets = [0, 0], sizes = [2, 255], strides = [1, 1]} : vector<2x256xf32> to vector<2x255xf32>
    %222 = tpu.concatenate %220, %221 in 1 : vector<2x1xf32>, vector<2x255xf32> -> vector<2x256xf32>
    %cst_83 = arith.constant 0.000000e+00 : f32
    %223 = vector.shape_cast %191 : vector<1x256xi1> to vector<1x256xi1>
    %224 = vector.broadcast %223 : vector<1x256xi1> to vector<2x256xi1>
    %225 = vector.broadcast %cst_83 : f32 to vector<2x256xf32>
    %226 = arith.select %224, %222, %225 : vector<2x256xi1>, vector<2x256xf32>
    %c6_84 = arith.constant 6 : index
    %c0_85 = arith.constant 0 : index
    %227 = vector.load %arg32[%c6_84, %c0_85] : memref<40x256xf32, #tpu.memory_space<vmem>>, vector<2x256xf32>
    tpu.vector_store %arg32[%c6_84, %c0_85], %226 {strides = array<i32>} : memref<40x256xf32, #tpu.memory_space<vmem>>, vector<2x256xf32>,
    %c8_86 = arith.constant 8 : index
    %c0_87 = arith.constant 0 : index
    %228 = vector.load %arg32[%c8_86, %c0_87] : memref<40x256xf32, #tpu.memory_space<vmem>>, vector<2x256xf32>
    tpu.vector_store %arg32[%c8_86, %c0_87], %185 {strides = array<i32>} : memref<40x256xf32, #tpu.memory_space<vmem>>, vector<2x256xf32>,
    %229 = vector.extract_strided_slice %185 {offsets = [0, 1], sizes = [2, 255], strides = [1, 1]} : vector<2x256xf32> to vector<2x255xf32>
    %230 = vector.extract_strided_slice %185 {offsets = [0, 0], sizes = [2, 1], strides = [1, 1]} : vector<2x256xf32> to vector<2x1xf32>
    %231 = tpu.concatenate %229, %230 in 1 : vector<2x255xf32>, vector<2x1xf32> -> vector<2x256xf32>
    %cst_88 = arith.constant 0.000000e+00 : f32
    %232 = vector.shape_cast %193 : vector<1x256xi1> to vector<1x256xi1>
    %233 = vector.broadcast %232 : vector<1x256xi1> to vector<2x256xi1>
    %234 = vector.broadcast %cst_88 : f32 to vector<2x256xf32>
    %235 = arith.select %233, %231, %234 : vector<2x256xi1>, vector<2x256xf32>
    %c10_89 = arith.constant 10 : index
    %c0_90 = arith.constant 0 : index
    %236 = vector.load %arg32[%c10_89, %c0_90] : memref<40x256xf32, #tpu.memory_space<vmem>>, vector<2x256xf32>
    tpu.vector_store %arg32[%c10_89, %c0_90], %235 {strides = array<i32>} : memref<40x256xf32, #tpu.memory_space<vmem>>, vector<2x256xf32>,
    %237 = vector.extract_strided_slice %185 {offsets = [0, 15], sizes = [2, 241], strides = [1, 1]} : vector<2x256xf32> to vector<2x241xf32>
    %238 = vector.extract_strided_slice %185 {offsets = [0, 0], sizes = [2, 15], strides = [1, 1]} : vector<2x256xf32> to vector<2x15xf32>
    %239 = tpu.concatenate %237, %238 in 1 : vector<2x241xf32>, vector<2x15xf32> -> vector<2x256xf32>
    %240 = arith.andi %189, %191 : vector<1x256xi1>
    %cst_91 = arith.constant 0.000000e+00 : f32
    %241 = vector.shape_cast %240 : vector<1x256xi1> to vector<1x256xi1>
    %242 = vector.broadcast %241 : vector<1x256xi1> to vector<2x256xi1>
    %243 = vector.broadcast %cst_91 : f32 to vector<2x256xf32>
    %244 = arith.select %242, %239, %243 : vector<2x256xi1>, vector<2x256xf32>
    %c12_92 = arith.constant 12 : index
    %c0_93 = arith.constant 0 : index
    %245 = vector.load %arg32[%c12_92, %c0_93] : memref<40x256xf32, #tpu.memory_space<vmem>>, vector<2x256xf32>
    tpu.vector_store %arg32[%c12_92, %c0_93], %244 {strides = array<i32>} : memref<40x256xf32, #tpu.memory_space<vmem>>, vector<2x256xf32>,
    %246 = vector.extract_strided_slice %185 {offsets = [0, 16], sizes = [2, 240], strides = [1, 1]} : vector<2x256xf32> to vector<2x240xf32>
    %247 = vector.extract_strided_slice %185 {offsets = [0, 0], sizes = [2, 16], strides = [1, 1]} : vector<2x256xf32> to vector<2x16xf32>
    %248 = tpu.concatenate %246, %247 in 1 : vector<2x240xf32>, vector<2x16xf32> -> vector<2x256xf32>
    %cst_94 = arith.constant 0.000000e+00 : f32
    %249 = vector.shape_cast %189 : vector<1x256xi1> to vector<1x256xi1>
    %250 = vector.broadcast %249 : vector<1x256xi1> to vector<2x256xi1>
    %251 = vector.broadcast %cst_94 : f32 to vector<2x256xf32>
    %252 = arith.select %250, %248, %251 : vector<2x256xi1>, vector<2x256xf32>
    %c14_95 = arith.constant 14 : index
    %c0_96 = arith.constant 0 : index
    %253 = vector.load %arg32[%c14_95, %c0_96] : memref<40x256xf32, #tpu.memory_space<vmem>>, vector<2x256xf32>
    tpu.vector_store %arg32[%c14_95, %c0_96], %252 {strides = array<i32>} : memref<40x256xf32, #tpu.memory_space<vmem>>, vector<2x256xf32>,
    %254 = vector.extract_strided_slice %185 {offsets = [0, 17], sizes = [2, 239], strides = [1, 1]} : vector<2x256xf32> to vector<2x239xf32>
    %255 = vector.extract_strided_slice %185 {offsets = [0, 0], sizes = [2, 17], strides = [1, 1]} : vector<2x256xf32> to vector<2x17xf32>
    %256 = tpu.concatenate %254, %255 in 1 : vector<2x239xf32>, vector<2x17xf32> -> vector<2x256xf32>
    %257 = arith.andi %189, %193 : vector<1x256xi1>
    %cst_97 = arith.constant 0.000000e+00 : f32
    %258 = vector.shape_cast %257 : vector<1x256xi1> to vector<1x256xi1>
    %259 = vector.broadcast %258 : vector<1x256xi1> to vector<2x256xi1>
    %260 = vector.broadcast %cst_97 : f32 to vector<2x256xf32>
    %261 = arith.select %259, %256, %260 : vector<2x256xi1>, vector<2x256xf32>
    %c16_98 = arith.constant 16 : index
    %c0_99 = arith.constant 0 : index
    %262 = vector.load %arg32[%c16_98, %c0_99] : memref<40x256xf32, #tpu.memory_space<vmem>>, vector<2x256xf32>
    tpu.vector_store %arg32[%c16_98, %c0_99], %261 {strides = array<i32>} : memref<40x256xf32, #tpu.memory_space<vmem>>, vector<2x256xf32>,
    %c0_100 = arith.constant 0 : index
    %c0_101 = arith.constant 0 : index
    %263 = vector.load %arg9[%c0_100, %c0_101] : memref<4x18xf32, #tpu.memory_space<vmem>>, vector<4x18xf32>
    %c0_102 = arith.constant 0 : index
    %c0_103 = arith.constant 0 : index
    %264 = vector.load %arg32[%c0_102, %c0_103] : memref<40x256xf32, #tpu.memory_space<vmem>>, vector<18x256xf32>
    %cst_104 = arith.constant dense<0.000000e+00> : vector<4x256xf32>
    %265 = tpu.matmul %263, %264, %cst_104 {dimension_numbers = #tpu.dot_dimension_numbers<[1], [0], [0], [1], [0, 0, 1, 1], [], []>} : vector<4x18xf32>, vector<18x256xf32>, vector<4x256xf32> -> vector<4x256xf32>
    %c0_105 = arith.constant 0 : index
    %c0_106 = arith.constant 0 : index
    %266 = vector.load %arg10[%c0_105, %c0_106] : memref<4x1xf32, #tpu.memory_space<vmem>>, vector<4x1xf32>
    %267 = vector.broadcast %266 : vector<4x1xf32> to vector<4x256xf32>
    %268 = arith.addf %265, %267 : vector<4x256xf32>
    %cst_107 = arith.constant 0.000000e+00 : f32
    %269 = vector.broadcast %cst_107 : f32 to vector<4x256xf32>
    %270 = arith.maximumf %268, %269 : vector<4x256xf32>
    %c48_i32 = arith.constant 48 : i32
    %271 = vector.broadcast %c48_i32 : i32 to vector<1x256xi32>
    %272 = arith.cmpi sge, %2, %271 : vector<1x256xi32>
    %c208_i32 = arith.constant 208 : i32
    %273 = vector.broadcast %c208_i32 : i32 to vector<1x256xi32>
    %274 = arith.cmpi slt, %2, %273 : vector<1x256xi32>
    %c3_i32 = arith.constant 3 : i32
    %275 = vector.broadcast %c3_i32 : i32 to vector<1x256xi32>
    %276 = arith.cmpi sge, %4, %275 : vector<1x256xi32>
    %c13_i32 = arith.constant 13 : i32
    %277 = vector.broadcast %c13_i32 : i32 to vector<1x256xi32>
    %278 = arith.cmpi slt, %4, %277 : vector<1x256xi32>
    %279 = vector.extract_strided_slice %270 {offsets = [0, 205], sizes = [4, 51], strides = [1, 1]} : vector<4x256xf32> to vector<4x51xf32>
    %280 = vector.extract_strided_slice %270 {offsets = [0, 0], sizes = [4, 205], strides = [1, 1]} : vector<4x256xf32> to vector<4x205xf32>
    %281 = tpu.concatenate %279, %280 in 1 : vector<4x51xf32>, vector<4x205xf32> -> vector<4x256xf32>
    %282 = arith.andi %272, %276 : vector<1x256xi1>
    %cst_108 = arith.constant 0.000000e+00 : f32
    %283 = vector.shape_cast %282 : vector<1x256xi1> to vector<1x256xi1>
    %284 = vector.broadcast %283 : vector<1x256xi1> to vector<4x256xi1>
    %285 = vector.broadcast %cst_108 : f32 to vector<4x256xf32>
    %286 = arith.select %284, %281, %285 : vector<4x256xi1>, vector<4x256xf32>
    %c0_109 = arith.constant 0 : index
    %c0_110 = arith.constant 0 : index
    %287 = vector.load %arg32[%c0_109, %c0_110] : memref<40x256xf32, #tpu.memory_space<vmem>>, vector<4x256xf32>
    tpu.vector_store %arg32[%c0_109, %c0_110], %286 {strides = array<i32>} : memref<40x256xf32, #tpu.memory_space<vmem>>, vector<4x256xf32>,
    %288 = vector.extract_strided_slice %270 {offsets = [0, 208], sizes = [4, 48], strides = [1, 1]} : vector<4x256xf32> to vector<4x48xf32>
    %289 = vector.extract_strided_slice %270 {offsets = [0, 0], sizes = [4, 208], strides = [1, 1]} : vector<4x256xf32> to vector<4x208xf32>
    %290 = tpu.concatenate %288, %289 in 1 : vector<4x48xf32>, vector<4x208xf32> -> vector<4x256xf32>
    %cst_111 = arith.constant 0.000000e+00 : f32
    %291 = vector.shape_cast %272 : vector<1x256xi1> to vector<1x256xi1>
    %292 = vector.broadcast %291 : vector<1x256xi1> to vector<4x256xi1>
    %293 = vector.broadcast %cst_111 : f32 to vector<4x256xf32>
    %294 = arith.select %292, %290, %293 : vector<4x256xi1>, vector<4x256xf32>
    %c4_112 = arith.constant 4 : index
    %c0_113 = arith.constant 0 : index
    %295 = vector.load %arg32[%c4_112, %c0_113] : memref<40x256xf32, #tpu.memory_space<vmem>>, vector<4x256xf32>
    tpu.vector_store %arg32[%c4_112, %c0_113], %294 {strides = array<i32>} : memref<40x256xf32, #tpu.memory_space<vmem>>, vector<4x256xf32>,
    %296 = vector.extract_strided_slice %270 {offsets = [0, 211], sizes = [4, 45], strides = [1, 1]} : vector<4x256xf32> to vector<4x45xf32>
    %297 = vector.extract_strided_slice %270 {offsets = [0, 0], sizes = [4, 211], strides = [1, 1]} : vector<4x256xf32> to vector<4x211xf32>
    %298 = tpu.concatenate %296, %297 in 1 : vector<4x45xf32>, vector<4x211xf32> -> vector<4x256xf32>
    %299 = arith.andi %272, %278 : vector<1x256xi1>
    %cst_114 = arith.constant 0.000000e+00 : f32
    %300 = vector.shape_cast %299 : vector<1x256xi1> to vector<1x256xi1>
    %301 = vector.broadcast %300 : vector<1x256xi1> to vector<4x256xi1>
    %302 = vector.broadcast %cst_114 : f32 to vector<4x256xf32>
    %303 = arith.select %301, %298, %302 : vector<4x256xi1>, vector<4x256xf32>
    %c8_115 = arith.constant 8 : index
    %c0_116 = arith.constant 0 : index
    %304 = vector.load %arg32[%c8_115, %c0_116] : memref<40x256xf32, #tpu.memory_space<vmem>>, vector<4x256xf32>
    tpu.vector_store %arg32[%c8_115, %c0_116], %303 {strides = array<i32>} : memref<40x256xf32, #tpu.memory_space<vmem>>, vector<4x256xf32>,
    %305 = vector.extract_strided_slice %270 {offsets = [0, 253], sizes = [4, 3], strides = [1, 1]} : vector<4x256xf32> to vector<4x3xf32>
    %306 = vector.extract_strided_slice %270 {offsets = [0, 0], sizes = [4, 253], strides = [1, 1]} : vector<4x256xf32> to vector<4x253xf32>
    %307 = tpu.concatenate %305, %306 in 1 : vector<4x3xf32>, vector<4x253xf32> -> vector<4x256xf32>
    %cst_117 = arith.constant 0.000000e+00 : f32
    %308 = vector.shape_cast %276 : vector<1x256xi1> to vector<1x256xi1>
    %309 = vector.broadcast %308 : vector<1x256xi1> to vector<4x256xi1>
    %310 = vector.broadcast %cst_117 : f32 to vector<4x256xf32>
    %311 = arith.select %309, %307, %310 : vector<4x256xi1>, vector<4x256xf32>
    %c12_118 = arith.constant 12 : index
    %c0_119 = arith.constant 0 : index
    %312 = vector.load %arg32[%c12_118, %c0_119] : memref<40x256xf32, #tpu.memory_space<vmem>>, vector<4x256xf32>
    tpu.vector_store %arg32[%c12_118, %c0_119], %311 {strides = array<i32>} : memref<40x256xf32, #tpu.memory_space<vmem>>, vector<4x256xf32>,
    %c16_120 = arith.constant 16 : index
    %c0_121 = arith.constant 0 : index
    %313 = vector.load %arg32[%c16_120, %c0_121] : memref<40x256xf32, #tpu.memory_space<vmem>>, vector<4x256xf32>
    tpu.vector_store %arg32[%c16_120, %c0_121], %270 {strides = array<i32>} : memref<40x256xf32, #tpu.memory_space<vmem>>, vector<4x256xf32>,
    %314 = vector.extract_strided_slice %270 {offsets = [0, 3], sizes = [4, 253], strides = [1, 1]} : vector<4x256xf32> to vector<4x253xf32>
    %315 = vector.extract_strided_slice %270 {offsets = [0, 0], sizes = [4, 3], strides = [1, 1]} : vector<4x256xf32> to vector<4x3xf32>
    %316 = tpu.concatenate %314, %315 in 1 : vector<4x253xf32>, vector<4x3xf32> -> vector<4x256xf32>
    %cst_122 = arith.constant 0.000000e+00 : f32
    %317 = vector.shape_cast %278 : vector<1x256xi1> to vector<1x256xi1>
    %318 = vector.broadcast %317 : vector<1x256xi1> to vector<4x256xi1>
    %319 = vector.broadcast %cst_122 : f32 to vector<4x256xf32>
    %320 = arith.select %318, %316, %319 : vector<4x256xi1>, vector<4x256xf32>
    %c20_123 = arith.constant 20 : index
    %c0_124 = arith.constant 0 : index
    %321 = vector.load %arg32[%c20_123, %c0_124] : memref<40x256xf32, #tpu.memory_space<vmem>>, vector<4x256xf32>
    tpu.vector_store %arg32[%c20_123, %c0_124], %320 {strides = array<i32>} : memref<40x256xf32, #tpu.memory_space<vmem>>, vector<4x256xf32>,
    %322 = vector.extract_strided_slice %270 {offsets = [0, 45], sizes = [4, 211], strides = [1, 1]} : vector<4x256xf32> to vector<4x211xf32>
    %323 = vector.extract_strided_slice %270 {offsets = [0, 0], sizes = [4, 45], strides = [1, 1]} : vector<4x256xf32> to vector<4x45xf32>
    %324 = tpu.concatenate %322, %323 in 1 : vector<4x211xf32>, vector<4x45xf32> -> vector<4x256xf32>
    %325 = arith.andi %274, %276 : vector<1x256xi1>
    %cst_125 = arith.constant 0.000000e+00 : f32
    %326 = vector.shape_cast %325 : vector<1x256xi1> to vector<1x256xi1>
    %327 = vector.broadcast %326 : vector<1x256xi1> to vector<4x256xi1>
    %328 = vector.broadcast %cst_125 : f32 to vector<4x256xf32>
    %329 = arith.select %327, %324, %328 : vector<4x256xi1>, vector<4x256xf32>
    %c24_126 = arith.constant 24 : index
    %c0_127 = arith.constant 0 : index
    %330 = vector.load %arg32[%c24_126, %c0_127] : memref<40x256xf32, #tpu.memory_space<vmem>>, vector<4x256xf32>
    tpu.vector_store %arg32[%c24_126, %c0_127], %329 {strides = array<i32>} : memref<40x256xf32, #tpu.memory_space<vmem>>, vector<4x256xf32>,
    %331 = vector.extract_strided_slice %270 {offsets = [0, 48], sizes = [4, 208], strides = [1, 1]} : vector<4x256xf32> to vector<4x208xf32>
    %332 = vector.extract_strided_slice %270 {offsets = [0, 0], sizes = [4, 48], strides = [1, 1]} : vector<4x256xf32> to vector<4x48xf32>
    %333 = tpu.concatenate %331, %332 in 1 : vector<4x208xf32>, vector<4x48xf32> -> vector<4x256xf32>
    %cst_128 = arith.constant 0.000000e+00 : f32
    %334 = vector.shape_cast %274 : vector<1x256xi1> to vector<1x256xi1>
    %335 = vector.broadcast %334 : vector<1x256xi1> to vector<4x256xi1>
    %336 = vector.broadcast %cst_128 : f32 to vector<4x256xf32>
    %337 = arith.select %335, %333, %336 : vector<4x256xi1>, vector<4x256xf32>
    %c28_129 = arith.constant 28 : index
    %c0_130 = arith.constant 0 : index
    %338 = vector.load %arg32[%c28_129, %c0_130] : memref<40x256xf32, #tpu.memory_space<vmem>>, vector<4x256xf32>
    tpu.vector_store %arg32[%c28_129, %c0_130], %337 {strides = array<i32>} : memref<40x256xf32, #tpu.memory_space<vmem>>, vector<4x256xf32>,
    %339 = vector.extract_strided_slice %270 {offsets = [0, 51], sizes = [4, 205], strides = [1, 1]} : vector<4x256xf32> to vector<4x205xf32>
    %340 = vector.extract_strided_slice %270 {offsets = [0, 0], sizes = [4, 51], strides = [1, 1]} : vector<4x256xf32> to vector<4x51xf32>
    %341 = tpu.concatenate %339, %340 in 1 : vector<4x205xf32>, vector<4x51xf32> -> vector<4x256xf32>
    %342 = arith.andi %274, %278 : vector<1x256xi1>
    %cst_131 = arith.constant 0.000000e+00 : f32
    %343 = vector.shape_cast %342 : vector<1x256xi1> to vector<1x256xi1>
    %344 = vector.broadcast %343 : vector<1x256xi1> to vector<4x256xi1>
    %345 = vector.broadcast %cst_131 : f32 to vector<4x256xf32>
    %346 = arith.select %344, %341, %345 : vector<4x256xi1>, vector<4x256xf32>
    %c32_132 = arith.constant 32 : index
    %c0_133 = arith.constant 0 : index
    %347 = vector.load %arg32[%c32_132, %c0_133] : memref<40x256xf32, #tpu.memory_space<vmem>>, vector<4x256xf32>
    tpu.vector_store %arg32[%c32_132, %c0_133], %346 {strides = array<i32>} : memref<40x256xf32, #tpu.memory_space<vmem>>, vector<4x256xf32>,
    %c0_134 = arith.constant 0 : index
    %c0_135 = arith.constant 0 : index
    %348 = vector.load %arg11[%c0_134, %c0_135] : memref<16x36xf32, #tpu.memory_space<vmem>>, vector<16x36xf32>
    %c0_136 = arith.constant 0 : index
    %c0_137 = arith.constant 0 : index
    %349 = vector.load %arg32[%c0_136, %c0_137] : memref<40x256xf32, #tpu.memory_space<vmem>>, vector<36x256xf32>
    %cst_138 = arith.constant dense<0.000000e+00> : vector<16x256xf32>
    %350 = tpu.matmul %348, %349, %cst_138 {dimension_numbers = #tpu.dot_dimension_numbers<[1], [0], [0], [1], [0, 0, 1, 1], [], []>} : vector<16x36xf32>, vector<36x256xf32>, vector<16x256xf32> -> vector<16x256xf32>
    %351 = arith.addf %180, %350 : vector<16x256xf32>
    %c0_139 = arith.constant 0 : index
    %c0_140 = arith.constant 0 : index
    %352 = vector.load %arg12[%c0_139, %c0_140] : memref<2x16xf32, #tpu.memory_space<vmem>>, vector<2x16xf32>
    %cst_141 = arith.constant dense<0.000000e+00> : vector<2x256xf32>
    %353 = tpu.matmul %352, %1, %cst_141 {dimension_numbers = #tpu.dot_dimension_numbers<[1], [0], [0], [1], [0, 0, 1, 1], [], []>} : vector<2x16xf32>, vector<16x256xf32>, vector<2x256xf32> -> vector<2x256xf32>
    %c0_142 = arith.constant 0 : index
    %c0_143 = arith.constant 0 : index
    %354 = vector.load %arg13[%c0_142, %c0_143] : memref<2x1xf32, #tpu.memory_space<vmem>>, vector<2x1xf32>
    %355 = vector.broadcast %354 : vector<2x1xf32> to vector<2x256xf32>
    %356 = arith.addf %353, %355 : vector<2x256xf32>
    %c16_i32_144 = arith.constant 16 : i32
    %357 = vector.broadcast %c16_i32_144 : i32 to vector<1x256xi32>
    %358 = arith.cmpi sge, %2, %357 : vector<1x256xi32>
    %c240_i32_145 = arith.constant 240 : i32
    %359 = vector.broadcast %c240_i32_145 : i32 to vector<1x256xi32>
    %360 = arith.cmpi slt, %2, %359 : vector<1x256xi32>
    %c1_i32_146 = arith.constant 1 : i32
    %361 = vector.broadcast %c1_i32_146 : i32 to vector<1x256xi32>
    %362 = arith.cmpi sge, %4, %361 : vector<1x256xi32>
    %c15_i32_147 = arith.constant 15 : i32
    %363 = vector.broadcast %c15_i32_147 : i32 to vector<1x256xi32>
    %364 = arith.cmpi slt, %4, %363 : vector<1x256xi32>
    %365 = vector.extract_strided_slice %356 {offsets = [0, 239], sizes = [2, 17], strides = [1, 1]} : vector<2x256xf32> to vector<2x17xf32>
    %366 = vector.extract_strided_slice %356 {offsets = [0, 0], sizes = [2, 239], strides = [1, 1]} : vector<2x256xf32> to vector<2x239xf32>
    %367 = tpu.concatenate %365, %366 in 1 : vector<2x17xf32>, vector<2x239xf32> -> vector<2x256xf32>
    %368 = arith.andi %358, %362 : vector<1x256xi1>
    %cst_148 = arith.constant 0.000000e+00 : f32
    %369 = vector.shape_cast %368 : vector<1x256xi1> to vector<1x256xi1>
    %370 = vector.broadcast %369 : vector<1x256xi1> to vector<2x256xi1>
    %371 = vector.broadcast %cst_148 : f32 to vector<2x256xf32>
    %372 = arith.select %370, %367, %371 : vector<2x256xi1>, vector<2x256xf32>
    %c0_149 = arith.constant 0 : index
    %c0_150 = arith.constant 0 : index
    %373 = vector.load %arg32[%c0_149, %c0_150] : memref<40x256xf32, #tpu.memory_space<vmem>>, vector<2x256xf32>
    tpu.vector_store %arg32[%c0_149, %c0_150], %372 {strides = array<i32>} : memref<40x256xf32, #tpu.memory_space<vmem>>, vector<2x256xf32>,
    %374 = vector.extract_strided_slice %356 {offsets = [0, 240], sizes = [2, 16], strides = [1, 1]} : vector<2x256xf32> to vector<2x16xf32>
    %375 = vector.extract_strided_slice %356 {offsets = [0, 0], sizes = [2, 240], strides = [1, 1]} : vector<2x256xf32> to vector<2x240xf32>
    %376 = tpu.concatenate %374, %375 in 1 : vector<2x16xf32>, vector<2x240xf32> -> vector<2x256xf32>
    %cst_151 = arith.constant 0.000000e+00 : f32
    %377 = vector.shape_cast %358 : vector<1x256xi1> to vector<1x256xi1>
    %378 = vector.broadcast %377 : vector<1x256xi1> to vector<2x256xi1>
    %379 = vector.broadcast %cst_151 : f32 to vector<2x256xf32>
    %380 = arith.select %378, %376, %379 : vector<2x256xi1>, vector<2x256xf32>
    %c2_152 = arith.constant 2 : index
    %c0_153 = arith.constant 0 : index
    %381 = vector.load %arg32[%c2_152, %c0_153] : memref<40x256xf32, #tpu.memory_space<vmem>>, vector<2x256xf32>
    tpu.vector_store %arg32[%c2_152, %c0_153], %380 {strides = array<i32>} : memref<40x256xf32, #tpu.memory_space<vmem>>, vector<2x256xf32>,
    %382 = vector.extract_strided_slice %356 {offsets = [0, 241], sizes = [2, 15], strides = [1, 1]} : vector<2x256xf32> to vector<2x15xf32>
    %383 = vector.extract_strided_slice %356 {offsets = [0, 0], sizes = [2, 241], strides = [1, 1]} : vector<2x256xf32> to vector<2x241xf32>
    %384 = tpu.concatenate %382, %383 in 1 : vector<2x15xf32>, vector<2x241xf32> -> vector<2x256xf32>
    %385 = arith.andi %358, %364 : vector<1x256xi1>
    %cst_154 = arith.constant 0.000000e+00 : f32
    %386 = vector.shape_cast %385 : vector<1x256xi1> to vector<1x256xi1>
    %387 = vector.broadcast %386 : vector<1x256xi1> to vector<2x256xi1>
    %388 = vector.broadcast %cst_154 : f32 to vector<2x256xf32>
    %389 = arith.select %387, %384, %388 : vector<2x256xi1>, vector<2x256xf32>
    %c4_155 = arith.constant 4 : index
    %c0_156 = arith.constant 0 : index
    %390 = vector.load %arg32[%c4_155, %c0_156] : memref<40x256xf32, #tpu.memory_space<vmem>>, vector<2x256xf32>
    tpu.vector_store %arg32[%c4_155, %c0_156], %389 {strides = array<i32>} : memref<40x256xf32, #tpu.memory_space<vmem>>, vector<2x256xf32>,
    %391 = vector.extract_strided_slice %356 {offsets = [0, 255], sizes = [2, 1], strides = [1, 1]} : vector<2x256xf32> to vector<2x1xf32>
    %392 = vector.extract_strided_slice %356 {offsets = [0, 0], sizes = [2, 255], strides = [1, 1]} : vector<2x256xf32> to vector<2x255xf32>
    %393 = tpu.concatenate %391, %392 in 1 : vector<2x1xf32>, vector<2x255xf32> -> vector<2x256xf32>
    %cst_157 = arith.constant 0.000000e+00 : f32
    %394 = vector.shape_cast %362 : vector<1x256xi1> to vector<1x256xi1>
    %395 = vector.broadcast %394 : vector<1x256xi1> to vector<2x256xi1>
    %396 = vector.broadcast %cst_157 : f32 to vector<2x256xf32>
    %397 = arith.select %395, %393, %396 : vector<2x256xi1>, vector<2x256xf32>
    %c6_158 = arith.constant 6 : index
    %c0_159 = arith.constant 0 : index
    %398 = vector.load %arg32[%c6_158, %c0_159] : memref<40x256xf32, #tpu.memory_space<vmem>>, vector<2x256xf32>
    tpu.vector_store %arg32[%c6_158, %c0_159], %397 {strides = array<i32>} : memref<40x256xf32, #tpu.memory_space<vmem>>, vector<2x256xf32>,
    %c8_160 = arith.constant 8 : index
    %c0_161 = arith.constant 0 : index
    %399 = vector.load %arg32[%c8_160, %c0_161] : memref<40x256xf32, #tpu.memory_space<vmem>>, vector<2x256xf32>
    tpu.vector_store %arg32[%c8_160, %c0_161], %356 {strides = array<i32>} : memref<40x256xf32, #tpu.memory_space<vmem>>, vector<2x256xf32>,
    %400 = vector.extract_strided_slice %356 {offsets = [0, 1], sizes = [2, 255], strides = [1, 1]} : vector<2x256xf32> to vector<2x255xf32>
    %401 = vector.extract_strided_slice %356 {offsets = [0, 0], sizes = [2, 1], strides = [1, 1]} : vector<2x256xf32> to vector<2x1xf32>
    %402 = tpu.concatenate %400, %401 in 1 : vector<2x255xf32>, vector<2x1xf32> -> vector<2x256xf32>
    %cst_162 = arith.constant 0.000000e+00 : f32
    %403 = vector.shape_cast %364 : vector<1x256xi1> to vector<1x256xi1>
    %404 = vector.broadcast %403 : vector<1x256xi1> to vector<2x256xi1>
    %405 = vector.broadcast %cst_162 : f32 to vector<2x256xf32>
    %406 = arith.select %404, %402, %405 : vector<2x256xi1>, vector<2x256xf32>
    %c10_163 = arith.constant 10 : index
    %c0_164 = arith.constant 0 : index
    %407 = vector.load %arg32[%c10_163, %c0_164] : memref<40x256xf32, #tpu.memory_space<vmem>>, vector<2x256xf32>
    tpu.vector_store %arg32[%c10_163, %c0_164], %406 {strides = array<i32>} : memref<40x256xf32, #tpu.memory_space<vmem>>, vector<2x256xf32>,
    %408 = vector.extract_strided_slice %356 {offsets = [0, 15], sizes = [2, 241], strides = [1, 1]} : vector<2x256xf32> to vector<2x241xf32>
    %409 = vector.extract_strided_slice %356 {offsets = [0, 0], sizes = [2, 15], strides = [1, 1]} : vector<2x256xf32> to vector<2x15xf32>
    %410 = tpu.concatenate %408, %409 in 1 : vector<2x241xf32>, vector<2x15xf32> -> vector<2x256xf32>
    %411 = arith.andi %360, %362 : vector<1x256xi1>
    %cst_165 = arith.constant 0.000000e+00 : f32
    %412 = vector.shape_cast %411 : vector<1x256xi1> to vector<1x256xi1>
    %413 = vector.broadcast %412 : vector<1x256xi1> to vector<2x256xi1>
    %414 = vector.broadcast %cst_165 : f32 to vector<2x256xf32>
    %415 = arith.select %413, %410, %414 : vector<2x256xi1>, vector<2x256xf32>
    %c12_166 = arith.constant 12 : index
    %c0_167 = arith.constant 0 : index
    %416 = vector.load %arg32[%c12_166, %c0_167] : memref<40x256xf32, #tpu.memory_space<vmem>>, vector<2x256xf32>
    tpu.vector_store %arg32[%c12_166, %c0_167], %415 {strides = array<i32>} : memref<40x256xf32, #tpu.memory_space<vmem>>, vector<2x256xf32>,
    %417 = vector.extract_strided_slice %356 {offsets = [0, 16], sizes = [2, 240], strides = [1, 1]} : vector<2x256xf32> to vector<2x240xf32>
    %418 = vector.extract_strided_slice %356 {offsets = [0, 0], sizes = [2, 16], strides = [1, 1]} : vector<2x256xf32> to vector<2x16xf32>
    %419 = tpu.concatenate %417, %418 in 1 : vector<2x240xf32>, vector<2x16xf32> -> vector<2x256xf32>
    %cst_168 = arith.constant 0.000000e+00 : f32
    %420 = vector.shape_cast %360 : vector<1x256xi1> to vector<1x256xi1>
    %421 = vector.broadcast %420 : vector<1x256xi1> to vector<2x256xi1>
    %422 = vector.broadcast %cst_168 : f32 to vector<2x256xf32>
    %423 = arith.select %421, %419, %422 : vector<2x256xi1>, vector<2x256xf32>
    %c14_169 = arith.constant 14 : index
    %c0_170 = arith.constant 0 : index
    %424 = vector.load %arg32[%c14_169, %c0_170] : memref<40x256xf32, #tpu.memory_space<vmem>>, vector<2x256xf32>
    tpu.vector_store %arg32[%c14_169, %c0_170], %423 {strides = array<i32>} : memref<40x256xf32, #tpu.memory_space<vmem>>, vector<2x256xf32>,
    %425 = vector.extract_strided_slice %356 {offsets = [0, 17], sizes = [2, 239], strides = [1, 1]} : vector<2x256xf32> to vector<2x239xf32>
    %426 = vector.extract_strided_slice %356 {offsets = [0, 0], sizes = [2, 17], strides = [1, 1]} : vector<2x256xf32> to vector<2x17xf32>
    %427 = tpu.concatenate %425, %426 in 1 : vector<2x239xf32>, vector<2x17xf32> -> vector<2x256xf32>
    %428 = arith.andi %360, %364 : vector<1x256xi1>
    %cst_171 = arith.constant 0.000000e+00 : f32
    %429 = vector.shape_cast %428 : vector<1x256xi1> to vector<1x256xi1>
    %430 = vector.broadcast %429 : vector<1x256xi1> to vector<2x256xi1>
    %431 = vector.broadcast %cst_171 : f32 to vector<2x256xf32>
    %432 = arith.select %430, %427, %431 : vector<2x256xi1>, vector<2x256xf32>
    %c16_172 = arith.constant 16 : index
    %c0_173 = arith.constant 0 : index
    %433 = vector.load %arg32[%c16_172, %c0_173] : memref<40x256xf32, #tpu.memory_space<vmem>>, vector<2x256xf32>
    tpu.vector_store %arg32[%c16_172, %c0_173], %432 {strides = array<i32>} : memref<40x256xf32, #tpu.memory_space<vmem>>, vector<2x256xf32>,
    %c0_174 = arith.constant 0 : index
    %c0_175 = arith.constant 0 : index
    %434 = vector.load %arg14[%c0_174, %c0_175] : memref<3x18xf32, #tpu.memory_space<vmem>>, vector<3x18xf32>
    %c0_176 = arith.constant 0 : index
    %c0_177 = arith.constant 0 : index
    %435 = vector.load %arg32[%c0_176, %c0_177] : memref<40x256xf32, #tpu.memory_space<vmem>>, vector<18x256xf32>
    %cst_178 = arith.constant dense<0.000000e+00> : vector<3x256xf32>
    %436 = tpu.matmul %434, %435, %cst_178 {dimension_numbers = #tpu.dot_dimension_numbers<[1], [0], [0], [1], [0, 0, 1, 1], [], []>} : vector<3x18xf32>, vector<18x256xf32>, vector<3x256xf32> -> vector<3x256xf32>
    %c0_179 = arith.constant 0 : index
    %c0_180 = arith.constant 0 : index
    %437 = vector.load %arg15[%c0_179, %c0_180] : memref<3x1xf32, #tpu.memory_space<vmem>>, vector<3x1xf32>
    %438 = vector.broadcast %437 : vector<3x1xf32> to vector<3x256xf32>
    %439 = arith.addf %436, %438 : vector<3x256xf32>
    %cst_181 = arith.constant 0.000000e+00 : f32
    %440 = vector.broadcast %cst_181 : f32 to vector<3x256xf32>
    %441 = arith.maximumf %439, %440 : vector<3x256xf32>
    %c16_i32_182 = arith.constant 16 : i32
    %442 = vector.broadcast %c16_i32_182 : i32 to vector<1x256xi32>
    %443 = arith.cmpi sge, %2, %442 : vector<1x256xi32>
    %c240_i32_183 = arith.constant 240 : i32
    %444 = vector.broadcast %c240_i32_183 : i32 to vector<1x256xi32>
    %445 = arith.cmpi slt, %2, %444 : vector<1x256xi32>
    %c1_i32_184 = arith.constant 1 : i32
    %446 = vector.broadcast %c1_i32_184 : i32 to vector<1x256xi32>
    %447 = arith.cmpi sge, %4, %446 : vector<1x256xi32>
    %c15_i32_185 = arith.constant 15 : i32
    %448 = vector.broadcast %c15_i32_185 : i32 to vector<1x256xi32>
    %449 = arith.cmpi slt, %4, %448 : vector<1x256xi32>
    %450 = vector.extract_strided_slice %441 {offsets = [0, 239], sizes = [3, 17], strides = [1, 1]} : vector<3x256xf32> to vector<3x17xf32>
    %451 = vector.extract_strided_slice %441 {offsets = [0, 0], sizes = [3, 239], strides = [1, 1]} : vector<3x256xf32> to vector<3x239xf32>
    %452 = tpu.concatenate %450, %451 in 1 : vector<3x17xf32>, vector<3x239xf32> -> vector<3x256xf32>
    %453 = arith.andi %443, %447 : vector<1x256xi1>
    %cst_186 = arith.constant 0.000000e+00 : f32
    %454 = vector.shape_cast %453 : vector<1x256xi1> to vector<1x256xi1>
    %455 = vector.broadcast %454 : vector<1x256xi1> to vector<3x256xi1>
    %456 = vector.broadcast %cst_186 : f32 to vector<3x256xf32>
    %457 = arith.select %455, %452, %456 : vector<3x256xi1>, vector<3x256xf32>
    %c0_187 = arith.constant 0 : index
    %c0_188 = arith.constant 0 : index
    %458 = vector.load %arg32[%c0_187, %c0_188] : memref<40x256xf32, #tpu.memory_space<vmem>>, vector<3x256xf32>
    tpu.vector_store %arg32[%c0_187, %c0_188], %457 {strides = array<i32>} : memref<40x256xf32, #tpu.memory_space<vmem>>, vector<3x256xf32>,
    %459 = vector.extract_strided_slice %441 {offsets = [0, 240], sizes = [3, 16], strides = [1, 1]} : vector<3x256xf32> to vector<3x16xf32>
    %460 = vector.extract_strided_slice %441 {offsets = [0, 0], sizes = [3, 240], strides = [1, 1]} : vector<3x256xf32> to vector<3x240xf32>
    %461 = tpu.concatenate %459, %460 in 1 : vector<3x16xf32>, vector<3x240xf32> -> vector<3x256xf32>
    %cst_189 = arith.constant 0.000000e+00 : f32
    %462 = vector.shape_cast %443 : vector<1x256xi1> to vector<1x256xi1>
    %463 = vector.broadcast %462 : vector<1x256xi1> to vector<3x256xi1>
    %464 = vector.broadcast %cst_189 : f32 to vector<3x256xf32>
    %465 = arith.select %463, %461, %464 : vector<3x256xi1>, vector<3x256xf32>
    %c3 = arith.constant 3 : index
    %c0_190 = arith.constant 0 : index
    %466 = vector.load %arg32[%c3, %c0_190] : memref<40x256xf32, #tpu.memory_space<vmem>>, vector<3x256xf32>
    tpu.vector_store %arg32[%c3, %c0_190], %465 {strides = array<i32>} : memref<40x256xf32, #tpu.memory_space<vmem>>, vector<3x256xf32>,
    %467 = vector.extract_strided_slice %441 {offsets = [0, 241], sizes = [3, 15], strides = [1, 1]} : vector<3x256xf32> to vector<3x15xf32>
    %468 = vector.extract_strided_slice %441 {offsets = [0, 0], sizes = [3, 241], strides = [1, 1]} : vector<3x256xf32> to vector<3x241xf32>
    %469 = tpu.concatenate %467, %468 in 1 : vector<3x15xf32>, vector<3x241xf32> -> vector<3x256xf32>
    %470 = arith.andi %443, %449 : vector<1x256xi1>
    %cst_191 = arith.constant 0.000000e+00 : f32
    %471 = vector.shape_cast %470 : vector<1x256xi1> to vector<1x256xi1>
    %472 = vector.broadcast %471 : vector<1x256xi1> to vector<3x256xi1>
    %473 = vector.broadcast %cst_191 : f32 to vector<3x256xf32>
    %474 = arith.select %472, %469, %473 : vector<3x256xi1>, vector<3x256xf32>
    %c6_192 = arith.constant 6 : index
    %c0_193 = arith.constant 0 : index
    %475 = vector.load %arg32[%c6_192, %c0_193] : memref<40x256xf32, #tpu.memory_space<vmem>>, vector<3x256xf32>
    tpu.vector_store %arg32[%c6_192, %c0_193], %474 {strides = array<i32>} : memref<40x256xf32, #tpu.memory_space<vmem>>, vector<3x256xf32>,
    %476 = vector.extract_strided_slice %441 {offsets = [0, 255], sizes = [3, 1], strides = [1, 1]} : vector<3x256xf32> to vector<3x1xf32>
    %477 = vector.extract_strided_slice %441 {offsets = [0, 0], sizes = [3, 255], strides = [1, 1]} : vector<3x256xf32> to vector<3x255xf32>
    %478 = tpu.concatenate %476, %477 in 1 : vector<3x1xf32>, vector<3x255xf32> -> vector<3x256xf32>
    %cst_194 = arith.constant 0.000000e+00 : f32
    %479 = vector.shape_cast %447 : vector<1x256xi1> to vector<1x256xi1>
    %480 = vector.broadcast %479 : vector<1x256xi1> to vector<3x256xi1>
    %481 = vector.broadcast %cst_194 : f32 to vector<3x256xf32>
    %482 = arith.select %480, %478, %481 : vector<3x256xi1>, vector<3x256xf32>
    %c9 = arith.constant 9 : index
    %c0_195 = arith.constant 0 : index
    %483 = vector.load %arg32[%c9, %c0_195] : memref<40x256xf32, #tpu.memory_space<vmem>>, vector<3x256xf32>
    tpu.vector_store %arg32[%c9, %c0_195], %482 {strides = array<i32>} : memref<40x256xf32, #tpu.memory_space<vmem>>, vector<3x256xf32>,
    %c12_196 = arith.constant 12 : index
    %c0_197 = arith.constant 0 : index
    %484 = vector.load %arg32[%c12_196, %c0_197] : memref<40x256xf32, #tpu.memory_space<vmem>>, vector<3x256xf32>
    tpu.vector_store %arg32[%c12_196, %c0_197], %441 {strides = array<i32>} : memref<40x256xf32, #tpu.memory_space<vmem>>, vector<3x256xf32>,
    %485 = vector.extract_strided_slice %441 {offsets = [0, 1], sizes = [3, 255], strides = [1, 1]} : vector<3x256xf32> to vector<3x255xf32>
    %486 = vector.extract_strided_slice %441 {offsets = [0, 0], sizes = [3, 1], strides = [1, 1]} : vector<3x256xf32> to vector<3x1xf32>
    %487 = tpu.concatenate %485, %486 in 1 : vector<3x255xf32>, vector<3x1xf32> -> vector<3x256xf32>
    %cst_198 = arith.constant 0.000000e+00 : f32
    %488 = vector.shape_cast %449 : vector<1x256xi1> to vector<1x256xi1>
    %489 = vector.broadcast %488 : vector<1x256xi1> to vector<3x256xi1>
    %490 = vector.broadcast %cst_198 : f32 to vector<3x256xf32>
    %491 = arith.select %489, %487, %490 : vector<3x256xi1>, vector<3x256xf32>
    %c15 = arith.constant 15 : index
    %c0_199 = arith.constant 0 : index
    %492 = vector.load %arg32[%c15, %c0_199] : memref<40x256xf32, #tpu.memory_space<vmem>>, vector<3x256xf32>
    tpu.vector_store %arg32[%c15, %c0_199], %491 {strides = array<i32>} : memref<40x256xf32, #tpu.memory_space<vmem>>, vector<3x256xf32>,
    %493 = vector.extract_strided_slice %441 {offsets = [0, 15], sizes = [3, 241], strides = [1, 1]} : vector<3x256xf32> to vector<3x241xf32>
    %494 = vector.extract_strided_slice %441 {offsets = [0, 0], sizes = [3, 15], strides = [1, 1]} : vector<3x256xf32> to vector<3x15xf32>
    %495 = tpu.concatenate %493, %494 in 1 : vector<3x241xf32>, vector<3x15xf32> -> vector<3x256xf32>
    %496 = arith.andi %445, %447 : vector<1x256xi1>
    %cst_200 = arith.constant 0.000000e+00 : f32
    %497 = vector.shape_cast %496 : vector<1x256xi1> to vector<1x256xi1>
    %498 = vector.broadcast %497 : vector<1x256xi1> to vector<3x256xi1>
    %499 = vector.broadcast %cst_200 : f32 to vector<3x256xf32>
    %500 = arith.select %498, %495, %499 : vector<3x256xi1>, vector<3x256xf32>
    %c18 = arith.constant 18 : index
    %c0_201 = arith.constant 0 : index
    %501 = vector.load %arg32[%c18, %c0_201] : memref<40x256xf32, #tpu.memory_space<vmem>>, vector<3x256xf32>
    tpu.vector_store %arg32[%c18, %c0_201], %500 {strides = array<i32>} : memref<40x256xf32, #tpu.memory_space<vmem>>, vector<3x256xf32>,
    %502 = vector.extract_strided_slice %441 {offsets = [0, 16], sizes = [3, 240], strides = [1, 1]} : vector<3x256xf32> to vector<3x240xf32>
    %503 = vector.extract_strided_slice %441 {offsets = [0, 0], sizes = [3, 16], strides = [1, 1]} : vector<3x256xf32> to vector<3x16xf32>
    %504 = tpu.concatenate %502, %503 in 1 : vector<3x240xf32>, vector<3x16xf32> -> vector<3x256xf32>
    %cst_202 = arith.constant 0.000000e+00 : f32
    %505 = vector.shape_cast %445 : vector<1x256xi1> to vector<1x256xi1>
    %506 = vector.broadcast %505 : vector<1x256xi1> to vector<3x256xi1>
    %507 = vector.broadcast %cst_202 : f32 to vector<3x256xf32>
    %508 = arith.select %506, %504, %507 : vector<3x256xi1>, vector<3x256xf32>
    %c21 = arith.constant 21 : index
    %c0_203 = arith.constant 0 : index
    %509 = vector.load %arg32[%c21, %c0_203] : memref<40x256xf32, #tpu.memory_space<vmem>>, vector<3x256xf32>
    tpu.vector_store %arg32[%c21, %c0_203], %508 {strides = array<i32>} : memref<40x256xf32, #tpu.memory_space<vmem>>, vector<3x256xf32>,
    %510 = vector.extract_strided_slice %441 {offsets = [0, 17], sizes = [3, 239], strides = [1, 1]} : vector<3x256xf32> to vector<3x239xf32>
    %511 = vector.extract_strided_slice %441 {offsets = [0, 0], sizes = [3, 17], strides = [1, 1]} : vector<3x256xf32> to vector<3x17xf32>
    %512 = tpu.concatenate %510, %511 in 1 : vector<3x239xf32>, vector<3x17xf32> -> vector<3x256xf32>
    %513 = arith.andi %445, %449 : vector<1x256xi1>
    %cst_204 = arith.constant 0.000000e+00 : f32
    %514 = vector.shape_cast %513 : vector<1x256xi1> to vector<1x256xi1>
    %515 = vector.broadcast %514 : vector<1x256xi1> to vector<3x256xi1>
    %516 = vector.broadcast %cst_204 : f32 to vector<3x256xf32>
    %517 = arith.select %515, %512, %516 : vector<3x256xi1>, vector<3x256xf32>
    %c24_205 = arith.constant 24 : index
    %c0_206 = arith.constant 0 : index
    %518 = vector.load %arg32[%c24_205, %c0_206] : memref<40x256xf32, #tpu.memory_space<vmem>>, vector<3x256xf32>
    tpu.vector_store %arg32[%c24_205, %c0_206], %517 {strides = array<i32>} : memref<40x256xf32, #tpu.memory_space<vmem>>, vector<3x256xf32>,
    %c0_207 = arith.constant 0 : index
    %c0_208 = arith.constant 0 : index
    %519 = vector.load %arg16[%c0_207, %c0_208] : memref<4x27xf32, #tpu.memory_space<vmem>>, vector<4x27xf32>
    %c0_209 = arith.constant 0 : index
    %c0_210 = arith.constant 0 : index
    %520 = vector.load %arg32[%c0_209, %c0_210] : memref<40x256xf32, #tpu.memory_space<vmem>>, vector<27x256xf32>
    %cst_211 = arith.constant dense<0.000000e+00> : vector<4x256xf32>
    %521 = tpu.matmul %519, %520, %cst_211 {dimension_numbers = #tpu.dot_dimension_numbers<[1], [0], [0], [1], [0, 0, 1, 1], [], []>} : vector<4x27xf32>, vector<27x256xf32>, vector<4x256xf32> -> vector<4x256xf32>
    %c0_212 = arith.constant 0 : index
    %c0_213 = arith.constant 0 : index
    %522 = vector.load %arg17[%c0_212, %c0_213] : memref<4x1xf32, #tpu.memory_space<vmem>>, vector<4x1xf32>
    %523 = vector.broadcast %522 : vector<4x1xf32> to vector<4x256xf32>
    %524 = arith.addf %521, %523 : vector<4x256xf32>
    %cst_214 = arith.constant 0.000000e+00 : f32
    %525 = vector.broadcast %cst_214 : f32 to vector<4x256xf32>
    %526 = arith.maximumf %524, %525 : vector<4x256xf32>
    %c80_i32 = arith.constant 80 : i32
    %527 = vector.broadcast %c80_i32 : i32 to vector<1x256xi32>
    %528 = arith.cmpi sge, %2, %527 : vector<1x256xi32>
    %c176_i32 = arith.constant 176 : i32
    %529 = vector.broadcast %c176_i32 : i32 to vector<1x256xi32>
    %530 = arith.cmpi slt, %2, %529 : vector<1x256xi32>
    %c5_i32 = arith.constant 5 : i32
    %531 = vector.broadcast %c5_i32 : i32 to vector<1x256xi32>
    %532 = arith.cmpi sge, %4, %531 : vector<1x256xi32>
    %c11_i32 = arith.constant 11 : i32
    %533 = vector.broadcast %c11_i32 : i32 to vector<1x256xi32>
    %534 = arith.cmpi slt, %4, %533 : vector<1x256xi32>
    %535 = vector.extract_strided_slice %526 {offsets = [0, 171], sizes = [4, 85], strides = [1, 1]} : vector<4x256xf32> to vector<4x85xf32>
    %536 = vector.extract_strided_slice %526 {offsets = [0, 0], sizes = [4, 171], strides = [1, 1]} : vector<4x256xf32> to vector<4x171xf32>
    %537 = tpu.concatenate %535, %536 in 1 : vector<4x85xf32>, vector<4x171xf32> -> vector<4x256xf32>
    %538 = arith.andi %528, %532 : vector<1x256xi1>
    %cst_215 = arith.constant 0.000000e+00 : f32
    %539 = vector.shape_cast %538 : vector<1x256xi1> to vector<1x256xi1>
    %540 = vector.broadcast %539 : vector<1x256xi1> to vector<4x256xi1>
    %541 = vector.broadcast %cst_215 : f32 to vector<4x256xf32>
    %542 = arith.select %540, %537, %541 : vector<4x256xi1>, vector<4x256xf32>
    %c0_216 = arith.constant 0 : index
    %c0_217 = arith.constant 0 : index
    %543 = vector.load %arg32[%c0_216, %c0_217] : memref<40x256xf32, #tpu.memory_space<vmem>>, vector<4x256xf32>
    tpu.vector_store %arg32[%c0_216, %c0_217], %542 {strides = array<i32>} : memref<40x256xf32, #tpu.memory_space<vmem>>, vector<4x256xf32>,
    %544 = vector.extract_strided_slice %526 {offsets = [0, 176], sizes = [4, 80], strides = [1, 1]} : vector<4x256xf32> to vector<4x80xf32>
    %545 = vector.extract_strided_slice %526 {offsets = [0, 0], sizes = [4, 176], strides = [1, 1]} : vector<4x256xf32> to vector<4x176xf32>
    %546 = tpu.concatenate %544, %545 in 1 : vector<4x80xf32>, vector<4x176xf32> -> vector<4x256xf32>
    %cst_218 = arith.constant 0.000000e+00 : f32
    %547 = vector.shape_cast %528 : vector<1x256xi1> to vector<1x256xi1>
    %548 = vector.broadcast %547 : vector<1x256xi1> to vector<4x256xi1>
    %549 = vector.broadcast %cst_218 : f32 to vector<4x256xf32>
    %550 = arith.select %548, %546, %549 : vector<4x256xi1>, vector<4x256xf32>
    %c4_219 = arith.constant 4 : index
    %c0_220 = arith.constant 0 : index
    %551 = vector.load %arg32[%c4_219, %c0_220] : memref<40x256xf32, #tpu.memory_space<vmem>>, vector<4x256xf32>
    tpu.vector_store %arg32[%c4_219, %c0_220], %550 {strides = array<i32>} : memref<40x256xf32, #tpu.memory_space<vmem>>, vector<4x256xf32>,
    %552 = vector.extract_strided_slice %526 {offsets = [0, 181], sizes = [4, 75], strides = [1, 1]} : vector<4x256xf32> to vector<4x75xf32>
    %553 = vector.extract_strided_slice %526 {offsets = [0, 0], sizes = [4, 181], strides = [1, 1]} : vector<4x256xf32> to vector<4x181xf32>
    %554 = tpu.concatenate %552, %553 in 1 : vector<4x75xf32>, vector<4x181xf32> -> vector<4x256xf32>
    %555 = arith.andi %528, %534 : vector<1x256xi1>
    %cst_221 = arith.constant 0.000000e+00 : f32
    %556 = vector.shape_cast %555 : vector<1x256xi1> to vector<1x256xi1>
    %557 = vector.broadcast %556 : vector<1x256xi1> to vector<4x256xi1>
    %558 = vector.broadcast %cst_221 : f32 to vector<4x256xf32>
    %559 = arith.select %557, %554, %558 : vector<4x256xi1>, vector<4x256xf32>
    %c8_222 = arith.constant 8 : index
    %c0_223 = arith.constant 0 : index
    %560 = vector.load %arg32[%c8_222, %c0_223] : memref<40x256xf32, #tpu.memory_space<vmem>>, vector<4x256xf32>
    tpu.vector_store %arg32[%c8_222, %c0_223], %559 {strides = array<i32>} : memref<40x256xf32, #tpu.memory_space<vmem>>, vector<4x256xf32>,
    %561 = vector.extract_strided_slice %526 {offsets = [0, 251], sizes = [4, 5], strides = [1, 1]} : vector<4x256xf32> to vector<4x5xf32>
    %562 = vector.extract_strided_slice %526 {offsets = [0, 0], sizes = [4, 251], strides = [1, 1]} : vector<4x256xf32> to vector<4x251xf32>
    %563 = tpu.concatenate %561, %562 in 1 : vector<4x5xf32>, vector<4x251xf32> -> vector<4x256xf32>
    %cst_224 = arith.constant 0.000000e+00 : f32
    %564 = vector.shape_cast %532 : vector<1x256xi1> to vector<1x256xi1>
    %565 = vector.broadcast %564 : vector<1x256xi1> to vector<4x256xi1>
    %566 = vector.broadcast %cst_224 : f32 to vector<4x256xf32>
    %567 = arith.select %565, %563, %566 : vector<4x256xi1>, vector<4x256xf32>
    %c12_225 = arith.constant 12 : index
    %c0_226 = arith.constant 0 : index
    %568 = vector.load %arg32[%c12_225, %c0_226] : memref<40x256xf32, #tpu.memory_space<vmem>>, vector<4x256xf32>
    tpu.vector_store %arg32[%c12_225, %c0_226], %567 {strides = array<i32>} : memref<40x256xf32, #tpu.memory_space<vmem>>, vector<4x256xf32>,
    %c16_227 = arith.constant 16 : index
    %c0_228 = arith.constant 0 : index
    %569 = vector.load %arg32[%c16_227, %c0_228] : memref<40x256xf32, #tpu.memory_space<vmem>>, vector<4x256xf32>
    tpu.vector_store %arg32[%c16_227, %c0_228], %526 {strides = array<i32>} : memref<40x256xf32, #tpu.memory_space<vmem>>, vector<4x256xf32>,
    %570 = vector.extract_strided_slice %526 {offsets = [0, 5], sizes = [4, 251], strides = [1, 1]} : vector<4x256xf32> to vector<4x251xf32>
    %571 = vector.extract_strided_slice %526 {offsets = [0, 0], sizes = [4, 5], strides = [1, 1]} : vector<4x256xf32> to vector<4x5xf32>
    %572 = tpu.concatenate %570, %571 in 1 : vector<4x251xf32>, vector<4x5xf32> -> vector<4x256xf32>
    %cst_229 = arith.constant 0.000000e+00 : f32
    %573 = vector.shape_cast %534 : vector<1x256xi1> to vector<1x256xi1>
    %574 = vector.broadcast %573 : vector<1x256xi1> to vector<4x256xi1>
    %575 = vector.broadcast %cst_229 : f32 to vector<4x256xf32>
    %576 = arith.select %574, %572, %575 : vector<4x256xi1>, vector<4x256xf32>
    %c20_230 = arith.constant 20 : index
    %c0_231 = arith.constant 0 : index
    %577 = vector.load %arg32[%c20_230, %c0_231] : memref<40x256xf32, #tpu.memory_space<vmem>>, vector<4x256xf32>
    tpu.vector_store %arg32[%c20_230, %c0_231], %576 {strides = array<i32>} : memref<40x256xf32, #tpu.memory_space<vmem>>, vector<4x256xf32>,
    %578 = vector.extract_strided_slice %526 {offsets = [0, 75], sizes = [4, 181], strides = [1, 1]} : vector<4x256xf32> to vector<4x181xf32>
    %579 = vector.extract_strided_slice %526 {offsets = [0, 0], sizes = [4, 75], strides = [1, 1]} : vector<4x256xf32> to vector<4x75xf32>
    %580 = tpu.concatenate %578, %579 in 1 : vector<4x181xf32>, vector<4x75xf32> -> vector<4x256xf32>
    %581 = arith.andi %530, %532 : vector<1x256xi1>
    %cst_232 = arith.constant 0.000000e+00 : f32
    %582 = vector.shape_cast %581 : vector<1x256xi1> to vector<1x256xi1>
    %583 = vector.broadcast %582 : vector<1x256xi1> to vector<4x256xi1>
    %584 = vector.broadcast %cst_232 : f32 to vector<4x256xf32>
    %585 = arith.select %583, %580, %584 : vector<4x256xi1>, vector<4x256xf32>
    %c24_233 = arith.constant 24 : index
    %c0_234 = arith.constant 0 : index
    %586 = vector.load %arg32[%c24_233, %c0_234] : memref<40x256xf32, #tpu.memory_space<vmem>>, vector<4x256xf32>
    tpu.vector_store %arg32[%c24_233, %c0_234], %585 {strides = array<i32>} : memref<40x256xf32, #tpu.memory_space<vmem>>, vector<4x256xf32>,
    %587 = vector.extract_strided_slice %526 {offsets = [0, 80], sizes = [4, 176], strides = [1, 1]} : vector<4x256xf32> to vector<4x176xf32>
    %588 = vector.extract_strided_slice %526 {offsets = [0, 0], sizes = [4, 80], strides = [1, 1]} : vector<4x256xf32> to vector<4x80xf32>
    %589 = tpu.concatenate %587, %588 in 1 : vector<4x176xf32>, vector<4x80xf32> -> vector<4x256xf32>
    %cst_235 = arith.constant 0.000000e+00 : f32
    %590 = vector.shape_cast %530 : vector<1x256xi1> to vector<1x256xi1>
    %591 = vector.broadcast %590 : vector<1x256xi1> to vector<4x256xi1>
    %592 = vector.broadcast %cst_235 : f32 to vector<4x256xf32>
    %593 = arith.select %591, %589, %592 : vector<4x256xi1>, vector<4x256xf32>
    %c28_236 = arith.constant 28 : index
    %c0_237 = arith.constant 0 : index
    %594 = vector.load %arg32[%c28_236, %c0_237] : memref<40x256xf32, #tpu.memory_space<vmem>>, vector<4x256xf32>
    tpu.vector_store %arg32[%c28_236, %c0_237], %593 {strides = array<i32>} : memref<40x256xf32, #tpu.memory_space<vmem>>, vector<4x256xf32>,
    %595 = vector.extract_strided_slice %526 {offsets = [0, 85], sizes = [4, 171], strides = [1, 1]} : vector<4x256xf32> to vector<4x171xf32>
    %596 = vector.extract_strided_slice %526 {offsets = [0, 0], sizes = [4, 85], strides = [1, 1]} : vector<4x256xf32> to vector<4x85xf32>
    %597 = tpu.concatenate %595, %596 in 1 : vector<4x171xf32>, vector<4x85xf32> -> vector<4x256xf32>
    %598 = arith.andi %530, %534 : vector<1x256xi1>
    %cst_238 = arith.constant 0.000000e+00 : f32
    %599 = vector.shape_cast %598 : vector<1x256xi1> to vector<1x256xi1>
    %600 = vector.broadcast %599 : vector<1x256xi1> to vector<4x256xi1>
    %601 = vector.broadcast %cst_238 : f32 to vector<4x256xf32>
    %602 = arith.select %600, %597, %601 : vector<4x256xi1>, vector<4x256xf32>
    %c32_239 = arith.constant 32 : index
    %c0_240 = arith.constant 0 : index
    %603 = vector.load %arg32[%c32_239, %c0_240] : memref<40x256xf32, #tpu.memory_space<vmem>>, vector<4x256xf32>
    tpu.vector_store %arg32[%c32_239, %c0_240], %602 {strides = array<i32>} : memref<40x256xf32, #tpu.memory_space<vmem>>, vector<4x256xf32>,
    %c0_241 = arith.constant 0 : index
    %c0_242 = arith.constant 0 : index
    %604 = vector.load %arg18[%c0_241, %c0_242] : memref<16x36xf32, #tpu.memory_space<vmem>>, vector<16x36xf32>
    %c0_243 = arith.constant 0 : index
    %c0_244 = arith.constant 0 : index
    %605 = vector.load %arg32[%c0_243, %c0_244] : memref<40x256xf32, #tpu.memory_space<vmem>>, vector<36x256xf32>
    %cst_245 = arith.constant dense<0.000000e+00> : vector<16x256xf32>
    %606 = tpu.matmul %604, %605, %cst_245 {dimension_numbers = #tpu.dot_dimension_numbers<[1], [0], [0], [1], [0, 0, 1, 1], [], []>} : vector<16x36xf32>, vector<36x256xf32>, vector<16x256xf32> -> vector<16x256xf32>
    %607 = arith.addf %351, %606 : vector<16x256xf32>
    %c0_246 = arith.constant 0 : index
    %c0_247 = arith.constant 0 : index
    %608 = vector.load %arg19[%c0_246, %c0_247] : memref<2x16xf32, #tpu.memory_space<vmem>>, vector<2x16xf32>
    %cst_248 = arith.constant dense<0.000000e+00> : vector<2x256xf32>
    %609 = tpu.matmul %608, %1, %cst_248 {dimension_numbers = #tpu.dot_dimension_numbers<[1], [0], [0], [1], [0, 0, 1, 1], [], []>} : vector<2x16xf32>, vector<16x256xf32>, vector<2x256xf32> -> vector<2x256xf32>
    %c0_249 = arith.constant 0 : index
    %c0_250 = arith.constant 0 : index
    %610 = vector.load %arg20[%c0_249, %c0_250] : memref<2x1xf32, #tpu.memory_space<vmem>>, vector<2x1xf32>
    %611 = vector.broadcast %610 : vector<2x1xf32> to vector<2x256xf32>
    %612 = arith.addf %609, %611 : vector<2x256xf32>
    %c16_i32_251 = arith.constant 16 : i32
    %613 = vector.broadcast %c16_i32_251 : i32 to vector<1x256xi32>
    %614 = arith.cmpi sge, %2, %613 : vector<1x256xi32>
    %c240_i32_252 = arith.constant 240 : i32
    %615 = vector.broadcast %c240_i32_252 : i32 to vector<1x256xi32>
    %616 = arith.cmpi slt, %2, %615 : vector<1x256xi32>
    %c1_i32_253 = arith.constant 1 : i32
    %617 = vector.broadcast %c1_i32_253 : i32 to vector<1x256xi32>
    %618 = arith.cmpi sge, %4, %617 : vector<1x256xi32>
    %c15_i32_254 = arith.constant 15 : i32
    %619 = vector.broadcast %c15_i32_254 : i32 to vector<1x256xi32>
    %620 = arith.cmpi slt, %4, %619 : vector<1x256xi32>
    %621 = vector.extract_strided_slice %612 {offsets = [0, 239], sizes = [2, 17], strides = [1, 1]} : vector<2x256xf32> to vector<2x17xf32>
    %622 = vector.extract_strided_slice %612 {offsets = [0, 0], sizes = [2, 239], strides = [1, 1]} : vector<2x256xf32> to vector<2x239xf32>
    %623 = tpu.concatenate %621, %622 in 1 : vector<2x17xf32>, vector<2x239xf32> -> vector<2x256xf32>
    %624 = arith.andi %614, %618 : vector<1x256xi1>
    %cst_255 = arith.constant 0.000000e+00 : f32
    %625 = vector.shape_cast %624 : vector<1x256xi1> to vector<1x256xi1>
    %626 = vector.broadcast %625 : vector<1x256xi1> to vector<2x256xi1>
    %627 = vector.broadcast %cst_255 : f32 to vector<2x256xf32>
    %628 = arith.select %626, %623, %627 : vector<2x256xi1>, vector<2x256xf32>
    %c0_256 = arith.constant 0 : index
    %c0_257 = arith.constant 0 : index
    %629 = vector.load %arg32[%c0_256, %c0_257] : memref<40x256xf32, #tpu.memory_space<vmem>>, vector<2x256xf32>
    tpu.vector_store %arg32[%c0_256, %c0_257], %628 {strides = array<i32>} : memref<40x256xf32, #tpu.memory_space<vmem>>, vector<2x256xf32>,
    %630 = vector.extract_strided_slice %612 {offsets = [0, 240], sizes = [2, 16], strides = [1, 1]} : vector<2x256xf32> to vector<2x16xf32>
    %631 = vector.extract_strided_slice %612 {offsets = [0, 0], sizes = [2, 240], strides = [1, 1]} : vector<2x256xf32> to vector<2x240xf32>
    %632 = tpu.concatenate %630, %631 in 1 : vector<2x16xf32>, vector<2x240xf32> -> vector<2x256xf32>
    %cst_258 = arith.constant 0.000000e+00 : f32
    %633 = vector.shape_cast %614 : vector<1x256xi1> to vector<1x256xi1>
    %634 = vector.broadcast %633 : vector<1x256xi1> to vector<2x256xi1>
    %635 = vector.broadcast %cst_258 : f32 to vector<2x256xf32>
    %636 = arith.select %634, %632, %635 : vector<2x256xi1>, vector<2x256xf32>
    %c2_259 = arith.constant 2 : index
    %c0_260 = arith.constant 0 : index
    %637 = vector.load %arg32[%c2_259, %c0_260] : memref<40x256xf32, #tpu.memory_space<vmem>>, vector<2x256xf32>
    tpu.vector_store %arg32[%c2_259, %c0_260], %636 {strides = array<i32>} : memref<40x256xf32, #tpu.memory_space<vmem>>, vector<2x256xf32>,
    %638 = vector.extract_strided_slice %612 {offsets = [0, 241], sizes = [2, 15], strides = [1, 1]} : vector<2x256xf32> to vector<2x15xf32>
    %639 = vector.extract_strided_slice %612 {offsets = [0, 0], sizes = [2, 241], strides = [1, 1]} : vector<2x256xf32> to vector<2x241xf32>
    %640 = tpu.concatenate %638, %639 in 1 : vector<2x15xf32>, vector<2x241xf32> -> vector<2x256xf32>
    %641 = arith.andi %614, %620 : vector<1x256xi1>
    %cst_261 = arith.constant 0.000000e+00 : f32
    %642 = vector.shape_cast %641 : vector<1x256xi1> to vector<1x256xi1>
    %643 = vector.broadcast %642 : vector<1x256xi1> to vector<2x256xi1>
    %644 = vector.broadcast %cst_261 : f32 to vector<2x256xf32>
    %645 = arith.select %643, %640, %644 : vector<2x256xi1>, vector<2x256xf32>
    %c4_262 = arith.constant 4 : index
    %c0_263 = arith.constant 0 : index
    %646 = vector.load %arg32[%c4_262, %c0_263] : memref<40x256xf32, #tpu.memory_space<vmem>>, vector<2x256xf32>
    tpu.vector_store %arg32[%c4_262, %c0_263], %645 {strides = array<i32>} : memref<40x256xf32, #tpu.memory_space<vmem>>, vector<2x256xf32>,
    %647 = vector.extract_strided_slice %612 {offsets = [0, 255], sizes = [2, 1], strides = [1, 1]} : vector<2x256xf32> to vector<2x1xf32>
    %648 = vector.extract_strided_slice %612 {offsets = [0, 0], sizes = [2, 255], strides = [1, 1]} : vector<2x256xf32> to vector<2x255xf32>
    %649 = tpu.concatenate %647, %648 in 1 : vector<2x1xf32>, vector<2x255xf32> -> vector<2x256xf32>
    %cst_264 = arith.constant 0.000000e+00 : f32
    %650 = vector.shape_cast %618 : vector<1x256xi1> to vector<1x256xi1>
    %651 = vector.broadcast %650 : vector<1x256xi1> to vector<2x256xi1>
    %652 = vector.broadcast %cst_264 : f32 to vector<2x256xf32>
    %653 = arith.select %651, %649, %652 : vector<2x256xi1>, vector<2x256xf32>
    %c6_265 = arith.constant 6 : index
    %c0_266 = arith.constant 0 : index
    %654 = vector.load %arg32[%c6_265, %c0_266] : memref<40x256xf32, #tpu.memory_space<vmem>>, vector<2x256xf32>
    tpu.vector_store %arg32[%c6_265, %c0_266], %653 {strides = array<i32>} : memref<40x256xf32, #tpu.memory_space<vmem>>, vector<2x256xf32>,
    %c8_267 = arith.constant 8 : index
    %c0_268 = arith.constant 0 : index
    %655 = vector.load %arg32[%c8_267, %c0_268] : memref<40x256xf32, #tpu.memory_space<vmem>>, vector<2x256xf32>
    tpu.vector_store %arg32[%c8_267, %c0_268], %612 {strides = array<i32>} : memref<40x256xf32, #tpu.memory_space<vmem>>, vector<2x256xf32>,
    %656 = vector.extract_strided_slice %612 {offsets = [0, 1], sizes = [2, 255], strides = [1, 1]} : vector<2x256xf32> to vector<2x255xf32>
    %657 = vector.extract_strided_slice %612 {offsets = [0, 0], sizes = [2, 1], strides = [1, 1]} : vector<2x256xf32> to vector<2x1xf32>
    %658 = tpu.concatenate %656, %657 in 1 : vector<2x255xf32>, vector<2x1xf32> -> vector<2x256xf32>
    %cst_269 = arith.constant 0.000000e+00 : f32
    %659 = vector.shape_cast %620 : vector<1x256xi1> to vector<1x256xi1>
    %660 = vector.broadcast %659 : vector<1x256xi1> to vector<2x256xi1>
    %661 = vector.broadcast %cst_269 : f32 to vector<2x256xf32>
    %662 = arith.select %660, %658, %661 : vector<2x256xi1>, vector<2x256xf32>
    %c10_270 = arith.constant 10 : index
    %c0_271 = arith.constant 0 : index
    %663 = vector.load %arg32[%c10_270, %c0_271] : memref<40x256xf32, #tpu.memory_space<vmem>>, vector<2x256xf32>
    tpu.vector_store %arg32[%c10_270, %c0_271], %662 {strides = array<i32>} : memref<40x256xf32, #tpu.memory_space<vmem>>, vector<2x256xf32>,
    %664 = vector.extract_strided_slice %612 {offsets = [0, 15], sizes = [2, 241], strides = [1, 1]} : vector<2x256xf32> to vector<2x241xf32>
    %665 = vector.extract_strided_slice %612 {offsets = [0, 0], sizes = [2, 15], strides = [1, 1]} : vector<2x256xf32> to vector<2x15xf32>
    %666 = tpu.concatenate %664, %665 in 1 : vector<2x241xf32>, vector<2x15xf32> -> vector<2x256xf32>
    %667 = arith.andi %616, %618 : vector<1x256xi1>
    %cst_272 = arith.constant 0.000000e+00 : f32
    %668 = vector.shape_cast %667 : vector<1x256xi1> to vector<1x256xi1>
    %669 = vector.broadcast %668 : vector<1x256xi1> to vector<2x256xi1>
    %670 = vector.broadcast %cst_272 : f32 to vector<2x256xf32>
    %671 = arith.select %669, %666, %670 : vector<2x256xi1>, vector<2x256xf32>
    %c12_273 = arith.constant 12 : index
    %c0_274 = arith.constant 0 : index
    %672 = vector.load %arg32[%c12_273, %c0_274] : memref<40x256xf32, #tpu.memory_space<vmem>>, vector<2x256xf32>
    tpu.vector_store %arg32[%c12_273, %c0_274], %671 {strides = array<i32>} : memref<40x256xf32, #tpu.memory_space<vmem>>, vector<2x256xf32>,
    %673 = vector.extract_strided_slice %612 {offsets = [0, 16], sizes = [2, 240], strides = [1, 1]} : vector<2x256xf32> to vector<2x240xf32>
    %674 = vector.extract_strided_slice %612 {offsets = [0, 0], sizes = [2, 16], strides = [1, 1]} : vector<2x256xf32> to vector<2x16xf32>
    %675 = tpu.concatenate %673, %674 in 1 : vector<2x240xf32>, vector<2x16xf32> -> vector<2x256xf32>
    %cst_275 = arith.constant 0.000000e+00 : f32
    %676 = vector.shape_cast %616 : vector<1x256xi1> to vector<1x256xi1>
    %677 = vector.broadcast %676 : vector<1x256xi1> to vector<2x256xi1>
    %678 = vector.broadcast %cst_275 : f32 to vector<2x256xf32>
    %679 = arith.select %677, %675, %678 : vector<2x256xi1>, vector<2x256xf32>
    %c14_276 = arith.constant 14 : index
    %c0_277 = arith.constant 0 : index
    %680 = vector.load %arg32[%c14_276, %c0_277] : memref<40x256xf32, #tpu.memory_space<vmem>>, vector<2x256xf32>
    tpu.vector_store %arg32[%c14_276, %c0_277], %679 {strides = array<i32>} : memref<40x256xf32, #tpu.memory_space<vmem>>, vector<2x256xf32>,
    %681 = vector.extract_strided_slice %612 {offsets = [0, 17], sizes = [2, 239], strides = [1, 1]} : vector<2x256xf32> to vector<2x239xf32>
    %682 = vector.extract_strided_slice %612 {offsets = [0, 0], sizes = [2, 17], strides = [1, 1]} : vector<2x256xf32> to vector<2x17xf32>
    %683 = tpu.concatenate %681, %682 in 1 : vector<2x239xf32>, vector<2x17xf32> -> vector<2x256xf32>
    %684 = arith.andi %616, %620 : vector<1x256xi1>
    %cst_278 = arith.constant 0.000000e+00 : f32
    %685 = vector.shape_cast %684 : vector<1x256xi1> to vector<1x256xi1>
    %686 = vector.broadcast %685 : vector<1x256xi1> to vector<2x256xi1>
    %687 = vector.broadcast %cst_278 : f32 to vector<2x256xf32>
    %688 = arith.select %686, %683, %687 : vector<2x256xi1>, vector<2x256xf32>
    %c16_279 = arith.constant 16 : index
    %c0_280 = arith.constant 0 : index
    %689 = vector.load %arg32[%c16_279, %c0_280] : memref<40x256xf32, #tpu.memory_space<vmem>>, vector<2x256xf32>
    tpu.vector_store %arg32[%c16_279, %c0_280], %688 {strides = array<i32>} : memref<40x256xf32, #tpu.memory_space<vmem>>, vector<2x256xf32>,
    %c0_281 = arith.constant 0 : index
    %c0_282 = arith.constant 0 : index
    %690 = vector.load %arg21[%c0_281, %c0_282] : memref<3x18xf32, #tpu.memory_space<vmem>>, vector<3x18xf32>
    %c0_283 = arith.constant 0 : index
    %c0_284 = arith.constant 0 : index
    %691 = vector.load %arg32[%c0_283, %c0_284] : memref<40x256xf32, #tpu.memory_space<vmem>>, vector<18x256xf32>
    %cst_285 = arith.constant dense<0.000000e+00> : vector<3x256xf32>
    %692 = tpu.matmul %690, %691, %cst_285 {dimension_numbers = #tpu.dot_dimension_numbers<[1], [0], [0], [1], [0, 0, 1, 1], [], []>} : vector<3x18xf32>, vector<18x256xf32>, vector<3x256xf32> -> vector<3x256xf32>
    %c0_286 = arith.constant 0 : index
    %c0_287 = arith.constant 0 : index
    %693 = vector.load %arg22[%c0_286, %c0_287] : memref<3x1xf32, #tpu.memory_space<vmem>>, vector<3x1xf32>
    %694 = vector.broadcast %693 : vector<3x1xf32> to vector<3x256xf32>
    %695 = arith.addf %692, %694 : vector<3x256xf32>
    %cst_288 = arith.constant 0.000000e+00 : f32
    %696 = vector.broadcast %cst_288 : f32 to vector<3x256xf32>
    %697 = arith.maximumf %695, %696 : vector<3x256xf32>
    %c16_i32_289 = arith.constant 16 : i32
    %698 = vector.broadcast %c16_i32_289 : i32 to vector<1x256xi32>
    %699 = arith.cmpi sge, %2, %698 : vector<1x256xi32>
    %c240_i32_290 = arith.constant 240 : i32
    %700 = vector.broadcast %c240_i32_290 : i32 to vector<1x256xi32>
    %701 = arith.cmpi slt, %2, %700 : vector<1x256xi32>
    %c1_i32_291 = arith.constant 1 : i32
    %702 = vector.broadcast %c1_i32_291 : i32 to vector<1x256xi32>
    %703 = arith.cmpi sge, %4, %702 : vector<1x256xi32>
    %c15_i32_292 = arith.constant 15 : i32
    %704 = vector.broadcast %c15_i32_292 : i32 to vector<1x256xi32>
    %705 = arith.cmpi slt, %4, %704 : vector<1x256xi32>
    %706 = vector.extract_strided_slice %697 {offsets = [0, 239], sizes = [3, 17], strides = [1, 1]} : vector<3x256xf32> to vector<3x17xf32>
    %707 = vector.extract_strided_slice %697 {offsets = [0, 0], sizes = [3, 239], strides = [1, 1]} : vector<3x256xf32> to vector<3x239xf32>
    %708 = tpu.concatenate %706, %707 in 1 : vector<3x17xf32>, vector<3x239xf32> -> vector<3x256xf32>
    %709 = arith.andi %699, %703 : vector<1x256xi1>
    %cst_293 = arith.constant 0.000000e+00 : f32
    %710 = vector.shape_cast %709 : vector<1x256xi1> to vector<1x256xi1>
    %711 = vector.broadcast %710 : vector<1x256xi1> to vector<3x256xi1>
    %712 = vector.broadcast %cst_293 : f32 to vector<3x256xf32>
    %713 = arith.select %711, %708, %712 : vector<3x256xi1>, vector<3x256xf32>
    %c0_294 = arith.constant 0 : index
    %c0_295 = arith.constant 0 : index
    %714 = vector.load %arg32[%c0_294, %c0_295] : memref<40x256xf32, #tpu.memory_space<vmem>>, vector<3x256xf32>
    tpu.vector_store %arg32[%c0_294, %c0_295], %713 {strides = array<i32>} : memref<40x256xf32, #tpu.memory_space<vmem>>, vector<3x256xf32>,
    %715 = vector.extract_strided_slice %697 {offsets = [0, 240], sizes = [3, 16], strides = [1, 1]} : vector<3x256xf32> to vector<3x16xf32>
    %716 = vector.extract_strided_slice %697 {offsets = [0, 0], sizes = [3, 240], strides = [1, 1]} : vector<3x256xf32> to vector<3x240xf32>
    %717 = tpu.concatenate %715, %716 in 1 : vector<3x16xf32>, vector<3x240xf32> -> vector<3x256xf32>
    %cst_296 = arith.constant 0.000000e+00 : f32
    %718 = vector.shape_cast %699 : vector<1x256xi1> to vector<1x256xi1>
    %719 = vector.broadcast %718 : vector<1x256xi1> to vector<3x256xi1>
    %720 = vector.broadcast %cst_296 : f32 to vector<3x256xf32>
    %721 = arith.select %719, %717, %720 : vector<3x256xi1>, vector<3x256xf32>
    %c3_297 = arith.constant 3 : index
    %c0_298 = arith.constant 0 : index
    %722 = vector.load %arg32[%c3_297, %c0_298] : memref<40x256xf32, #tpu.memory_space<vmem>>, vector<3x256xf32>
    tpu.vector_store %arg32[%c3_297, %c0_298], %721 {strides = array<i32>} : memref<40x256xf32, #tpu.memory_space<vmem>>, vector<3x256xf32>,
    %723 = vector.extract_strided_slice %697 {offsets = [0, 241], sizes = [3, 15], strides = [1, 1]} : vector<3x256xf32> to vector<3x15xf32>
    %724 = vector.extract_strided_slice %697 {offsets = [0, 0], sizes = [3, 241], strides = [1, 1]} : vector<3x256xf32> to vector<3x241xf32>
    %725 = tpu.concatenate %723, %724 in 1 : vector<3x15xf32>, vector<3x241xf32> -> vector<3x256xf32>
    %726 = arith.andi %699, %705 : vector<1x256xi1>
    %cst_299 = arith.constant 0.000000e+00 : f32
    %727 = vector.shape_cast %726 : vector<1x256xi1> to vector<1x256xi1>
    %728 = vector.broadcast %727 : vector<1x256xi1> to vector<3x256xi1>
    %729 = vector.broadcast %cst_299 : f32 to vector<3x256xf32>
    %730 = arith.select %728, %725, %729 : vector<3x256xi1>, vector<3x256xf32>
    %c6_300 = arith.constant 6 : index
    %c0_301 = arith.constant 0 : index
    %731 = vector.load %arg32[%c6_300, %c0_301] : memref<40x256xf32, #tpu.memory_space<vmem>>, vector<3x256xf32>
    tpu.vector_store %arg32[%c6_300, %c0_301], %730 {strides = array<i32>} : memref<40x256xf32, #tpu.memory_space<vmem>>, vector<3x256xf32>,
    %732 = vector.extract_strided_slice %697 {offsets = [0, 255], sizes = [3, 1], strides = [1, 1]} : vector<3x256xf32> to vector<3x1xf32>
    %733 = vector.extract_strided_slice %697 {offsets = [0, 0], sizes = [3, 255], strides = [1, 1]} : vector<3x256xf32> to vector<3x255xf32>
    %734 = tpu.concatenate %732, %733 in 1 : vector<3x1xf32>, vector<3x255xf32> -> vector<3x256xf32>
    %cst_302 = arith.constant 0.000000e+00 : f32
    %735 = vector.shape_cast %703 : vector<1x256xi1> to vector<1x256xi1>
    %736 = vector.broadcast %735 : vector<1x256xi1> to vector<3x256xi1>
    %737 = vector.broadcast %cst_302 : f32 to vector<3x256xf32>
    %738 = arith.select %736, %734, %737 : vector<3x256xi1>, vector<3x256xf32>
    %c9_303 = arith.constant 9 : index
    %c0_304 = arith.constant 0 : index
    %739 = vector.load %arg32[%c9_303, %c0_304] : memref<40x256xf32, #tpu.memory_space<vmem>>, vector<3x256xf32>
    tpu.vector_store %arg32[%c9_303, %c0_304], %738 {strides = array<i32>} : memref<40x256xf32, #tpu.memory_space<vmem>>, vector<3x256xf32>,
    %c12_305 = arith.constant 12 : index
    %c0_306 = arith.constant 0 : index
    %740 = vector.load %arg32[%c12_305, %c0_306] : memref<40x256xf32, #tpu.memory_space<vmem>>, vector<3x256xf32>
    tpu.vector_store %arg32[%c12_305, %c0_306], %697 {strides = array<i32>} : memref<40x256xf32, #tpu.memory_space<vmem>>, vector<3x256xf32>,
    %741 = vector.extract_strided_slice %697 {offsets = [0, 1], sizes = [3, 255], strides = [1, 1]} : vector<3x256xf32> to vector<3x255xf32>
    %742 = vector.extract_strided_slice %697 {offsets = [0, 0], sizes = [3, 1], strides = [1, 1]} : vector<3x256xf32> to vector<3x1xf32>
    %743 = tpu.concatenate %741, %742 in 1 : vector<3x255xf32>, vector<3x1xf32> -> vector<3x256xf32>
    %cst_307 = arith.constant 0.000000e+00 : f32
    %744 = vector.shape_cast %705 : vector<1x256xi1> to vector<1x256xi1>
    %745 = vector.broadcast %744 : vector<1x256xi1> to vector<3x256xi1>
    %746 = vector.broadcast %cst_307 : f32 to vector<3x256xf32>
    %747 = arith.select %745, %743, %746 : vector<3x256xi1>, vector<3x256xf32>
    %c15_308 = arith.constant 15 : index
    %c0_309 = arith.constant 0 : index
    %748 = vector.load %arg32[%c15_308, %c0_309] : memref<40x256xf32, #tpu.memory_space<vmem>>, vector<3x256xf32>
    tpu.vector_store %arg32[%c15_308, %c0_309], %747 {strides = array<i32>} : memref<40x256xf32, #tpu.memory_space<vmem>>, vector<3x256xf32>,
    %749 = vector.extract_strided_slice %697 {offsets = [0, 15], sizes = [3, 241], strides = [1, 1]} : vector<3x256xf32> to vector<3x241xf32>
    %750 = vector.extract_strided_slice %697 {offsets = [0, 0], sizes = [3, 15], strides = [1, 1]} : vector<3x256xf32> to vector<3x15xf32>
    %751 = tpu.concatenate %749, %750 in 1 : vector<3x241xf32>, vector<3x15xf32> -> vector<3x256xf32>
    %752 = arith.andi %701, %703 : vector<1x256xi1>
    %cst_310 = arith.constant 0.000000e+00 : f32
    %753 = vector.shape_cast %752 : vector<1x256xi1> to vector<1x256xi1>
    %754 = vector.broadcast %753 : vector<1x256xi1> to vector<3x256xi1>
    %755 = vector.broadcast %cst_310 : f32 to vector<3x256xf32>
    %756 = arith.select %754, %751, %755 : vector<3x256xi1>, vector<3x256xf32>
    %c18_311 = arith.constant 18 : index
    %c0_312 = arith.constant 0 : index
    %757 = vector.load %arg32[%c18_311, %c0_312] : memref<40x256xf32, #tpu.memory_space<vmem>>, vector<3x256xf32>
    tpu.vector_store %arg32[%c18_311, %c0_312], %756 {strides = array<i32>} : memref<40x256xf32, #tpu.memory_space<vmem>>, vector<3x256xf32>,
    %758 = vector.extract_strided_slice %697 {offsets = [0, 16], sizes = [3, 240], strides = [1, 1]} : vector<3x256xf32> to vector<3x240xf32>
    %759 = vector.extract_strided_slice %697 {offsets = [0, 0], sizes = [3, 16], strides = [1, 1]} : vector<3x256xf32> to vector<3x16xf32>
    %760 = tpu.concatenate %758, %759 in 1 : vector<3x240xf32>, vector<3x16xf32> -> vector<3x256xf32>
    %cst_313 = arith.constant 0.000000e+00 : f32
    %761 = vector.shape_cast %701 : vector<1x256xi1> to vector<1x256xi1>
    %762 = vector.broadcast %761 : vector<1x256xi1> to vector<3x256xi1>
    %763 = vector.broadcast %cst_313 : f32 to vector<3x256xf32>
    %764 = arith.select %762, %760, %763 : vector<3x256xi1>, vector<3x256xf32>
    %c21_314 = arith.constant 21 : index
    %c0_315 = arith.constant 0 : index
    %765 = vector.load %arg32[%c21_314, %c0_315] : memref<40x256xf32, #tpu.memory_space<vmem>>, vector<3x256xf32>
    tpu.vector_store %arg32[%c21_314, %c0_315], %764 {strides = array<i32>} : memref<40x256xf32, #tpu.memory_space<vmem>>, vector<3x256xf32>,
    %766 = vector.extract_strided_slice %697 {offsets = [0, 17], sizes = [3, 239], strides = [1, 1]} : vector<3x256xf32> to vector<3x239xf32>
    %767 = vector.extract_strided_slice %697 {offsets = [0, 0], sizes = [3, 17], strides = [1, 1]} : vector<3x256xf32> to vector<3x17xf32>
    %768 = tpu.concatenate %766, %767 in 1 : vector<3x239xf32>, vector<3x17xf32> -> vector<3x256xf32>
    %769 = arith.andi %701, %705 : vector<1x256xi1>
    %cst_316 = arith.constant 0.000000e+00 : f32
    %770 = vector.shape_cast %769 : vector<1x256xi1> to vector<1x256xi1>
    %771 = vector.broadcast %770 : vector<1x256xi1> to vector<3x256xi1>
    %772 = vector.broadcast %cst_316 : f32 to vector<3x256xf32>
    %773 = arith.select %771, %768, %772 : vector<3x256xi1>, vector<3x256xf32>
    %c24_317 = arith.constant 24 : index
    %c0_318 = arith.constant 0 : index
    %774 = vector.load %arg32[%c24_317, %c0_318] : memref<40x256xf32, #tpu.memory_space<vmem>>, vector<3x256xf32>
    tpu.vector_store %arg32[%c24_317, %c0_318], %773 {strides = array<i32>} : memref<40x256xf32, #tpu.memory_space<vmem>>, vector<3x256xf32>,
    %c0_319 = arith.constant 0 : index
    %c0_320 = arith.constant 0 : index
    %775 = vector.load %arg23[%c0_319, %c0_320] : memref<4x27xf32, #tpu.memory_space<vmem>>, vector<4x27xf32>
    %c0_321 = arith.constant 0 : index
    %c0_322 = arith.constant 0 : index
    %776 = vector.load %arg32[%c0_321, %c0_322] : memref<40x256xf32, #tpu.memory_space<vmem>>, vector<27x256xf32>
    %cst_323 = arith.constant dense<0.000000e+00> : vector<4x256xf32>
    %777 = tpu.matmul %775, %776, %cst_323 {dimension_numbers = #tpu.dot_dimension_numbers<[1], [0], [0], [1], [0, 0, 1, 1], [], []>} : vector<4x27xf32>, vector<27x256xf32>, vector<4x256xf32> -> vector<4x256xf32>
    %c0_324 = arith.constant 0 : index
    %c0_325 = arith.constant 0 : index
    %778 = vector.load %arg24[%c0_324, %c0_325] : memref<4x1xf32, #tpu.memory_space<vmem>>, vector<4x1xf32>
    %779 = vector.broadcast %778 : vector<4x1xf32> to vector<4x256xf32>
    %780 = arith.addf %777, %779 : vector<4x256xf32>
    %cst_326 = arith.constant 0.000000e+00 : f32
    %781 = vector.broadcast %cst_326 : f32 to vector<4x256xf32>
    %782 = arith.maximumf %780, %781 : vector<4x256xf32>
    %c112_i32 = arith.constant 112 : i32
    %783 = vector.broadcast %c112_i32 : i32 to vector<1x256xi32>
    %784 = arith.cmpi sge, %2, %783 : vector<1x256xi32>
    %c144_i32 = arith.constant 144 : i32
    %785 = vector.broadcast %c144_i32 : i32 to vector<1x256xi32>
    %786 = arith.cmpi slt, %2, %785 : vector<1x256xi32>
    %c7_i32 = arith.constant 7 : i32
    %787 = vector.broadcast %c7_i32 : i32 to vector<1x256xi32>
    %788 = arith.cmpi sge, %4, %787 : vector<1x256xi32>
    %c9_i32 = arith.constant 9 : i32
    %789 = vector.broadcast %c9_i32 : i32 to vector<1x256xi32>
    %790 = arith.cmpi slt, %4, %789 : vector<1x256xi32>
    %791 = vector.extract_strided_slice %782 {offsets = [0, 137], sizes = [4, 119], strides = [1, 1]} : vector<4x256xf32> to vector<4x119xf32>
    %792 = vector.extract_strided_slice %782 {offsets = [0, 0], sizes = [4, 137], strides = [1, 1]} : vector<4x256xf32> to vector<4x137xf32>
    %793 = tpu.concatenate %791, %792 in 1 : vector<4x119xf32>, vector<4x137xf32> -> vector<4x256xf32>
    %794 = arith.andi %784, %788 : vector<1x256xi1>
    %cst_327 = arith.constant 0.000000e+00 : f32
    %795 = vector.shape_cast %794 : vector<1x256xi1> to vector<1x256xi1>
    %796 = vector.broadcast %795 : vector<1x256xi1> to vector<4x256xi1>
    %797 = vector.broadcast %cst_327 : f32 to vector<4x256xf32>
    %798 = arith.select %796, %793, %797 : vector<4x256xi1>, vector<4x256xf32>
    %c0_328 = arith.constant 0 : index
    %c0_329 = arith.constant 0 : index
    %799 = vector.load %arg32[%c0_328, %c0_329] : memref<40x256xf32, #tpu.memory_space<vmem>>, vector<4x256xf32>
    tpu.vector_store %arg32[%c0_328, %c0_329], %798 {strides = array<i32>} : memref<40x256xf32, #tpu.memory_space<vmem>>, vector<4x256xf32>,
    %800 = vector.extract_strided_slice %782 {offsets = [0, 144], sizes = [4, 112], strides = [1, 1]} : vector<4x256xf32> to vector<4x112xf32>
    %801 = vector.extract_strided_slice %782 {offsets = [0, 0], sizes = [4, 144], strides = [1, 1]} : vector<4x256xf32> to vector<4x144xf32>
    %802 = tpu.concatenate %800, %801 in 1 : vector<4x112xf32>, vector<4x144xf32> -> vector<4x256xf32>
    %cst_330 = arith.constant 0.000000e+00 : f32
    %803 = vector.shape_cast %784 : vector<1x256xi1> to vector<1x256xi1>
    %804 = vector.broadcast %803 : vector<1x256xi1> to vector<4x256xi1>
    %805 = vector.broadcast %cst_330 : f32 to vector<4x256xf32>
    %806 = arith.select %804, %802, %805 : vector<4x256xi1>, vector<4x256xf32>
    %c4_331 = arith.constant 4 : index
    %c0_332 = arith.constant 0 : index
    %807 = vector.load %arg32[%c4_331, %c0_332] : memref<40x256xf32, #tpu.memory_space<vmem>>, vector<4x256xf32>
    tpu.vector_store %arg32[%c4_331, %c0_332], %806 {strides = array<i32>} : memref<40x256xf32, #tpu.memory_space<vmem>>, vector<4x256xf32>,
    %808 = vector.extract_strided_slice %782 {offsets = [0, 151], sizes = [4, 105], strides = [1, 1]} : vector<4x256xf32> to vector<4x105xf32>
    %809 = vector.extract_strided_slice %782 {offsets = [0, 0], sizes = [4, 151], strides = [1, 1]} : vector<4x256xf32> to vector<4x151xf32>
    %810 = tpu.concatenate %808, %809 in 1 : vector<4x105xf32>, vector<4x151xf32> -> vector<4x256xf32>
    %811 = arith.andi %784, %790 : vector<1x256xi1>
    %cst_333 = arith.constant 0.000000e+00 : f32
    %812 = vector.shape_cast %811 : vector<1x256xi1> to vector<1x256xi1>
    %813 = vector.broadcast %812 : vector<1x256xi1> to vector<4x256xi1>
    %814 = vector.broadcast %cst_333 : f32 to vector<4x256xf32>
    %815 = arith.select %813, %810, %814 : vector<4x256xi1>, vector<4x256xf32>
    %c8_334 = arith.constant 8 : index
    %c0_335 = arith.constant 0 : index
    %816 = vector.load %arg32[%c8_334, %c0_335] : memref<40x256xf32, #tpu.memory_space<vmem>>, vector<4x256xf32>
    tpu.vector_store %arg32[%c8_334, %c0_335], %815 {strides = array<i32>} : memref<40x256xf32, #tpu.memory_space<vmem>>, vector<4x256xf32>,
    %817 = vector.extract_strided_slice %782 {offsets = [0, 249], sizes = [4, 7], strides = [1, 1]} : vector<4x256xf32> to vector<4x7xf32>
    %818 = vector.extract_strided_slice %782 {offsets = [0, 0], sizes = [4, 249], strides = [1, 1]} : vector<4x256xf32> to vector<4x249xf32>
    %819 = tpu.concatenate %817, %818 in 1 : vector<4x7xf32>, vector<4x249xf32> -> vector<4x256xf32>
    %cst_336 = arith.constant 0.000000e+00 : f32
    %820 = vector.shape_cast %788 : vector<1x256xi1> to vector<1x256xi1>
    %821 = vector.broadcast %820 : vector<1x256xi1> to vector<4x256xi1>
    %822 = vector.broadcast %cst_336 : f32 to vector<4x256xf32>
    %823 = arith.select %821, %819, %822 : vector<4x256xi1>, vector<4x256xf32>
    %c12_337 = arith.constant 12 : index
    %c0_338 = arith.constant 0 : index
    %824 = vector.load %arg32[%c12_337, %c0_338] : memref<40x256xf32, #tpu.memory_space<vmem>>, vector<4x256xf32>
    tpu.vector_store %arg32[%c12_337, %c0_338], %823 {strides = array<i32>} : memref<40x256xf32, #tpu.memory_space<vmem>>, vector<4x256xf32>,
    %c16_339 = arith.constant 16 : index
    %c0_340 = arith.constant 0 : index
    %825 = vector.load %arg32[%c16_339, %c0_340] : memref<40x256xf32, #tpu.memory_space<vmem>>, vector<4x256xf32>
    tpu.vector_store %arg32[%c16_339, %c0_340], %782 {strides = array<i32>} : memref<40x256xf32, #tpu.memory_space<vmem>>, vector<4x256xf32>,
    %826 = vector.extract_strided_slice %782 {offsets = [0, 7], sizes = [4, 249], strides = [1, 1]} : vector<4x256xf32> to vector<4x249xf32>
    %827 = vector.extract_strided_slice %782 {offsets = [0, 0], sizes = [4, 7], strides = [1, 1]} : vector<4x256xf32> to vector<4x7xf32>
    %828 = tpu.concatenate %826, %827 in 1 : vector<4x249xf32>, vector<4x7xf32> -> vector<4x256xf32>
    %cst_341 = arith.constant 0.000000e+00 : f32
    %829 = vector.shape_cast %790 : vector<1x256xi1> to vector<1x256xi1>
    %830 = vector.broadcast %829 : vector<1x256xi1> to vector<4x256xi1>
    %831 = vector.broadcast %cst_341 : f32 to vector<4x256xf32>
    %832 = arith.select %830, %828, %831 : vector<4x256xi1>, vector<4x256xf32>
    %c20_342 = arith.constant 20 : index
    %c0_343 = arith.constant 0 : index
    %833 = vector.load %arg32[%c20_342, %c0_343] : memref<40x256xf32, #tpu.memory_space<vmem>>, vector<4x256xf32>
    tpu.vector_store %arg32[%c20_342, %c0_343], %832 {strides = array<i32>} : memref<40x256xf32, #tpu.memory_space<vmem>>, vector<4x256xf32>,
    %834 = vector.extract_strided_slice %782 {offsets = [0, 105], sizes = [4, 151], strides = [1, 1]} : vector<4x256xf32> to vector<4x151xf32>
    %835 = vector.extract_strided_slice %782 {offsets = [0, 0], sizes = [4, 105], strides = [1, 1]} : vector<4x256xf32> to vector<4x105xf32>
    %836 = tpu.concatenate %834, %835 in 1 : vector<4x151xf32>, vector<4x105xf32> -> vector<4x256xf32>
    %837 = arith.andi %786, %788 : vector<1x256xi1>
    %cst_344 = arith.constant 0.000000e+00 : f32
    %838 = vector.shape_cast %837 : vector<1x256xi1> to vector<1x256xi1>
    %839 = vector.broadcast %838 : vector<1x256xi1> to vector<4x256xi1>
    %840 = vector.broadcast %cst_344 : f32 to vector<4x256xf32>
    %841 = arith.select %839, %836, %840 : vector<4x256xi1>, vector<4x256xf32>
    %c24_345 = arith.constant 24 : index
    %c0_346 = arith.constant 0 : index
    %842 = vector.load %arg32[%c24_345, %c0_346] : memref<40x256xf32, #tpu.memory_space<vmem>>, vector<4x256xf32>
    tpu.vector_store %arg32[%c24_345, %c0_346], %841 {strides = array<i32>} : memref<40x256xf32, #tpu.memory_space<vmem>>, vector<4x256xf32>,
    %843 = vector.extract_strided_slice %782 {offsets = [0, 112], sizes = [4, 144], strides = [1, 1]} : vector<4x256xf32> to vector<4x144xf32>
    %844 = vector.extract_strided_slice %782 {offsets = [0, 0], sizes = [4, 112], strides = [1, 1]} : vector<4x256xf32> to vector<4x112xf32>
    %845 = tpu.concatenate %843, %844 in 1 : vector<4x144xf32>, vector<4x112xf32> -> vector<4x256xf32>
    %cst_347 = arith.constant 0.000000e+00 : f32
    %846 = vector.shape_cast %786 : vector<1x256xi1> to vector<1x256xi1>
    %847 = vector.broadcast %846 : vector<1x256xi1> to vector<4x256xi1>
    %848 = vector.broadcast %cst_347 : f32 to vector<4x256xf32>
    %849 = arith.select %847, %845, %848 : vector<4x256xi1>, vector<4x256xf32>
    %c28_348 = arith.constant 28 : index
    %c0_349 = arith.constant 0 : index
    %850 = vector.load %arg32[%c28_348, %c0_349] : memref<40x256xf32, #tpu.memory_space<vmem>>, vector<4x256xf32>
    tpu.vector_store %arg32[%c28_348, %c0_349], %849 {strides = array<i32>} : memref<40x256xf32, #tpu.memory_space<vmem>>, vector<4x256xf32>,
    %851 = vector.extract_strided_slice %782 {offsets = [0, 119], sizes = [4, 137], strides = [1, 1]} : vector<4x256xf32> to vector<4x137xf32>
    %852 = vector.extract_strided_slice %782 {offsets = [0, 0], sizes = [4, 119], strides = [1, 1]} : vector<4x256xf32> to vector<4x119xf32>
    %853 = tpu.concatenate %851, %852 in 1 : vector<4x137xf32>, vector<4x119xf32> -> vector<4x256xf32>
    %854 = arith.andi %786, %790 : vector<1x256xi1>
    %cst_350 = arith.constant 0.000000e+00 : f32
    %855 = vector.shape_cast %854 : vector<1x256xi1> to vector<1x256xi1>
    %856 = vector.broadcast %855 : vector<1x256xi1> to vector<4x256xi1>
    %857 = vector.broadcast %cst_350 : f32 to vector<4x256xf32>
    %858 = arith.select %856, %853, %857 : vector<4x256xi1>, vector<4x256xf32>
    %c32_351 = arith.constant 32 : index
    %c0_352 = arith.constant 0 : index
    %859 = vector.load %arg32[%c32_351, %c0_352] : memref<40x256xf32, #tpu.memory_space<vmem>>, vector<4x256xf32>
    tpu.vector_store %arg32[%c32_351, %c0_352], %858 {strides = array<i32>} : memref<40x256xf32, #tpu.memory_space<vmem>>, vector<4x256xf32>,
    %c0_353 = arith.constant 0 : index
    %c0_354 = arith.constant 0 : index
    %860 = vector.load %arg25[%c0_353, %c0_354] : memref<16x36xf32, #tpu.memory_space<vmem>>, vector<16x36xf32>
    %c0_355 = arith.constant 0 : index
    %c0_356 = arith.constant 0 : index
    %861 = vector.load %arg32[%c0_355, %c0_356] : memref<40x256xf32, #tpu.memory_space<vmem>>, vector<36x256xf32>
    %cst_357 = arith.constant dense<0.000000e+00> : vector<16x256xf32>
    %862 = tpu.matmul %860, %861, %cst_357 {dimension_numbers = #tpu.dot_dimension_numbers<[1], [0], [0], [1], [0, 0, 1, 1], [], []>} : vector<16x36xf32>, vector<36x256xf32>, vector<16x256xf32> -> vector<16x256xf32>
    %863 = arith.addf %607, %862 : vector<16x256xf32>
    %cst_358 = arith.constant dense<0.000000e+00> : vector<16xf32>
    %864 = vector.multi_reduction <add>, %1, %cst_358 [1] : vector<16x256xf32> to vector<16xf32>
    %865 = vector.shape_cast %864 : vector<16xf32> to vector<16x1xf32>
    %cst_359 = arith.constant 3.906250e-03 : f32
    %866 = vector.broadcast %cst_359 : f32 to vector<16x1xf32>
    %867 = arith.mulf %865, %866 : vector<16x1xf32>
    %868 = vector.shape_cast %867 : vector<16x1xf32> to vector<16x1xf32>
    %869 = vector.broadcast %868 : vector<16x1xf32> to vector<16x256xf32>
    %c0_360 = arith.constant 0 : index
    %c0_361 = arith.constant 0 : index
    %870 = vector.load %arg26[%c0_360, %c0_361] : memref<4x16xf32, #tpu.memory_space<vmem>>, vector<4x16xf32>
    %cst_362 = arith.constant dense<0.000000e+00> : vector<4x256xf32>
    %871 = tpu.matmul %870, %869, %cst_362 {dimension_numbers = #tpu.dot_dimension_numbers<[1], [0], [0], [1], [0, 0, 1, 1], [], []>} : vector<4x16xf32>, vector<16x256xf32>, vector<4x256xf32> -> vector<4x256xf32>
    %c0_363 = arith.constant 0 : index
    %c0_364 = arith.constant 0 : index
    %872 = vector.load %arg27[%c0_363, %c0_364] : memref<4x1xf32, #tpu.memory_space<vmem>>, vector<4x1xf32>
    %873 = vector.broadcast %872 : vector<4x1xf32> to vector<4x256xf32>
    %874 = arith.addf %871, %873 : vector<4x256xf32>
    %cst_365 = arith.constant 0.000000e+00 : f32
    %875 = vector.broadcast %cst_365 : f32 to vector<4x256xf32>
    %876 = arith.maximumf %874, %875 : vector<4x256xf32>
    %c0_366 = arith.constant 0 : index
    %c0_367 = arith.constant 0 : index
    %877 = vector.load %arg28[%c0_366, %c0_367] : memref<16x4xf32, #tpu.memory_space<vmem>>, vector<16x4xf32>
    %cst_368 = arith.constant dense<0.000000e+00> : vector<16x256xf32>
    %878 = tpu.matmul %877, %876, %cst_368 {dimension_numbers = #tpu.dot_dimension_numbers<[1], [0], [0], [1], [0, 0, 1, 1], [], []>} : vector<16x4xf32>, vector<4x256xf32>, vector<16x256xf32> -> vector<16x256xf32>
    %879 = arith.addf %863, %878 : vector<16x256xf32>
    %c0_369 = arith.constant 0 : index
    %c0_370 = arith.constant 0 : index
    %c0_371 = arith.constant 0 : index
    %880 = vector.load %arg31[%c0_369, %c0_370, %c0_371] : memref<1x16x256xf32, #tpu.memory_space<vmem>>, vector<1x16x256xf32>
    %881 = vector.shape_cast %880 : vector<1x16x256xf32> to vector<16x256xf32>
    %882 = vector.shape_cast %879 : vector<16x256xf32> to vector<1x16x256xf32>
    tpu.vector_store %arg31[%c0_369, %c0_370, %c0_371], %882 {strides = array<i32>} : memref<1x16x256xf32, #tpu.memory_space<vmem>>, vector<1x16x256xf32>,
    return
  }
  func.func @transform_0(%arg0: i32) -> (i32, i32, i32) {
    %c0_i32 = arith.constant 0 : i32
    %c0_i32_0 = arith.constant 0 : i32
    %c0_i32_1 = arith.constant 0 : i32
    return %arg0, %c0_i32, %c0_i32_0 : i32, i32, i32
  }
  func.func @transform_1(%arg0: i32) -> (i32, i32) {
    %c0_i32 = arith.constant 0 : i32
    %c0_i32_0 = arith.constant 0 : i32
    %c0_i32_1 = arith.constant 0 : i32
    return %c0_i32, %c0_i32_0 : i32, i32
  }
  func.func @transform_2(%arg0: i32) -> (i32, i32) {
    %c0_i32 = arith.constant 0 : i32
    %c0_i32_0 = arith.constant 0 : i32
    %c0_i32_1 = arith.constant 0 : i32
    return %c0_i32, %c0_i32_0 : i32, i32
  }
  func.func @transform_3(%arg0: i32) -> (i32, i32) {
    %c0_i32 = arith.constant 0 : i32
    %c0_i32_0 = arith.constant 0 : i32
    %c0_i32_1 = arith.constant 0 : i32
    return %c0_i32, %c0_i32_0 : i32, i32
  }
  func.func @transform_4(%arg0: i32) -> (i32, i32) {
    %c0_i32 = arith.constant 0 : i32
    %c0_i32_0 = arith.constant 0 : i32
    %c0_i32_1 = arith.constant 0 : i32
    return %c0_i32, %c0_i32_0 : i32, i32
  }
  func.func @transform_5(%arg0: i32) -> (i32, i32) {
    %c0_i32 = arith.constant 0 : i32
    %c0_i32_0 = arith.constant 0 : i32
    %c0_i32_1 = arith.constant 0 : i32
    return %c0_i32, %c0_i32_0 : i32, i32
  }
  func.func @transform_6(%arg0: i32) -> (i32, i32) {
    %c0_i32 = arith.constant 0 : i32
    %c0_i32_0 = arith.constant 0 : i32
    %c0_i32_1 = arith.constant 0 : i32
    return %c0_i32, %c0_i32_0 : i32, i32
  }
  func.func @transform_7(%arg0: i32) -> (i32, i32) {
    %c0_i32 = arith.constant 0 : i32
    %c0_i32_0 = arith.constant 0 : i32
    %c0_i32_1 = arith.constant 0 : i32
    return %c0_i32, %c0_i32_0 : i32, i32
  }
  func.func @transform_8(%arg0: i32) -> (i32, i32) {
    %c0_i32 = arith.constant 0 : i32
    %c0_i32_0 = arith.constant 0 : i32
    %c0_i32_1 = arith.constant 0 : i32
    return %c0_i32, %c0_i32_0 : i32, i32
  }
  func.func @transform_9(%arg0: i32) -> (i32, i32) {
    %c0_i32 = arith.constant 0 : i32
    %c0_i32_0 = arith.constant 0 : i32
    %c0_i32_1 = arith.constant 0 : i32
    return %c0_i32, %c0_i32_0 : i32, i32
  }
  func.func @transform_10(%arg0: i32) -> (i32, i32) {
    %c0_i32 = arith.constant 0 : i32
    %c0_i32_0 = arith.constant 0 : i32
    %c0_i32_1 = arith.constant 0 : i32
    return %c0_i32, %c0_i32_0 : i32, i32
  }
  func.func @transform_11(%arg0: i32) -> (i32, i32) {
    %c0_i32 = arith.constant 0 : i32
    %c0_i32_0 = arith.constant 0 : i32
    %c0_i32_1 = arith.constant 0 : i32
    return %c0_i32, %c0_i32_0 : i32, i32
  }
  func.func @transform_12(%arg0: i32) -> (i32, i32) {
    %c0_i32 = arith.constant 0 : i32
    %c0_i32_0 = arith.constant 0 : i32
    %c0_i32_1 = arith.constant 0 : i32
    return %c0_i32, %c0_i32_0 : i32, i32
  }
  func.func @transform_13(%arg0: i32) -> (i32, i32) {
    %c0_i32 = arith.constant 0 : i32
    %c0_i32_0 = arith.constant 0 : i32
    %c0_i32_1 = arith.constant 0 : i32
    return %c0_i32, %c0_i32_0 : i32, i32
  }
  func.func @transform_14(%arg0: i32) -> (i32, i32) {
    %c0_i32 = arith.constant 0 : i32
    %c0_i32_0 = arith.constant 0 : i32
    %c0_i32_1 = arith.constant 0 : i32
    return %c0_i32, %c0_i32_0 : i32, i32
  }
  func.func @transform_15(%arg0: i32) -> (i32, i32) {
    %c0_i32 = arith.constant 0 : i32
    %c0_i32_0 = arith.constant 0 : i32
    %c0_i32_1 = arith.constant 0 : i32
    return %c0_i32, %c0_i32_0 : i32, i32
  }
  func.func @transform_16(%arg0: i32) -> (i32, i32) {
    %c0_i32 = arith.constant 0 : i32
    %c0_i32_0 = arith.constant 0 : i32
    %c0_i32_1 = arith.constant 0 : i32
    return %c0_i32, %c0_i32_0 : i32, i32
  }
  func.func @transform_17(%arg0: i32) -> (i32, i32) {
    %c0_i32 = arith.constant 0 : i32
    %c0_i32_0 = arith.constant 0 : i32
    %c0_i32_1 = arith.constant 0 : i32
    return %c0_i32, %c0_i32_0 : i32, i32
  }
  func.func @transform_18(%arg0: i32) -> (i32, i32) {
    %c0_i32 = arith.constant 0 : i32
    %c0_i32_0 = arith.constant 0 : i32
    %c0_i32_1 = arith.constant 0 : i32
    return %c0_i32, %c0_i32_0 : i32, i32
  }
  func.func @transform_19(%arg0: i32) -> (i32, i32) {
    %c0_i32 = arith.constant 0 : i32
    %c0_i32_0 = arith.constant 0 : i32
    %c0_i32_1 = arith.constant 0 : i32
    return %c0_i32, %c0_i32_0 : i32, i32
  }
  func.func @transform_20(%arg0: i32) -> (i32, i32) {
    %c0_i32 = arith.constant 0 : i32
    %c0_i32_0 = arith.constant 0 : i32
    %c0_i32_1 = arith.constant 0 : i32
    return %c0_i32, %c0_i32_0 : i32, i32
  }
  func.func @transform_21(%arg0: i32) -> (i32, i32) {
    %c0_i32 = arith.constant 0 : i32
    %c0_i32_0 = arith.constant 0 : i32
    %c0_i32_1 = arith.constant 0 : i32
    return %c0_i32, %c0_i32_0 : i32, i32
  }
  func.func @transform_22(%arg0: i32) -> (i32, i32) {
    %c0_i32 = arith.constant 0 : i32
    %c0_i32_0 = arith.constant 0 : i32
    %c0_i32_1 = arith.constant 0 : i32
    return %c0_i32, %c0_i32_0 : i32, i32
  }
  func.func @transform_23(%arg0: i32) -> (i32, i32) {
    %c0_i32 = arith.constant 0 : i32
    %c0_i32_0 = arith.constant 0 : i32
    %c0_i32_1 = arith.constant 0 : i32
    return %c0_i32, %c0_i32_0 : i32, i32
  }
  func.func @transform_24(%arg0: i32) -> (i32, i32) {
    %c0_i32 = arith.constant 0 : i32
    %c0_i32_0 = arith.constant 0 : i32
    %c0_i32_1 = arith.constant 0 : i32
    return %c0_i32, %c0_i32_0 : i32, i32
  }
  func.func @transform_25(%arg0: i32) -> (i32, i32) {
    %c0_i32 = arith.constant 0 : i32
    %c0_i32_0 = arith.constant 0 : i32
    %c0_i32_1 = arith.constant 0 : i32
    return %c0_i32, %c0_i32_0 : i32, i32
  }
  func.func @transform_26(%arg0: i32) -> (i32, i32) {
    %c0_i32 = arith.constant 0 : i32
    %c0_i32_0 = arith.constant 0 : i32
    %c0_i32_1 = arith.constant 0 : i32
    return %c0_i32, %c0_i32_0 : i32, i32
  }
  func.func @transform_27(%arg0: i32) -> (i32, i32) {
    %c0_i32 = arith.constant 0 : i32
    %c0_i32_0 = arith.constant 0 : i32
    %c0_i32_1 = arith.constant 0 : i32
    return %c0_i32, %c0_i32_0 : i32, i32
  }
  func.func @transform_28(%arg0: i32) -> (i32, i32) {
    %c0_i32 = arith.constant 0 : i32
    %c0_i32_0 = arith.constant 0 : i32
    %c0_i32_1 = arith.constant 0 : i32
    return %c0_i32, %c0_i32_0 : i32, i32
  }
  func.func @transform_29(%arg0: i32) -> (i32, i32) {
    %c0_i32 = arith.constant 0 : i32
    %c0_i32_0 = arith.constant 0 : i32
    %c0_i32_1 = arith.constant 0 : i32
    return %c0_i32, %c0_i32_0 : i32, i32
  }
  func.func @transform_30(%arg0: i32) -> (i32, i32, i32) {
    %c0_i32 = arith.constant 0 : i32
    %c0_i32_0 = arith.constant 0 : i32
    %c0_i32_1 = arith.constant 0 : i32
    return %arg0, %c0_i32, %c0_i32_0 : i32, i32, i32
  }
}

</mosaic_0001>

<llo_original>
// kernel: tpu_custom_call.1
$region0: #{tpu_custom_call.1}
  #allocation0 [shape = 'u32[]', space=smem, size = 0x4, offset = 0x4, fixed_abs, tag = 'smem constant byte address 0x4 - core index']
  #allocation1 [shape = 'u32[72,128]{1,0:T(1,128)}', space=vmem, size = 0x9000, scoped, tag = 'internal scratch']
  #allocation2 [shape = 'f32[40,256]{1,0:T(8,128)}', space=vmem, size = 0xa000, scoped, tag = 'scratch operand']
  %s0 = inlined_call_operand.smem [shape: u32[31], index: -1, kind: input, shape index: {}]
  %s1 = sld [smem:[%s0]]
  %s2 = scalar_lea.smem %s0, 1
  %s3 = sld [smem:[%s2]]
  %s4 = scalar_lea.smem %s0, 2
  %s5 = sld [smem:[%s4]]
  %s6 = scalar_lea.smem %s0, 3
  %s7 = sld [smem:[%s6]]
  %s8 = scalar_lea.smem %s0, 4
  %s9 = sld [smem:[%s8]]
  %s10 = scalar_lea.smem %s0, 5
  %s11 = sld [smem:[%s10]]
  %s12 = scalar_lea.smem %s0, 6
  %s13 = sld [smem:[%s12]]
  %s14 = scalar_lea.smem %s0, 7
  %s15 = sld [smem:[%s14]]
  %s16 = scalar_lea.smem %s0, 8
  %s17 = sld [smem:[%s16]]
  %s18 = scalar_lea.smem %s0, 9
  %s19 = sld [smem:[%s18]]
  %s20 = scalar_lea.smem %s0, 10
  %s21 = sld [smem:[%s20]]
  %s22 = scalar_lea.smem %s0, 11
  %s23 = sld [smem:[%s22]]
  %s24 = scalar_lea.smem %s0, 12
  %s25 = sld [smem:[%s24]]
  %s26 = scalar_lea.smem %s0, 13
  %s27 = sld [smem:[%s26]]
  %s28 = scalar_lea.smem %s0, 14
  %s29 = sld [smem:[%s28]]
  %s30 = scalar_lea.smem %s0, 15
  %s31 = sld [smem:[%s30]]
  %s32 = scalar_lea.smem %s0, 16
  %s33 = sld [smem:[%s32]]
  %s34 = scalar_lea.smem %s0, 17
  %s35 = sld [smem:[%s34]]
  %s36 = scalar_lea.smem %s0, 18
  %s37 = sld [smem:[%s36]]
  %s38 = scalar_lea.smem %s0, 19
  %s39 = sld [smem:[%s38]]
  %s40 = scalar_lea.smem %s0, 20
  %s41 = sld [smem:[%s40]]
  %s42 = scalar_lea.smem %s0, 21
  %s43 = sld [smem:[%s42]]
  %s44 = scalar_lea.smem %s0, 22
  %s45 = sld [smem:[%s44]]
  %s46 = scalar_lea.smem %s0, 23
  %s47 = sld [smem:[%s46]]
  %s48 = scalar_lea.smem %s0, 24
  %s49 = sld [smem:[%s48]]
  %s50 = scalar_lea.smem %s0, 25
  %s51 = sld [smem:[%s50]]
  %s52 = scalar_lea.smem %s0, 26
  %s53 = sld [smem:[%s52]]
  %s54 = scalar_lea.smem %s0, 27
  %s55 = sld [smem:[%s54]]
  %s56 = scalar_lea.smem %s0, 28
  %s57 = sld [smem:[%s56]]
  %s58 = scalar_lea.smem %s0, 29
  %s59 = sld [smem:[%s58]]
  %s60 = scalar_lea.smem %s0, 30
  %s61 = sld [smem:[%s60]]
  %s62 = sld [smem:[#allocation0]]
  $region165: #{tpu_custom_call.1} parent=0
    _
  %s64 = ssub.s32 1, %s62
  %s65 = scalar_select 0, %s64, %s62
  $region1: #{tpu_custom_call.1} parent=0
    #allocation3 [shape = 'u8[32768]{0}', space=vmem, size = 0x8000, scoped, tag = 'input window, operand 0']
    #allocation4 [shape = 's32[2]{0}', space=sflag, size = 0x8, scoped, tag = 'scoped memory for tpu_custom_call.1']
    #allocation5 [shape = 's32[2]{0}', space=sflag, size = 0x8, scoped, tag = 'scoped memory for tpu_custom_call.1']
    #allocation6 [shape = 'u8[8192]{0}', space=vmem, size = 0x2000, scoped, tag = 'input window, operand 17, single buffered']
    #allocation7 [shape = 's32[1]{0}', space=sflag, size = 0x4, scoped, tag = 'scoped memory for tpu_custom_call.1']
    #allocation8 [shape = 'u8[8192]{0}', space=vmem, size = 0x2000, scoped, tag = 'input window, operand 28, single buffered']
    #allocation9 [shape = 'u8[32768]{0}', space=vmem, size = 0x8000, scoped, tag = 'output window, operand 0']
    %66 = vsyncpa [#allocation4], 0
    %s67 = scalar_lea.sflag [#allocation4], 1
    %68 = vsyncpa %s67, 0
    %69 = vsyncpa [#allocation7], 0
    %70 = vsyncpa [#allocation5], 0
    %s71 = scalar_lea.sflag [#allocation5], 1
    %72 = vsyncpa %s71, 0
    loop: start=0, step=1, limit=4
    $region2: #{tpu_custom_call.1} parent=1 // loop_pre_header
      _
    $region3: #{tpu_custom_call.1} parent=1 // loop_header
      %s74 = sphi 0, %s78
      %p75 = scmp.ge.s32.totalorder %s74, 4
      %s84 = sphi 0, %s86
      %s87 = sphi 0, %s84
      %s88 = sphi 0, %s87
      %s104 = sphi 0, %s88
      %s108 = sphi 0, %s108
      %s110 = sphi 0, %s108
      %s111 = sphi 0, %s110
      %s125 = sphi 0, %s111
      %s129 = sphi 0, %s129
      %s131 = sphi 0, %s129
      %s132 = sphi 0, %s131
      %s146 = sphi 0, %s132
      %s150 = sphi 0, %s150
      %s152 = sphi 0, %s150
      %s153 = sphi 0, %s152
      %s167 = sphi 0, %s153
      %s171 = sphi 0, %s171
      %s173 = sphi 0, %s171
      %s174 = sphi 0, %s173
      %s188 = sphi 0, %s174
      %s192 = sphi 0, %s192
      %s194 = sphi 0, %s192
      %s195 = sphi 0, %s194
      %s209 = sphi 0, %s195
      %s213 = sphi 0, %s213
      %s215 = sphi 0, %s213
      %s216 = sphi 0, %s215
      %s230 = sphi 0, %s216
      %s234 = sphi 0, %s234
      %s236 = sphi 0, %s234
      %s237 = sphi 0, %s236
      %s251 = sphi 0, %s237
      %s255 = sphi 0, %s255
      %s257 = sphi 0, %s255
      %s258 = sphi 0, %s257
      %s272 = sphi 0, %s258
      %s276 = sphi 0, %s276
      %s278 = sphi 0, %s276
      %s279 = sphi 0, %s278
      %s293 = sphi 0, %s279
      %s297 = sphi 0, %s297
      %s299 = sphi 0, %s297
      %s300 = sphi 0, %s299
      %s314 = sphi 0, %s300
      %s318 = sphi 0, %s318
      %s320 = sphi 0, %s318
      %s321 = sphi 0, %s320
      %s335 = sphi 0, %s321
      %s339 = sphi 0, %s339
      %s341 = sphi 0, %s339
      %s342 = sphi 0, %s341
      %s356 = sphi 0, %s342
      %s360 = sphi 0, %s360
      %s362 = sphi 0, %s360
      %s363 = sphi 0, %s362
      %s377 = sphi 0, %s363
      %s381 = sphi 0, %s381
      %s383 = sphi 0, %s381
      %s384 = sphi 0, %s383
      %s398 = sphi 0, %s384
      %s402 = sphi 0, %s402
      %s404 = sphi 0, %s402
      %s405 = sphi 0, %s404
      %s419 = sphi 0, %s405
      %s423 = sphi 0, %s423
      %s425 = sphi 0, %s423
      %s426 = sphi 0, %s425
      %s440 = sphi 0, %s426
      %s444 = sphi 0, %s444
      %s446 = sphi 0, %s444
      %s447 = sphi 0, %s446
      %s461 = sphi 0, %s447
      %s465 = sphi 0, %s465
      %s467 = sphi 0, %s465
      %s468 = sphi 0, %s467
      %s482 = sphi 0, %s468
      %s486 = sphi 0, %s486
      %s488 = sphi 0, %s486
      %s489 = sphi 0, %s488
      %s503 = sphi 0, %s489
      %s507 = sphi 0, %s507
      %s509 = sphi 0, %s507
      %s510 = sphi 0, %s509
      %s524 = sphi 0, %s510
      %s528 = sphi 0, %s528
      %s530 = sphi 0, %s528
      %s531 = sphi 0, %s530
      %s545 = sphi 0, %s531
      %s549 = sphi 0, %s549
      %s551 = sphi 0, %s549
      %s552 = sphi 0, %s551
      %s566 = sphi 0, %s552
      %s570 = sphi 0, %s570
      %s572 = sphi 0, %s570
      %s573 = sphi 0, %s572
      %s587 = sphi 0, %s573
      %s591 = sphi 0, %s591
      %s593 = sphi 0, %s591
      %s594 = sphi 0, %s593
      %s608 = sphi 0, %s594
      %s612 = sphi 0, %s612
      %s614 = sphi 0, %s612
      %s615 = sphi 0, %s614
      %s629 = sphi 0, %s615
      %s633 = sphi 0, %s633
      %s635 = sphi 0, %s633
      %s636 = sphi 0, %s635
      %s650 = sphi 0, %s636
      %s654 = sphi 0, %s654
      %s656 = sphi 0, %s654
      %s657 = sphi 0, %s656
      %s671 = sphi 0, %s657
      %s675 = sphi 0, %s675
      %s677 = sphi 0, %s675
      %s678 = sphi 0, %s677
      %s692 = sphi 0, %s678
      %s696 = sphi 0, %s696
      %s698 = sphi 0, %s696
      %s699 = sphi 0, %s698
      %s713 = sphi 0, %s699
      %s719 = sphi 0, %s721
      %s722 = sphi 0, %s719
      %s723 = sphi 0, %s722
      %s739 = sphi 0, %s723
    $region4: #{tpu_custom_call.1} parent=1 // loop_header_branch
      %77 = sbr.rel (%p75) target = $region8
    $region5: #{tpu_custom_call.1} parent=1 // loop_body
      %s79 = ssub.s32 %s74, 1
      %s80 = ssub.s32 %s74, 2
      %s81 = sadd.s32 %s74, 1
      %s82 = ssub.s32 %s74, %s81
      %p83 = scmp.eq.s32.totalorder %s82, 0
      %s85 = sadd.s32 %s84, 1
      %s86 = scalar_select %p83, %s84, %s85
      %p89 = pneg %p83
      %p90 = scmp.eq.s32.totalorder %s74, 1
      %p91 = por %p89, %p90
      %p92 = scmp.ne.s32.totalorder %s84, %s87
      %p93 = scmp.eq.s32.totalorder %s74, 0
      %p94 = por %p92, %p93
      %p95 = scmp.ne.s32.totalorder %s84, %s87
      %p96 = scmp.eq.s32.totalorder %s79, 1
      %p97 = por %p95, %p96
      %p98 = scmp.ne.s32.totalorder %s87, %s88
      %p99 = scmp.eq.s32.totalorder %s79, 0
      %p100 = por %p98, %p99
      %p101 = scmp.ne.s32.totalorder %s87, %s88
      %p102 = scmp.eq.s32.totalorder %s80, 1
      %p103 = por %p101, %p102
      %p105 = scmp.ne.s32.totalorder %s88, %s104
      %p106 = scmp.eq.s32.totalorder %s80, 0
      %p107 = por %p105, %p106
      %s109 = sadd.s32 %s108, 1
      %p112 = scmp.eq.s32.totalorder %s74, 1
      %p113 = scmp.ne.s32.totalorder %s108, %s110
      %p114 = scmp.eq.s32.totalorder %s74, 0
      %p115 = por %p113, %p114
      %p116 = scmp.ne.s32.totalorder %s108, %s110
      %p117 = scmp.eq.s32.totalorder %s79, 1
      %p118 = por %p116, %p117
      %p119 = scmp.ne.s32.totalorder %s110, %s111
      %p120 = scmp.eq.s32.totalorder %s79, 0
      %p121 = por %p119, %p120
      %p122 = scmp.ne.s32.totalorder %s110, %s111
      %p123 = scmp.eq.s32.totalorder %s80, 1
      %p124 = por %p122, %p123
      %p126 = scmp.ne.s32.totalorder %s111, %s125
      %p127 = scmp.eq.s32.totalorder %s80, 0
      %p128 = por %p126, %p127
      %s130 = sadd.s32 %s129, 1
      %p133 = scmp.eq.s32.totalorder %s74, 1
      %p134 = scmp.ne.s32.totalorder %s129, %s131
      %p135 = scmp.eq.s32.totalorder %s74, 0
      %p136 = por %p134, %p135
      %p137 = scmp.ne.s32.totalorder %s129, %s131
      %p138 = scmp.eq.s32.totalorder %s79, 1
      %p139 = por %p137, %p138
      %p140 = scmp.ne.s32.totalorder %s131, %s132
      %p141 = scmp.eq.s32.totalorder %s79, 0
      %p142 = por %p140, %p141
      %p143 = scmp.ne.s32.totalorder %s131, %s132
      %p144 = scmp.eq.s32.totalorder %s80, 1
      %p145 = por %p143, %p144
      %p147 = scmp.ne.s32.totalorder %s132, %s146
      %p148 = scmp.eq.s32.totalorder %s80, 0
      %p149 = por %p147, %p148
      %s151 = sadd.s32 %s150, 1
      %p154 = scmp.eq.s32.totalorder %s74, 1
      %p155 = scmp.ne.s32.totalorder %s150, %s152
      %p156 = scmp.eq.s32.totalorder %s74, 0
      %p157 = por %p155, %p156
      %p158 = scmp.ne.s32.totalorder %s150, %s152
      %p159 = scmp.eq.s32.totalorder %s79, 1
      %p160 = por %p158, %p159
      %p161 = scmp.ne.s32.totalorder %s152, %s153
      %p162 = scmp.eq.s32.totalorder %s79, 0
      %p163 = por %p161, %p162
      %p164 = scmp.ne.s32.totalorder %s152, %s153
      %p165 = scmp.eq.s32.totalorder %s80, 1
      %p166 = por %p164, %p165
      %p168 = scmp.ne.s32.totalorder %s153, %s167
      %p169 = scmp.eq.s32.totalorder %s80, 0
      %p170 = por %p168, %p169
      %s172 = sadd.s32 %s171, 1
      %p175 = scmp.eq.s32.totalorder %s74, 1
      %p176 = scmp.ne.s32.totalorder %s171, %s173
      %p177 = scmp.eq.s32.totalorder %s74, 0
      %p178 = por %p176, %p177
      %p179 = scmp.ne.s32.totalorder %s171, %s173
      %p180 = scmp.eq.s32.totalorder %s79, 1
      %p181 = por %p179, %p180
      %p182 = scmp.ne.s32.totalorder %s173, %s174
      %p183 = scmp.eq.s32.totalorder %s79, 0
      %p184 = por %p182, %p183
      %p185 = scmp.ne.s32.totalorder %s173, %s174
      %p186 = scmp.eq.s32.totalorder %s80, 1
      %p187 = por %p185, %p186
      %p189 = scmp.ne.s32.totalorder %s174, %s188
      %p190 = scmp.eq.s32.totalorder %s80, 0
      %p191 = por %p189, %p190
      %s193 = sadd.s32 %s192, 1
      %p196 = scmp.eq.s32.totalorder %s74, 1
      %p197 = scmp.ne.s32.totalorder %s192, %s194
      %p198 = scmp.eq.s32.totalorder %s74, 0
      %p199 = por %p197, %p198
      %p200 = scmp.ne.s32.totalorder %s192, %s194
      %p201 = scmp.eq.s32.totalorder %s79, 1
      %p202 = por %p200, %p201
      %p203 = scmp.ne.s32.totalorder %s194, %s195
      %p204 = scmp.eq.s32.totalorder %s79, 0
      %p205 = por %p203, %p204
      %p206 = scmp.ne.s32.totalorder %s194, %s195
      %p207 = scmp.eq.s32.totalorder %s80, 1
      %p208 = por %p206, %p207
      %p210 = scmp.ne.s32.totalorder %s195, %s209
      %p211 = scmp.eq.s32.totalorder %s80, 0
      %p212 = por %p210, %p211
      %s214 = sadd.s32 %s213, 1
      %p217 = scmp.eq.s32.totalorder %s74, 1
      %p218 = scmp.ne.s32.totalorder %s213, %s215
      %p219 = scmp.eq.s32.totalorder %s74, 0
      %p220 = por %p218, %p219
      %p221 = scmp.ne.s32.totalorder %s213, %s215
      %p222 = scmp.eq.s32.totalorder %s79, 1
      %p223 = por %p221, %p222
      %p224 = scmp.ne.s32.totalorder %s215, %s216
      %p225 = scmp.eq.s32.totalorder %s79, 0
      %p226 = por %p224, %p225
      %p227 = scmp.ne.s32.totalorder %s215, %s216
      %p228 = scmp.eq.s32.totalorder %s80, 1
      %p229 = por %p227, %p228
      %p231 = scmp.ne.s32.totalorder %s216, %s230
      %p232 = scmp.eq.s32.totalorder %s80, 0
      %p233 = por %p231, %p232
      %s235 = sadd.s32 %s234, 1
      %p238 = scmp.eq.s32.totalorder %s74, 1
      %p239 = scmp.ne.s32.totalorder %s234, %s236
      %p240 = scmp.eq.s32.totalorder %s74, 0
      %p241 = por %p239, %p240
      %p242 = scmp.ne.s32.totalorder %s234, %s236
      %p243 = scmp.eq.s32.totalorder %s79, 1
      %p244 = por %p242, %p243
      %p245 = scmp.ne.s32.totalorder %s236, %s237
      %p246 = scmp.eq.s32.totalorder %s79, 0
      %p247 = por %p245, %p246
      %p248 = scmp.ne.s32.totalorder %s236, %s237
      %p249 = scmp.eq.s32.totalorder %s80, 1
      %p250 = por %p248, %p249
      %p252 = scmp.ne.s32.totalorder %s237, %s251
      %p253 = scmp.eq.s32.totalorder %s80, 0
      %p254 = por %p252, %p253
      %s256 = sadd.s32 %s255, 1
      %p259 = scmp.eq.s32.totalorder %s74, 1
      %p260 = scmp.ne.s32.totalorder %s255, %s257
      %p261 = scmp.eq.s32.totalorder %s74, 0
      %p262 = por %p260, %p261
      %p263 = scmp.ne.s32.totalorder %s255, %s257
      %p264 = scmp.eq.s32.totalorder %s79, 1
      %p265 = por %p263, %p264
      %p266 = scmp.ne.s32.totalorder %s257, %s258
      %p267 = scmp.eq.s32.totalorder %s79, 0
      %p268 = por %p266, %p267
      %p269 = scmp.ne.s32.totalorder %s257, %s258
      %p270 = scmp.eq.s32.totalorder %s80, 1
      %p271 = por %p269, %p270
      %p273 = scmp.ne.s32.totalorder %s258, %s272
      %p274 = scmp.eq.s32.totalorder %s80, 0
      %p275 = por %p273, %p274
      %s277 = sadd.s32 %s276, 1
      %p280 = scmp.eq.s32.totalorder %s74, 1
      %p281 = scmp.ne.s32.totalorder %s276, %s278
      %p282 = scmp.eq.s32.totalorder %s74, 0
      %p283 = por %p281, %p282
      %p284 = scmp.ne.s32.totalorder %s276, %s278
      %p285 = scmp.eq.s32.totalorder %s79, 1
      %p286 = por %p284, %p285
      %p287 = scmp.ne.s32.totalorder %s278, %s279
      %p288 = scmp.eq.s32.totalorder %s79, 0
      %p289 = por %p287, %p288
      %p290 = scmp.ne.s32.totalorder %s278, %s279
      %p291 = scmp.eq.s32.totalorder %s80, 1
      %p292 = por %p290, %p291
      %p294 = scmp.ne.s32.totalorder %s279, %s293
      %p295 = scmp.eq.s32.totalorder %s80, 0
      %p296 = por %p294, %p295
      %s298 = sadd.s32 %s297, 1
      %p301 = scmp.eq.s32.totalorder %s74, 1
      %p302 = scmp.ne.s32.totalorder %s297, %s299
      %p303 = scmp.eq.s32.totalorder %s74, 0
      %p304 = por %p302, %p303
      %p305 = scmp.ne.s32.totalorder %s297, %s299
      %p306 = scmp.eq.s32.totalorder %s79, 1
      %p307 = por %p305, %p306
      %p308 = scmp.ne.s32.totalorder %s299, %s300
      %p309 = scmp.eq.s32.totalorder %s79, 0
      %p310 = por %p308, %p309
      %p311 = scmp.ne.s32.totalorder %s299, %s300
      %p312 = scmp.eq.s32.totalorder %s80, 1
      %p313 = por %p311, %p312
      %p315 = scmp.ne.s32.totalorder %s300, %s314
      %p316 = scmp.eq.s32.totalorder %s80, 0
      %p317 = por %p315, %p316
      %s319 = sadd.s32 %s318, 1
      %p322 = scmp.eq.s32.totalorder %s74, 1
      %p323 = scmp.ne.s32.totalorder %s318, %s320
      %p324 = scmp.eq.s32.totalorder %s74, 0
      %p325 = por %p323, %p324
      %p326 = scmp.ne.s32.totalorder %s318, %s320
      %p327 = scmp.eq.s32.totalorder %s79, 1
      %p328 = por %p326, %p327
      %p329 = scmp.ne.s32.totalorder %s320, %s321
      %p330 = scmp.eq.s32.totalorder %s79, 0
      %p331 = por %p329, %p330
      %p332 = scmp.ne.s32.totalorder %s320, %s321
      %p333 = scmp.eq.s32.totalorder %s80, 1
      %p334 = por %p332, %p333
      %p336 = scmp.ne.s32.totalorder %s321, %s335
      %p337 = scmp.eq.s32.totalorder %s80, 0
      %p338 = por %p336, %p337
      %s340 = sadd.s32 %s339, 1
      %p343 = scmp.eq.s32.totalorder %s74, 1
      %p344 = scmp.ne.s32.totalorder %s339, %s341
      %p345 = scmp.eq.s32.totalorder %s74, 0
      %p346 = por %p344, %p345
      %p347 = scmp.ne.s32.totalorder %s339, %s341
      %p348 = scmp.eq.s32.totalorder %s79, 1
      %p349 = por %p347, %p348
      %p350 = scmp.ne.s32.totalorder %s341, %s342
      %p351 = scmp.eq.s32.totalorder %s79, 0
      %p352 = por %p350, %p351
      %p353 = scmp.ne.s32.totalorder %s341, %s342
      %p354 = scmp.eq.s32.totalorder %s80, 1
      %p355 = por %p353, %p354
      %p357 = scmp.ne.s32.totalorder %s342, %s356
      %p358 = scmp.eq.s32.totalorder %s80, 0
      %p359 = por %p357, %p358
      %s361 = sadd.s32 %s360, 1
      %p364 = scmp.eq.s32.totalorder %s74, 1
      %p365 = scmp.ne.s32.totalorder %s360, %s362
      %p366 = scmp.eq.s32.totalorder %s74, 0
      %p367 = por %p365, %p366
      %p368 = scmp.ne.s32.totalorder %s360, %s362
      %p369 = scmp.eq.s32.totalorder %s79, 1
      %p370 = por %p368, %p369
      %p371 = scmp.ne.s32.totalorder %s362, %s363
      %p372 = scmp.eq.s32.totalorder %s79, 0
      %p373 = por %p371, %p372
      %p374 = scmp.ne.s32.totalorder %s362, %s363
      %p375 = scmp.eq.s32.totalorder %s80, 1
      %p376 = por %p374, %p375
      %p378 = scmp.ne.s32.totalorder %s363, %s377
      %p379 = scmp.eq.s32.totalorder %s80, 0
      %p380 = por %p378, %p379
      %s382 = sadd.s32 %s381, 1
      %p385 = scmp.eq.s32.totalorder %s74, 1
      %p386 = scmp.ne.s32.totalorder %s381, %s383
      %p387 = scmp.eq.s32.totalorder %s74, 0
      %p388 = por %p386, %p387
      %p389 = scmp.ne.s32.totalorder %s381, %s383
      %p390 = scmp.eq.s32.totalorder %s79, 1
      %p391 = por %p389, %p390
      %p392 = scmp.ne.s32.totalorder %s383, %s384
      %p393 = scmp.eq.s32.totalorder %s79, 0
      %p394 = por %p392, %p393
      %p395 = scmp.ne.s32.totalorder %s383, %s384
      %p396 = scmp.eq.s32.totalorder %s80, 1
      %p397 = por %p395, %p396
      %p399 = scmp.ne.s32.totalorder %s384, %s398
      %p400 = scmp.eq.s32.totalorder %s80, 0
      %p401 = por %p399, %p400
      %s403 = sadd.s32 %s402, 1
      %p406 = scmp.eq.s32.totalorder %s74, 1
      %p407 = scmp.ne.s32.totalorder %s402, %s404
      %p408 = scmp.eq.s32.totalorder %s74, 0
      %p409 = por %p407, %p408
      %p410 = scmp.ne.s32.totalorder %s402, %s404
      %p411 = scmp.eq.s32.totalorder %s79, 1
      %p412 = por %p410, %p411
      %p413 = scmp.ne.s32.totalorder %s404, %s405
      %p414 = scmp.eq.s32.totalorder %s79, 0
      %p415 = por %p413, %p414
      %p416 = scmp.ne.s32.totalorder %s404, %s405
      %p417 = scmp.eq.s32.totalorder %s80, 1
      %p418 = por %p416, %p417
      %p420 = scmp.ne.s32.totalorder %s405, %s419
      %p421 = scmp.eq.s32.totalorder %s80, 0
      %p422 = por %p420, %p421
      %s424 = sadd.s32 %s423, 1
      %p427 = scmp.eq.s32.totalorder %s74, 1
      %p428 = scmp.ne.s32.totalorder %s423, %s425
      %p429 = scmp.eq.s32.totalorder %s74, 0
      %p430 = por %p428, %p429
      %p431 = scmp.ne.s32.totalorder %s423, %s425
      %p432 = scmp.eq.s32.totalorder %s79, 1
      %p433 = por %p431, %p432
      %p434 = scmp.ne.s32.totalorder %s425, %s426
      %p435 = scmp.eq.s32.totalorder %s79, 0
      %p436 = por %p434, %p435
      %p437 = scmp.ne.s32.totalorder %s425, %s426
      %p438 = scmp.eq.s32.totalorder %s80, 1
      %p439 = por %p437, %p438
      %p441 = scmp.ne.s32.totalorder %s426, %s440
      %p442 = scmp.eq.s32.totalorder %s80, 0
      %p443 = por %p441, %p442
      %s445 = sadd.s32 %s444, 1
      %p448 = scmp.eq.s32.totalorder %s74, 1
      %p449 = scmp.ne.s32.totalorder %s444, %s446
      %p450 = scmp.eq.s32.totalorder %s74, 0
      %p451 = por %p449, %p450
      %p452 = scmp.ne.s32.totalorder %s444, %s446
      %p453 = scmp.eq.s32.totalorder %s79, 1
      %p454 = por %p452, %p453
      %p455 = scmp.ne.s32.totalorder %s446, %s447
      %p456 = scmp.eq.s32.totalorder %s79, 0
      %p457 = por %p455, %p456
      %p458 = scmp.ne.s32.totalorder %s446, %s447
      %p459 = scmp.eq.s32.totalorder %s80, 1
      %p460 = por %p458, %p459
      %p462 = scmp.ne.s32.totalorder %s447, %s461
      %p463 = scmp.eq.s32.totalorder %s80, 0
      %p464 = por %p462, %p463
      %s466 = sadd.s32 %s465, 1
      %p469 = scmp.eq.s32.totalorder %s74, 1
      %p470 = scmp.ne.s32.totalorder %s465, %s467
      %p471 = scmp.eq.s32.totalorder %s74, 0
      %p472 = por %p470, %p471
      %p473 = scmp.ne.s32.totalorder %s465, %s467
      %p474 = scmp.eq.s32.totalorder %s79, 1
      %p475 = por %p473, %p474
      %p476 = scmp.ne.s32.totalorder %s467, %s468
      %p477 = scmp.eq.s32.totalorder %s79, 0
      %p478 = por %p476, %p477
      %p479 = scmp.ne.s32.totalorder %s467, %s468
      %p480 = scmp.eq.s32.totalorder %s80, 1
      %p481 = por %p479, %p480
      %p483 = scmp.ne.s32.totalorder %s468, %s482
      %p484 = scmp.eq.s32.totalorder %s80, 0
      %p485 = por %p483, %p484
      %s487 = sadd.s32 %s486, 1
      %p490 = scmp.eq.s32.totalorder %s74, 1
      %p491 = scmp.ne.s32.totalorder %s486, %s488
      %p492 = scmp.eq.s32.totalorder %s74, 0
      %p493 = por %p491, %p492
      %p494 = scmp.ne.s32.totalorder %s486, %s488
      %p495 = scmp.eq.s32.totalorder %s79, 1
      %p496 = por %p494, %p495
      %p497 = scmp.ne.s32.totalorder %s488, %s489
      %p498 = scmp.eq.s32.totalorder %s79, 0
      %p499 = por %p497, %p498
      %p500 = scmp.ne.s32.totalorder %s488, %s489
      %p501 = scmp.eq.s32.totalorder %s80, 1
      %p502 = por %p500, %p501
      %p504 = scmp.ne.s32.totalorder %s489, %s503
      %p505 = scmp.eq.s32.totalorder %s80, 0
      %p506 = por %p504, %p505
      %s508 = sadd.s32 %s507, 1
      %p511 = scmp.eq.s32.totalorder %s74, 1
      %p512 = scmp.ne.s32.totalorder %s507, %s509
      %p513 = scmp.eq.s32.totalorder %s74, 0
      %p514 = por %p512, %p513
      %p515 = scmp.ne.s32.totalorder %s507, %s509
      %p516 = scmp.eq.s32.totalorder %s79, 1
      %p517 = por %p515, %p516
      %p518 = scmp.ne.s32.totalorder %s509, %s510
      %p519 = scmp.eq.s32.totalorder %s79, 0
      %p520 = por %p518, %p519
      %p521 = scmp.ne.s32.totalorder %s509, %s510
      %p522 = scmp.eq.s32.totalorder %s80, 1
      %p523 = por %p521, %p522
      %p525 = scmp.ne.s32.totalorder %s510, %s524
      %p526 = scmp.eq.s32.totalorder %s80, 0
      %p527 = por %p525, %p526
      %s529 = sadd.s32 %s528, 1
      %p532 = scmp.eq.s32.totalorder %s74, 1
      %p533 = scmp.ne.s32.totalorder %s528, %s530
      %p534 = scmp.eq.s32.totalorder %s74, 0
      %p535 = por %p533, %p534
      %p536 = scmp.ne.s32.totalorder %s528, %s530
      %p537 = scmp.eq.s32.totalorder %s79, 1
      %p538 = por %p536, %p537
      %p539 = scmp.ne.s32.totalorder %s530, %s531
      %p540 = scmp.eq.s32.totalorder %s79, 0
      %p541 = por %p539, %p540
      %p542 = scmp.ne.s32.totalorder %s530, %s531
      %p543 = scmp.eq.s32.totalorder %s80, 1
      %p544 = por %p542, %p543
      %p546 = scmp.ne.s32.totalorder %s531, %s545
      %p547 = scmp.eq.s32.totalorder %s80, 0
      %p548 = por %p546, %p547
      %s550 = sadd.s32 %s549, 1
      %p553 = scmp.eq.s32.totalorder %s74, 1
      %p554 = scmp.ne.s32.totalorder %s549, %s551
      %p555 = scmp.eq.s32.totalorder %s74, 0
      %p556 = por %p554, %p555
      %p557 = scmp.ne.s32.totalorder %s549, %s551
      %p558 = scmp.eq.s32.totalorder %s79, 1
      %p559 = por %p557, %p558
      %p560 = scmp.ne.s32.totalorder %s551, %s552
      %p561 = scmp.eq.s32.totalorder %s79, 0
      %p562 = por %p560, %p561
      %p563 = scmp.ne.s32.totalorder %s551, %s552
      %p564 = scmp.eq.s32.totalorder %s80, 1
      %p565 = por %p563, %p564
      %p567 = scmp.ne.s32.totalorder %s552, %s566
      %p568 = scmp.eq.s32.totalorder %s80, 0
      %p569 = por %p567, %p568
      %s571 = sadd.s32 %s570, 1
      %p574 = scmp.eq.s32.totalorder %s74, 1
      %p575 = scmp.ne.s32.totalorder %s570, %s572
      %p576 = scmp.eq.s32.totalorder %s74, 0
      %p577 = por %p575, %p576
      %p578 = scmp.ne.s32.totalorder %s570, %s572
      %p579 = scmp.eq.s32.totalorder %s79, 1
      %p580 = por %p578, %p579
      %p581 = scmp.ne.s32.totalorder %s572, %s573
      %p582 = scmp.eq.s32.totalorder %s79, 0
      %p583 = por %p581, %p582
      %p584 = scmp.ne.s32.totalorder %s572, %s573
      %p585 = scmp.eq.s32.totalorder %s80, 1
      %p586 = por %p584, %p585
      %p588 = scmp.ne.s32.totalorder %s573, %s587
      %p589 = scmp.eq.s32.totalorder %s80, 0
      %p590 = por %p588, %p589
      %s592 = sadd.s32 %s591, 1
      %p595 = scmp.eq.s32.totalorder %s74, 1
      %p596 = scmp.ne.s32.totalorder %s591, %s593
      %p597 = scmp.eq.s32.totalorder %s74, 0
      %p598 = por %p596, %p597
      %p599 = scmp.ne.s32.totalorder %s591, %s593
      %p600 = scmp.eq.s32.totalorder %s79, 1
      %p601 = por %p599, %p600
      %p602 = scmp.ne.s32.totalorder %s593, %s594
      %p603 = scmp.eq.s32.totalorder %s79, 0
      %p604 = por %p602, %p603
      %p605 = scmp.ne.s32.totalorder %s593, %s594
      %p606 = scmp.eq.s32.totalorder %s80, 1
      %p607 = por %p605, %p606
      %p609 = scmp.ne.s32.totalorder %s594, %s608
      %p610 = scmp.eq.s32.totalorder %s80, 0
      %p611 = por %p609, %p610
      %s613 = sadd.s32 %s612, 1
      %p616 = scmp.eq.s32.totalorder %s74, 1
      %p617 = scmp.ne.s32.totalorder %s612, %s614
      %p618 = scmp.eq.s32.totalorder %s74, 0
      %p619 = por %p617, %p618
      %p620 = scmp.ne.s32.totalorder %s612, %s614
      %p621 = scmp.eq.s32.totalorder %s79, 1
      %p622 = por %p620, %p621
      %p623 = scmp.ne.s32.totalorder %s614, %s615
      %p624 = scmp.eq.s32.totalorder %s79, 0
      %p625 = por %p623, %p624
      %p626 = scmp.ne.s32.totalorder %s614, %s615
      %p627 = scmp.eq.s32.totalorder %s80, 1
      %p628 = por %p626, %p627
      %p630 = scmp.ne.s32.totalorder %s615, %s629
      %p631 = scmp.eq.s32.totalorder %s80, 0
      %p632 = por %p630, %p631
      %s634 = sadd.s32 %s633, 1
      %p637 = scmp.eq.s32.totalorder %s74, 1
      %p638 = scmp.ne.s32.totalorder %s633, %s635
      %p639 = scmp.eq.s32.totalorder %s74, 0
      %p640 = por %p638, %p639
      %p641 = scmp.ne.s32.totalorder %s633, %s635
      %p642 = scmp.eq.s32.totalorder %s79, 1
      %p643 = por %p641, %p642
      %p644 = scmp.ne.s32.totalorder %s635, %s636
      %p645 = scmp.eq.s32.totalorder %s79, 0
      %p646 = por %p644, %p645
      %p647 = scmp.ne.s32.totalorder %s635, %s636
      %p648 = scmp.eq.s32.totalorder %s80, 1
      %p649 = por %p647, %p648
      %p651 = scmp.ne.s32.totalorder %s636, %s650
      %p652 = scmp.eq.s32.totalorder %s80, 0
      %p653 = por %p651, %p652
      %s655 = sadd.s32 %s654, 1
      %p658 = scmp.eq.s32.totalorder %s74, 1
      %p659 = scmp.ne.s32.totalorder %s654, %s656
      %p660 = scmp.eq.s32.totalorder %s74, 0
      %p661 = por %p659, %p660
      %p662 = scmp.ne.s32.totalorder %s654, %s656
      %p663 = scmp.eq.s32.totalorder %s79, 1
      %p664 = por %p662, %p663
      %p665 = scmp.ne.s32.totalorder %s656, %s657
      %p666 = scmp.eq.s32.totalorder %s79, 0
      %p667 = por %p665, %p666
      %p668 = scmp.ne.s32.totalorder %s656, %s657
      %p669 = scmp.eq.s32.totalorder %s80, 1
      %p670 = por %p668, %p669
      %p672 = scmp.ne.s32.totalorder %s657, %s671
      %p673 = scmp.eq.s32.totalorder %s80, 0
      %p674 = por %p672, %p673
      %s676 = sadd.s32 %s675, 1
      %p679 = scmp.eq.s32.totalorder %s74, 1
      %p680 = scmp.ne.s32.totalorder %s675, %s677
      %p681 = scmp.eq.s32.totalorder %s74, 0
      %p682 = por %p680, %p681
      %p683 = scmp.ne.s32.totalorder %s675, %s677
      %p684 = scmp.eq.s32.totalorder %s79, 1
      %p685 = por %p683, %p684
      %p686 = scmp.ne.s32.totalorder %s677, %s678
      %p687 = scmp.eq.s32.totalorder %s79, 0
      %p688 = por %p686, %p687
      %p689 = scmp.ne.s32.totalorder %s677, %s678
      %p690 = scmp.eq.s32.totalorder %s80, 1
      %p691 = por %p689, %p690
      %p693 = scmp.ne.s32.totalorder %s678, %s692
      %p694 = scmp.eq.s32.totalorder %s80, 0
      %p695 = por %p693, %p694
      %s697 = sadd.s32 %s696, 1
      %p700 = scmp.eq.s32.totalorder %s74, 1
      %p701 = scmp.ne.s32.totalorder %s696, %s698
      %p702 = scmp.eq.s32.totalorder %s74, 0
      %p703 = por %p701, %p702
      %p704 = scmp.ne.s32.totalorder %s696, %s698
      %p705 = scmp.eq.s32.totalorder %s79, 1
      %p706 = por %p704, %p705
      %p707 = scmp.ne.s32.totalorder %s698, %s699
      %p708 = scmp.eq.s32.totalorder %s79, 0
      %p709 = por %p707, %p708
      %p710 = scmp.ne.s32.totalorder %s698, %s699
      %p711 = scmp.eq.s32.totalorder %s80, 1
      %p712 = por %p710, %p711
      %p714 = scmp.ne.s32.totalorder %s699, %s713
      %p715 = scmp.eq.s32.totalorder %s80, 0
      %p716 = por %p714, %p715
      %s717 = ssub.s32 %s74, %s81
      %p718 = scmp.eq.s32.totalorder %s717, 0
      %s720 = sadd.s32 %s719, 1
      %s721 = scalar_select %p718, %s719, %s720
      %p724 = pneg %p718
      %p725 = scmp.eq.s32.totalorder %s74, 1
      %p726 = por %p724, %p725
      %p727 = scmp.ne.s32.totalorder %s719, %s722
      %p728 = scmp.eq.s32.totalorder %s74, 0
      %p729 = por %p727, %p728
      %p730 = scmp.ne.s32.totalorder %s719, %s722
      %p731 = scmp.eq.s32.totalorder %s79, 1
      %p732 = por %p730, %p731
      %p733 = scmp.ne.s32.totalorder %s722, %s723
      %p734 = scmp.eq.s32.totalorder %s79, 0
      %p735 = por %p733, %p734
      %p736 = scmp.ne.s32.totalorder %s722, %s723
      %p737 = scmp.eq.s32.totalorder %s80, 1
      %p738 = por %p736, %p737
      %p740 = scmp.ne.s32.totalorder %s723, %s739
      %p741 = scmp.eq.s32.totalorder %s80, 0
      %p742 = por %p740, %p741
      %p743 = scmp.le.s32.totalorder 1, %s74
      %p744 = scmp.lt.s32.totalorder %s74, 3
      %p745 = pnand %p743, %p744
      %p746 = pneg %p745
      // Predicated region
      $region9: #{tpu_custom_call.1} parent=5 // pred_check
        _
      $region10: #{tpu_custom_call.1} parent=5 // pred_check_branch
        %748 = sbr.rel (%p745) target = $region12
      $region11: #{tpu_custom_call.1} parent=5 // pred_region
        %s749 = ssub.s32 %s74, 1
        // Predicated region
        $region13: #{tpu_custom_call.1} parent=11 // pred_check
          %p750 = pneg %p121
        $region14: #{tpu_custom_call.1} parent=11 // pred_check_branch
          %752 = sbr.rel (%p750) target = $region16
        $region15: #{tpu_custom_call.1} parent=11 // pred_region
          _
        $region16: #{tpu_custom_call.1} parent=11 // pred_fallthru
          _
        // Predicated region
        $region17: #{tpu_custom_call.1} parent=11 // pred_check
          %p753 = pneg %p142
        $region18: #{tpu_custom_call.1} parent=11 // pred_check_branch
          %755 = sbr.rel (%p753) target = $region20
        $region19: #{tpu_custom_call.1} parent=11 // pred_region
          _
        $region20: #{tpu_custom_call.1} parent=11 // pred_fallthru
          _
        // Predicated region
        $region21: #{tpu_custom_call.1} parent=11 // pred_check
          %p756 = pneg %p163
        $region22: #{tpu_custom_call.1} parent=11 // pred_check_branch
          %758 = sbr.rel (%p756) target = $region24
        $region23: #{tpu_custom_call.1} parent=11 // pred_region
          _
        $region24: #{tpu_custom_call.1} parent=11 // pred_fallthru
          _
        // Predicated region
        $region25: #{tpu_custom_call.1} parent=11 // pred_check
          %p759 = pneg %p184
        $region26: #{tpu_custom_call.1} parent=11 // pred_check_branch
          %761 = sbr.rel (%p759) target = $region28
        $region27: #{tpu_custom_call.1} parent=11 // pred_region
          _
        $region28: #{tpu_custom_call.1} parent=11 // pred_fallthru
          _
        // Predicated region
        $region29: #{tpu_custom_call.1} parent=11 // pred_check
          %p762 = pneg %p205
        $region30: #{tpu_custom_call.1} parent=11 // pred_check_branch
          %764 = sbr.rel (%p762) target = $region32
        $region31: #{tpu_custom_call.1} parent=11 // pred_region
          _
        $region32: #{tpu_custom_call.1} parent=11 // pred_fallthru
          _
        // Predicated region
        $region33: #{tpu_custom_call.1} parent=11 // pred_check
          %p765 = pneg %p226
        $region34: #{tpu_custom_call.1} parent=11 // pred_check_branch
          %767 = sbr.rel (%p765) target = $region36
        $region35: #{tpu_custom_call.1} parent=11 // pred_region
          _
        $region36: #{tpu_custom_call.1} parent=11 // pred_fallthru
          _
        // Predicated region
        $region37: #{tpu_custom_call.1} parent=11 // pred_check
          %p768 = pneg %p247
        $region38: #{tpu_custom_call.1} parent=11 // pred_check_branch
          %770 = sbr.rel (%p768) target = $region40
        $region39: #{tpu_custom_call.1} parent=11 // pred_region
          _
        $region40: #{tpu_custom_call.1} parent=11 // pred_fallthru
          _
        // Predicated region
        $region41: #{tpu_custom_call.1} parent=11 // pred_check
          %p771 = pneg %p268
        $region42: #{tpu_custom_call.1} parent=11 // pred_check_branch
          %773 = sbr.rel (%p771) target = $region44
        $region43: #{tpu_custom_call.1} parent=11 // pred_region
          _
        $region44: #{tpu_custom_call.1} parent=11 // pred_fallthru
          _
        // Predicated region
        $region45: #{tpu_custom_call.1} parent=11 // pred_check
          %p774 = pneg %p289
        $region46: #{tpu_custom_call.1} parent=11 // pred_check_branch
          %776 = sbr.rel (%p774) target = $region48
        $region47: #{tpu_custom_call.1} parent=11 // pred_region
          _
        $region48: #{tpu_custom_call.1} parent=11 // pred_fallthru
          _
        // Predicated region
        $region49: #{tpu_custom_call.1} parent=11 // pred_check
          %p777 = pneg %p310
        $region50: #{tpu_custom_call.1} parent=11 // pred_check_branch
          %779 = sbr.rel (%p777) target = $region52
        $region51: #{tpu_custom_call.1} parent=11 // pred_region
          _
        $region52: #{tpu_custom_call.1} parent=11 // pred_fallthru
          _
        // Predicated region
        $region53: #{tpu_custom_call.1} parent=11 // pred_check
          %p780 = pneg %p331
        $region54: #{tpu_custom_call.1} parent=11 // pred_check_branch
          %782 = sbr.rel (%p780) target = $region56
        $region55: #{tpu_custom_call.1} parent=11 // pred_region
          _
        $region56: #{tpu_custom_call.1} parent=11 // pred_fallthru
          _
        // Predicated region
        $region57: #{tpu_custom_call.1} parent=11 // pred_check
          %p783 = pneg %p352
        $region58: #{tpu_custom_call.1} parent=11 // pred_check_branch
          %785 = sbr.rel (%p783) target = $region60
        $region59: #{tpu_custom_call.1} parent=11 // pred_region
          _
        $region60: #{tpu_custom_call.1} parent=11 // pred_fallthru
          _
        // Predicated region
        $region61: #{tpu_custom_call.1} parent=11 // pred_check
          %p786 = pneg %p373
        $region62: #{tpu_custom_call.1} parent=11 // pred_check_branch
          %788 = sbr.rel (%p786) target = $region64
        $region63: #{tpu_custom_call.1} parent=11 // pred_region
          _
        $region64: #{tpu_custom_call.1} parent=11 // pred_fallthru
          _
        // Predicated region
        $region65: #{tpu_custom_call.1} parent=11 // pred_check
          %p789 = pneg %p394
        $region66: #{tpu_custom_call.1} parent=11 // pred_check_branch
          %791 = sbr.rel (%p789) target = $region68
        $region67: #{tpu_custom_call.1} parent=11 // pred_region
          _
        $region68: #{tpu_custom_call.1} parent=11 // pred_fallthru
          _
        // Predicated region
        $region69: #{tpu_custom_call.1} parent=11 // pred_check
          %p792 = pneg %p415
        $region70: #{tpu_custom_call.1} parent=11 // pred_check_branch
          %794 = sbr.rel (%p792) target = $region72
        $region71: #{tpu_custom_call.1} parent=11 // pred_region
          _
        $region72: #{tpu_custom_call.1} parent=11 // pred_fallthru
          _
        // Predicated region
        $region73: #{tpu_custom_call.1} parent=11 // pred_check
          %p795 = pneg %p436
        $region74: #{tpu_custom_call.1} parent=11 // pred_check_branch
          %797 = sbr.rel (%p795) target = $region76
        $region75: #{tpu_custom_call.1} parent=11 // pred_region
          _
        $region76: #{tpu_custom_call.1} parent=11 // pred_fallthru
          _
        // Predicated region
        $region77: #{tpu_custom_call.1} parent=11 // pred_check
          %p798 = pneg %p457
        $region78: #{tpu_custom_call.1} parent=11 // pred_check_branch
          %800 = sbr.rel (%p798) target = $region80
        $region79: #{tpu_custom_call.1} parent=11 // pred_region
          %802 = vsyncadd [#allocation7], 0
          %s803 = sshll.u32 %s35, 4
          %s804 = int_to_ptr.hbm [resolvable:$true] %s803
          %s805 = sshll.u32 [#allocation6], 4
          %s806 = int_to_ptr.vmem [resolvable:$true] %s805
          %811 = dma.hbm_to_vmem [thread:$0]  %s804, 256, %s806, [#allocation7], 128, 128, 8
        $region80: #{tpu_custom_call.1} parent=11 // pred_fallthru
          _
        // Predicated region
        $region81: #{tpu_custom_call.1} parent=11 // pred_check
          %p812 = pneg %p478
        $region82: #{tpu_custom_call.1} parent=11 // pred_check_branch
          %814 = sbr.rel (%p812) target = $region84
        $region83: #{tpu_custom_call.1} parent=11 // pred_region
          _
        $region84: #{tpu_custom_call.1} parent=11 // pred_fallthru
          _
        // Predicated region
        $region85: #{tpu_custom_call.1} parent=11 // pred_check
          %p815 = pneg %p499
        $region86: #{tpu_custom_call.1} parent=11 // pred_check_branch
          %817 = sbr.rel (%p815) target = $region88
        $region87: #{tpu_custom_call.1} parent=11 // pred_region
          _
        $region88: #{tpu_custom_call.1} parent=11 // pred_fallthru
          _
        // Predicated region
        $region89: #{tpu_custom_call.1} parent=11 // pred_check
          %p818 = pneg %p520
        $region90: #{tpu_custom_call.1} parent=11 // pred_check_branch
          %820 = sbr.rel (%p818) target = $region92
        $region91: #{tpu_custom_call.1} parent=11 // pred_region
          _
        $region92: #{tpu_custom_call.1} parent=11 // pred_fallthru
          _
        // Predicated region
        $region93: #{tpu_custom_call.1} parent=11 // pred_check
          %p821 = pneg %p541
        $region94: #{tpu_custom_call.1} parent=11 // pred_check_branch
          %823 = sbr.rel (%p821) target = $region96
        $region95: #{tpu_custom_call.1} parent=11 // pred_region
          _
        $region96: #{tpu_custom_call.1} parent=11 // pred_fallthru
          _
        // Predicated region
        $region97: #{tpu_custom_call.1} parent=11 // pred_check
          %p824 = pneg %p562
        $region98: #{tpu_custom_call.1} parent=11 // pred_check_branch
          %826 = sbr.rel (%p824) target = $region100
        $region99: #{tpu_custom_call.1} parent=11 // pred_region
          _
        $region100: #{tpu_custom_call.1} parent=11 // pred_fallthru
          _
        // Predicated region
        $region101: #{tpu_custom_call.1} parent=11 // pred_check
          %p827 = pneg %p583
        $region102: #{tpu_custom_call.1} parent=11 // pred_check_branch
          %829 = sbr.rel (%p827) target = $region104
        $region103: #{tpu_custom_call.1} parent=11 // pred_region
          _
        $region104: #{tpu_custom_call.1} parent=11 // pred_fallthru
          _
        // Predicated region
        $region105: #{tpu_custom_call.1} parent=11 // pred_check
          %p830 = pneg %p604
        $region106: #{tpu_custom_call.1} parent=11 // pred_check_branch
          %832 = sbr.rel (%p830) target = $region108
        $region107: #{tpu_custom_call.1} parent=11 // pred_region
          _
        $region108: #{tpu_custom_call.1} parent=11 // pred_fallthru
          _
        // Predicated region
        $region109: #{tpu_custom_call.1} parent=11 // pred_check
          %p833 = pneg %p625
        $region110: #{tpu_custom_call.1} parent=11 // pred_check_branch
          %835 = sbr.rel (%p833) target = $region112
        $region111: #{tpu_custom_call.1} parent=11 // pred_region
          _
        $region112: #{tpu_custom_call.1} parent=11 // pred_fallthru
          _
        // Predicated region
        $region113: #{tpu_custom_call.1} parent=11 // pred_check
          %p836 = pneg %p646
        $region114: #{tpu_custom_call.1} parent=11 // pred_check_branch
          %838 = sbr.rel (%p836) target = $region116
        $region115: #{tpu_custom_call.1} parent=11 // pred_region
          _
        $region116: #{tpu_custom_call.1} parent=11 // pred_fallthru
          _
        // Predicated region
        $region117: #{tpu_custom_call.1} parent=11 // pred_check
          %p839 = pneg %p667
        $region118: #{tpu_custom_call.1} parent=11 // pred_check_branch
          %841 = sbr.rel (%p839) target = $region120
        $region119: #{tpu_custom_call.1} parent=11 // pred_region
          _
        $region120: #{tpu_custom_call.1} parent=11 // pred_fallthru
          _
        // Predicated region
        $region121: #{tpu_custom_call.1} parent=11 // pred_check
          %p842 = pneg %p688
        $region122: #{tpu_custom_call.1} parent=11 // pred_check_branch
          %844 = sbr.rel (%p842) target = $region124
        $region123: #{tpu_custom_call.1} parent=11 // pred_region
          %846 = vsyncadd [#allocation7], 0
          %s847 = sshll.u32 %s57, 4
          %s848 = int_to_ptr.hbm [resolvable:$true] %s847
          %s849 = sshll.u32 [#allocation8], 4
          %s850 = int_to_ptr.vmem [resolvable:$true] %s849
          %855 = dma.hbm_to_vmem [thread:$0]  %s848, 256, %s850, [#allocation7], 128, 128, 8
        $region124: #{tpu_custom_call.1} parent=11 // pred_fallthru
          _
        // Predicated region
        $region125: #{tpu_custom_call.1} parent=11 // pred_check
          %p856 = pneg %p709
        $region126: #{tpu_custom_call.1} parent=11 // pred_check_branch
          %858 = sbr.rel (%p856) target = $region128
        $region127: #{tpu_custom_call.1} parent=11 // pred_region
          _
        $region128: #{tpu_custom_call.1} parent=11 // pred_fallthru
          _
      $region12: #{tpu_custom_call.1} parent=5 // pred_fallthru
        _
      %p859 = scmp.lt.s32.totalorder %s74, 2
      // Predicated region
      $region129: #{tpu_custom_call.1} parent=5 // pred_check
        %p860 = pneg %p859
      $region130: #{tpu_custom_call.1} parent=5 // pred_check_branch
        %862 = sbr.rel (%p860) target = $region132
      $region131: #{tpu_custom_call.1} parent=5 // pred_region
        // Predicated region
        $region133: #{tpu_custom_call.1} parent=131 // pred_check
          %p863 = pneg %p94
        $region134: #{tpu_custom_call.1} parent=131 // pred_check_branch
          %865 = sbr.rel (%p863) target = $region136
        $region135: #{tpu_custom_call.1} parent=131 // pred_region
          %s866 = sand.u32 %s84, 1
          %s867 = scalar_lea.sflag [#allocation4], %s866
          %s868 = sand.u32 %s84, 1
          %s869 = smul.addr %s868, 32
          %s870 = scalar_lea.vmem [#allocation3], %s869
          %872 = vsyncadd %s867, 0
          %s873 = smul.addr %s74, 4
          %s874 = smul.addr %s873, 8
          %s875 = scalar_lea.hbm %s1, %s874
          %s876 = sshll.u32 %s875, 4
          %s877 = int_to_ptr.hbm [resolvable:$true] %s876
          %s878 = sshll.u32 %s870, 4
          %s879 = int_to_ptr.vmem [resolvable:$true] %s878
          %884 = dma.hbm_to_vmem [thread:$0]  %s877, 512, %s879, %s867, 256, 256, 16
        $region136: #{tpu_custom_call.1} parent=131 // pred_fallthru
          _
      $region132: #{tpu_custom_call.1} parent=5 // pred_fallthru
        _
      %p885 = scmp.le.s32.totalorder 1, %s74
      %p886 = scmp.lt.s32.totalorder %s74, 3
      %p887 = pnand %p885, %p886
      %p888 = pneg %p887
      // Predicated region
      $region137: #{tpu_custom_call.1} parent=5 // pred_check
        _
      $region138: #{tpu_custom_call.1} parent=5 // pred_check_branch
        %890 = sbr.rel (%p887) target = $region140
      $region139: #{tpu_custom_call.1} parent=5 // pred_region
        %s891 = ssub.s32 %s74, 1
        %s892 = sand.u32 %s87, 1
        %s893 = scalar_lea.sflag [#allocation4], %s892
        %s894 = sand.u32 %s87, 1
        %s895 = smul.addr %s894, 32
        %s896 = scalar_lea.vmem [#allocation3], %s895
        // Predicated region
        $region141: #{tpu_custom_call.1} parent=139 // pred_check
          %p897 = pneg %p100
        $region142: #{tpu_custom_call.1} parent=139 // pred_check_branch
          %899 = sbr.rel (%p897) target = $region144
        $region143: #{tpu_custom_call.1} parent=139 // pred_region
          %901 = dma.done %s893, 512
        $region144: #{tpu_custom_call.1} parent=139 // pred_fallthru
          _
        // Predicated region
        $region145: #{tpu_custom_call.1} parent=139 // pred_check
          %p902 = pneg %p457
        $region146: #{tpu_custom_call.1} parent=139 // pred_check_branch
          %904 = sbr.rel (%p902) target = $region148
        $region147: #{tpu_custom_call.1} parent=139 // pred_region
          %906 = dma.done [#allocation7], 256
        $region148: #{tpu_custom_call.1} parent=139 // pred_fallthru
          _
        // Predicated region
        $region149: #{tpu_custom_call.1} parent=139 // pred_check
          %p907 = pneg %p688
        $region150: #{tpu_custom_call.1} parent=139 // pred_check_branch
          %909 = sbr.rel (%p907) target = $region152
        $region151: #{tpu_custom_call.1} parent=139 // pred_region
          %911 = dma.done [#allocation7], 256
        $region152: #{tpu_custom_call.1} parent=139 // pred_fallthru
          _
        %s912 = sand.u32 %s87, 1
        %s913 = scalar_lea.sflag [#allocation4], %s912
        %s914 = sand.u32 %s87, 1
        %s915 = smul.addr %s914, 32
        %s916 = scalar_lea.vmem [#allocation3], %s915
        %p917 = pneg %p100
        %p918 = pneg %p97
        %p919 = pneg %p121
        %p920 = pneg %p118
        %p921 = pneg %p142
        %p922 = pneg %p139
        %p923 = pneg %p163
        %p924 = pneg %p160
        %p925 = pneg %p184
        %p926 = pneg %p181
        %p927 = pneg %p205
        %p928 = pneg %p202
        %p929 = pneg %p226
        %p930 = pneg %p223
        %p931 = pneg %p247
        %p932 = pneg %p244
        %p933 = pneg %p268
        %p934 = pneg %p265
        %p935 = pneg %p289
        %p936 = pneg %p286
        %p937 = pneg %p310
        %p938 = pneg %p307
        %p939 = pneg %p331
        %p940 = pneg %p328
        %p941 = pneg %p352
        %p942 = pneg %p349
        %p943 = pneg %p373
        %p944 = pneg %p370
        %p945 = pneg %p394
        %p946 = pneg %p391
        %p947 = pneg %p415
        %p948 = pneg %p412
        %p949 = pneg %p436
        %p950 = pneg %p433
        %p951 = pneg %p457
        %p952 = pneg %p454
        %p953 = pneg %p478
        %p954 = pneg %p475
        %p955 = pneg %p499
        %p956 = pneg %p496
        %p957 = pneg %p520
        %p958 = pneg %p517
        %p959 = pneg %p541
        %p960 = pneg %p538
        %p961 = pneg %p562
        %p962 = pneg %p559
        %p963 = pneg %p583
        %p964 = pneg %p580
        %p965 = pneg %p604
        %p966 = pneg %p601
        %p967 = pneg %p625
        %p968 = pneg %p622
        %p969 = pneg %p646
        %p970 = pneg %p643
        %p971 = pneg %p667
        %p972 = pneg %p664
        %p973 = pneg %p688
        %p974 = pneg %p685
        %p975 = pneg %p709
        %p976 = pneg %p706
        %p977 = pneg %p735
        %p978 = pneg %p732
        %s979 = sand.u32 %s722, 1
        %s980 = scalar_lea.sflag [#allocation5], %s979
        %s981 = sand.u32 %s722, 1
        %s982 = smul.addr %s981, 32
        %s983 = scalar_lea.vmem [#allocation9], %s982
        %v984 = vld [vmem:[%s896] sm:$0xff]
        %v985 = vld [vmem:[%s896 + $0x8] sm:$0xff]
        %v986 = vld [vmem:[%s896 + $0x10] sm:$0xff]
        %v987 = vld [vmem:[%s896 + $0x18] sm:$0xff]
        %v988 = vlaneseq
        %v989 = vand.u32 %v988, 127
        %v990 = vadd.s32 %v989, 128
        %v991 = vand.u32 %v989, 15
        %v992 = vand.u32 %v990, 15
        %v993 = vld [vmem:[#allocation8] sm:$0xff]
        %v994 = vld [vmem:[#allocation8 + $0x8] sm:$0xff]
        %v995 = vld [vmem:[%s59] sm:$0xff]
        %v996 = vld [vmem:[%s59 + $0x8] sm:$0xff]
        %998 = vset.pattern.permute.xlu0 0
        %999 = vperm.xlu0 %998, %v995
        %v1000 = vpop.permute.xlu0 %999
        %1003 = vset.pattern.permute.xlu0 0
        %1004 = vperm.xlu0 %1003, %v996
        %v1005 = vpop.permute.xlu0 %1004
        %vm1007 = vcmask 130048
        %v1009 = vsel %vm1007, %v993, 0
        %v1012 = vsel %vm1007, %v994, 0
        %1014 = vmatpush.msra.mxu0 0.0
        %1015 = vmatpush.msra.mxu0 0.0
        %1016 = vmatpush.msra.mxu0 0.0
        %1017 = vmatpush.msra.mxu0 0.0
        %1018 = vmatpush.msra.mxu0 0.0
        %1019 = vmatpush.msra.mxu0 0.0
        %1020 = vmatpush.msra.mxu0 0.0
        %1021 = vmatpush.msra.mxu0 0.0
        %1022 = vmatpush.msra.mxu0 0.0
        %1023 = vmatpush.msra.mxu0 0.0
        %1024 = vmatpush.msra.mxu0 0.0
        %1025 = vmatpush.msra.mxu0 0.0
        %1026 = vmatpush.msra.mxu0 0.0
        %1027 = vmatpush.msra.mxu0 0.0
        %1028 = vmatpush.msra.mxu0 %v986
        %1029 = vmatpush.msra.mxu0 %v984
        %1030 = vmatmul.f32.gmra.mxu0 %v1009
        %v1031 = vpop.f32.mrf.mxu0
        %v1032 = vadd.f32 %v1000, %v1031
        %1033 = vmatmul.f32.gmra.mxu0 %v1012
        %v1034 = vpop.f32.mrf.mxu0
        %v1035 = vadd.f32 %v1005, %v1034
        %1036 = vdwg.mxu0
        %1037 = vmatpush.msra.mxu0 0.0
        %1038 = vmatpush.msra.mxu0 0.0
        %1039 = vmatpush.msra.mxu0 0.0
        %1040 = vmatpush.msra.mxu0 0.0
        %1041 = vmatpush.msra.mxu0 0.0
        %1042 = vmatpush.msra.mxu0 0.0
        %1043 = vmatpush.msra.mxu0 0.0
        %1044 = vmatpush.msra.mxu0 0.0
        %1045 = vmatpush.msra.mxu0 0.0
        %1046 = vmatpush.msra.mxu0 0.0
        %1047 = vmatpush.msra.mxu0 0.0
        %1048 = vmatpush.msra.mxu0 0.0
        %1049 = vmatpush.msra.mxu0 0.0
        %1050 = vmatpush.msra.mxu0 0.0
        %1051 = vmatpush.msra.mxu0 %v987
        %1052 = vmatpush.msra.mxu0 %v985
        %1053 = vmatmul.f32.gmra.mxu0 %v1009
        %v1054 = vpop.f32.mrf.mxu0
        %v1055 = vadd.f32 %v1000, %v1054
        %1056 = vmatmul.f32.gmra.mxu0 %v1012
        %v1057 = vpop.f32.mrf.mxu0
        %v1058 = vadd.f32 %v1005, %v1057
        %1059 = vdwg.mxu0
        %v1060 = vld [vmem:[%s3] sm:$0x3]
        %v1061 = vld [vmem:[%s5] sm:$0x3]
        %1063 = vset.pattern.permute.xlu0 0
        %1064 = vperm.xlu0 %1063, %v1061
        %v1065 = vpop.permute.xlu0 %1064
        %v1068 = vsel %vm1007, %v1060, 0
        %1070 = vmatpush.msra.mxu0 0.0
        %1071 = vmatpush.msra.mxu0 0.0
        %1072 = vmatpush.msra.mxu0 0.0
        %1073 = vmatpush.msra.mxu0 0.0
        %1074 = vmatpush.msra.mxu0 0.0
        %1075 = vmatpush.msra.mxu0 0.0
        %1076 = vmatpush.msra.mxu0 0.0
        %1077 = vmatpush.msra.mxu0 0.0
        %1078 = vmatpush.msra.mxu0 0.0
        %1079 = vmatpush.msra.mxu0 0.0
        %1080 = vmatpush.msra.mxu0 0.0
        %1081 = vmatpush.msra.mxu0 0.0
        %1082 = vmatpush.msra.mxu0 0.0
        %1083 = vmatpush.msra.mxu0 0.0
        %1084 = vmatpush.msra.mxu0 %v986
        %1085 = vmatpush.msra.mxu0 %v984
        %1086 = vmatmul.f32.gmra.mxu0 %v1068
        %v1087 = vpop.f32.mrf.mxu0
        %v1088 = vadd.f32 %v1065, %v1087
        %1089 = vdwg.mxu0
        %1090 = vmatpush.msra.mxu0 0.0
        %1091 = vmatpush.msra.mxu0 0.0
        %1092 = vmatpush.msra.mxu0 0.0
        %1093 = vmatpush.msra.mxu0 0.0
        %1094 = vmatpush.msra.mxu0 0.0
        %1095 = vmatpush.msra.mxu0 0.0
        %1096 = vmatpush.msra.mxu0 0.0
        %1097 = vmatpush.msra.mxu0 0.0
        %1098 = vmatpush.msra.mxu0 0.0
        %1099 = vmatpush.msra.mxu0 0.0
        %1100 = vmatpush.msra.mxu0 0.0
        %1101 = vmatpush.msra.mxu0 0.0
        %1102 = vmatpush.msra.mxu0 0.0
        %1103 = vmatpush.msra.mxu0 0.0
        %1104 = vmatpush.msra.mxu0 %v987
        %1105 = vmatpush.msra.mxu0 %v985
        %1106 = vmatmul.f32.gmra.mxu0 %v1068
        %v1107 = vpop.f32.mrf.mxu0
        %v1108 = vadd.f32 %v1065, %v1107
        %1109 = vdwg.mxu0
        %vm1110 = vcmp.ge.s32.totalorder %v989, 16
        %vm1111 = vcmp.ge.s32.totalorder %v990, 16
        %vm1112 = vcmp.lt.s32.totalorder %v989, 240
        %vm1113 = vcmp.lt.s32.totalorder %v990, 240
        %vm1114 = vcmp.ge.s32.totalorder %v991, 1
        %vm1115 = vcmp.ge.s32.totalorder %v992, 1
        %vm1116 = vcmp.lt.s32.totalorder %v991, 15
        %vm1117 = vcmp.lt.s32.totalorder %v992, 15
        %1119 = vrot.lane.b32.xlu0 %v1108, 17
        %v1120 = vpop.permute.xlu0 %1119
        %1123 = vrot.lane.b32.xlu0 %v1088, 17
        %v1124 = vpop.permute.xlu0 %1123
        %vm1125 = vcmask 138240
        %v1126 = vsel %vm1125, %v1124, %v1120
        %v1129 = vsel %vm1125, %v1120, %v1124
        %vm1130 = vmand %vm1110, %vm1114
        %vm1131 = vmand %vm1111, %vm1115
        %v1132 = vsel %vm1130, 1, 0
        %v1133 = vsel %vm1131, 1, 0
        %vm1134 = vcmp.eq.s32.totalorder %v1132, 1
        %vm1135 = vcmp.eq.s32.totalorder %v1133, 1
        %v1136 = vsel %vm1134, %v1129, 0.0
        %v1137 = vsel %vm1135, %v1126, 0.0
        %1138 = vst [vmem:[#allocation2] sm:$0x3] %v1136
        %1139 = vst [vmem:[#allocation2 + $0x8] sm:$0x3] %v1137
        %1140 = vrot.lane.b32.xlu0 %v1108, 16
        %v1141 = vpop.permute.xlu0 %1140
        %1143 = vrot.lane.b32.xlu0 %v1088, 16
        %v1144 = vpop.permute.xlu0 %1143
        %v1145 = vsel %vm1007, %v1144, %v1141
        %v1148 = vsel %vm1007, %v1141, %v1144
        %v1149 = vsel %vm1110, 1, 0
        %v1150 = vsel %vm1111, 1, 0
        %vm1151 = vcmp.eq.s32.totalorder %v1149, 1
        %vm1152 = vcmp.eq.s32.totalorder %v1150, 1
        %v1153 = vsel %vm1151, %v1148, 0.0
        %v1154 = vsel %vm1152, %v1145, 0.0
        %v1157 = vrot.slane %v1153, 6
        %v1158 = vrot.slane %v1154, 6
        %1161 = vst [vmem:[#allocation2] sm:$0xc] %v1157
        %1162 = vst [vmem:[#allocation2 + $0x8] sm:$0xc] %v1158
        %1163 = vrot.lane.b32.xlu0 %v1108, 15
        %v1164 = vpop.permute.xlu0 %1163
        %1166 = vrot.lane.b32.xlu0 %v1088, 15
        %v1167 = vpop.permute.xlu0 %1166
        %vm1168 = vcmask 121856
        %v1169 = vsel %vm1168, %v1167, %v1164
        %v1172 = vsel %vm1168, %v1164, %v1167
        %vm1173 = vmand %vm1110, %vm1116
        %vm1174 = vmand %vm1111, %vm1117
        %v1175 = vsel %vm1173, 1, 0
        %v1176 = vsel %vm1174, 1, 0
        %vm1177 = vcmp.eq.s32.totalorder %v1175, 1
        %vm1178 = vcmp.eq.s32.totalorder %v1176, 1
        %v1179 = vsel %vm1177, %v1172, 0.0
        %v1180 = vsel %vm1178, %v1169, 0.0
        %v1183 = vrot.slane %v1179, 4
        %v1184 = vrot.slane %v1180, 4
        %1187 = vst [vmem:[#allocation2] sm:$0x30] %v1183
        %1188 = vst [vmem:[#allocation2 + $0x8] sm:$0x30] %v1184
        %1189 = vrot.lane.b32.xlu0 %v1108, 1
        %v1190 = vpop.permute.xlu0 %1189
        %1192 = vrot.lane.b32.xlu0 %v1088, 1
        %v1193 = vpop.permute.xlu0 %1192
        %vm1194 = vcmask 7168
        %v1195 = vsel %vm1194, %v1193, %v1190
        %v1198 = vsel %vm1194, %v1190, %v1193
        %v1199 = vsel %vm1114, 1, 0
        %v1200 = vsel %vm1115, 1, 0
        %vm1201 = vcmp.eq.s32.totalorder %v1199, 1
        %vm1202 = vcmp.eq.s32.totalorder %v1200, 1
        %v1203 = vsel %vm1201, %v1198, 0.0
        %v1204 = vsel %vm1202, %v1195, 0.0
        %v1207 = vrot.slane %v1203, 2
        %v1208 = vrot.slane %v1204, 2
        %1211 = vst [vmem:[#allocation2] sm:$0xc0] %v1207
        %1212 = vst [vmem:[#allocation2 + $0x8] sm:$0xc0] %v1208
        %1213 = vst [vmem:[#allocation2 + $0x10] sm:$0x3] %v1088
        %1214 = vst [vmem:[#allocation2 + $0x18] sm:$0x3] %v1108
        %1215 = vrot.lane.b32.xlu0 %v1088, 127
        %v1216 = vpop.permute.xlu0 %1215
        %1217 = vrot.lane.b32.xlu0 %v1108, 127
        %v1218 = vpop.permute.xlu0 %1217
        %vm1219 = vcmask 1039360
        %v1220 = vsel %vm1219, %v1216, %v1218
        %v1224 = vsel %vm1219, %v1218, %v1216
        %v1225 = vsel %vm1116, 1, 0
        %v1226 = vsel %vm1117, 1, 0
        %vm1227 = vcmp.eq.s32.totalorder %v1225, 1
        %vm1228 = vcmp.eq.s32.totalorder %v1226, 1
        %v1229 = vsel %vm1227, %v1220, 0.0
        %v1230 = vsel %vm1228, %v1224, 0.0
        %v1233 = vrot.slane %v1229, 6
        %v1234 = vrot.slane %v1230, 6
        %1237 = vst [vmem:[#allocation2 + $0x10] sm:$0xc] %v1233
        %1238 = vst [vmem:[#allocation2 + $0x18] sm:$0xc] %v1234
        %1239 = vrot.lane.b32.xlu0 %v1088, 113
        %v1240 = vpop.permute.xlu0 %1239
        %1241 = vrot.lane.b32.xlu0 %v1108, 113
        %v1242 = vpop.permute.xlu0 %1241
        %vm1243 = vcmask 924672
        %v1244 = vsel %vm1243, %v1240, %v1242
        %v1248 = vsel %vm1243, %v1242, %v1240
        %vm1249 = vmand %vm1112, %vm1114
        %vm1250 = vmand %vm1113, %vm1115
        %v1251 = vsel %vm1249, 1, 0
        %v1252 = vsel %vm1250, 1, 0
        %vm1253 = vcmp.eq.s32.totalorder %v1251, 1
        %vm1254 = vcmp.eq.s32.totalorder %v1252, 1
        %v1255 = vsel %vm1253, %v1244, 0.0
        %v1256 = vsel %vm1254, %v1248, 0.0
        %v1259 = vrot.slane %v1255, 4
        %v1260 = vrot.slane %v1256, 4
        %1263 = vst [vmem:[#allocation2 + $0x10] sm:$0x30] %v1259
        %1264 = vst [vmem:[#allocation2 + $0x18] sm:$0x30] %v1260
        %1265 = vrot.lane.b32.xlu0 %v1088, 112
        %v1266 = vpop.permute.xlu0 %1265
        %1267 = vrot.lane.b32.xlu0 %v1108, 112
        %v1268 = vpop.permute.xlu0 %1267
        %vm1269 = vcmask 916480
        %v1270 = vsel %vm1269, %v1266, %v1268
        %v1274 = vsel %vm1269, %v1268, %v1266
        %v1275 = vsel %vm1112, 1, 0
        %v1276 = vsel %vm1113, 1, 0
        %vm1277 = vcmp.eq.s32.totalorder %v1275, 1
        %vm1278 = vcmp.eq.s32.totalorder %v1276, 1
        %v1279 = vsel %vm1277, %v1270, 0.0
        %v1280 = vsel %vm1278, %v1274, 0.0
        %v1283 = vrot.slane %v1279, 2
        %v1284 = vrot.slane %v1280, 2
        %1287 = vst [vmem:[#allocation2 + $0x10] sm:$0xc0] %v1283
        %1288 = vst [vmem:[#allocation2 + $0x18] sm:$0xc0] %v1284
        %1289 = vrot.lane.b32.xlu0 %v1088, 111
        %v1290 = vpop.permute.xlu0 %1289
        %1291 = vrot.lane.b32.xlu0 %v1108, 111
        %v1292 = vpop.permute.xlu0 %1291
        %vm1293 = vcmask 908288
        %v1294 = vsel %vm1293, %v1290, %v1292
        %v1298 = vsel %vm1293, %v1292, %v1290
        %vm1299 = vmand %vm1112, %vm1116
        %vm1300 = vmand %vm1113, %vm1117
        %v1301 = vsel %vm1299, 1, 0
        %v1302 = vsel %vm1300, 1, 0
        %vm1303 = vcmp.eq.s32.totalorder %v1301, 1
        %vm1304 = vcmp.eq.s32.totalorder %v1302, 1
        %v1305 = vsel %vm1303, %v1294, 0.0
        %v1306 = vsel %vm1304, %v1298, 0.0
        %1307 = vst [vmem:[#allocation2 + $0x20] sm:$0x3] %v1305
        %1308 = vst [vmem:[#allocation2 + $0x28] sm:$0x3] %v1306
        %v1309 = vld [vmem:[%s7] sm:$0xf]
        %v1310 = vld [vmem:[#allocation2] sm:$0xff]
        %v1311 = vld [vmem:[#allocation2 + $0x8] sm:$0xff]
        %v1312 = vld [vmem:[#allocation2 + $0x10] sm:$0xff]
        %v1313 = vld [vmem:[#allocation2 + $0x18] sm:$0xff]
        %v1314 = vld [vmem:[#allocation2 + $0x20] sm:$0x3]
        %v1315 = vld [vmem:[#allocation2 + $0x28] sm:$0x3]
        %v1316 = vld [vmem:[%s9] sm:$0xf]
        %1318 = vset.pattern.permute.xlu0 0
        %1319 = vperm.xlu0 %1318, %v1316
        %v1320 = vpop.permute.xlu0 %1319
        %vm1322 = vcmask 146432
        %v1324 = vsel %vm1322, %v1309, 0
        %vm1326 = vcmask 1041408
        %v1328 = vsel %vm1326, %v1314, 0
        %v1331 = vsel %vm1326, %v1315, 0
        %1333 = vmatpush.msra.mxu0 0.0
        %1334 = vmatpush.msra.mxu0 0.0
        %1335 = vmatpush.msra.mxu0 0.0
        %1336 = vmatpush.msra.mxu0 0.0
        %1337 = vmatpush.msra.mxu0 0.0
        %1338 = vmatpush.msra.mxu0 0.0
        %1339 = vmatpush.msra.mxu0 0.0
        %1340 = vmatpush.msra.mxu0 0.0
        %1341 = vmatpush.msra.mxu0 0.0
        %1342 = vmatpush.msra.mxu0 0.0
        %1343 = vmatpush.msra.mxu0 0.0
        %1344 = vmatpush.msra.mxu0 0.0
        %1345 = vmatpush.msra.mxu0 0.0
        %1346 = vmatpush.msra.mxu0 %v1328
        %1347 = vmatpush.msra.mxu0 %v1312
        %1348 = vmatpush.msra.mxu0 %v1310
        %1349 = vmatmul.f32.gmra.mxu0 %v1324
        %v1350 = vpop.f32.mrf.mxu0
        %v1351 = vadd.f32 %v1320, %v1350
        %1352 = vdwg.mxu0
        %1353 = vmatpush.msra.mxu0 0.0
        %1354 = vmatpush.msra.mxu0 0.0
        %1355 = vmatpush.msra.mxu0 0.0
        %1356 = vmatpush.msra.mxu0 0.0
        %1357 = vmatpush.msra.mxu0 0.0
        %1358 = vmatpush.msra.mxu0 0.0
        %1359 = vmatpush.msra.mxu0 0.0
        %1360 = vmatpush.msra.mxu0 0.0
        %1361 = vmatpush.msra.mxu0 0.0
        %1362 = vmatpush.msra.mxu0 0.0
        %1363 = vmatpush.msra.mxu0 0.0
        %1364 = vmatpush.msra.mxu0 0.0
        %1365 = vmatpush.msra.mxu0 0.0
        %1366 = vmatpush.msra.mxu0 %v1331
        %1367 = vmatpush.msra.mxu0 %v1313
        %1368 = vmatpush.msra.mxu0 %v1311
        %1369 = vmatmul.f32.gmra.mxu0 %v1324
        %v1370 = vpop.f32.mrf.mxu0
        %v1371 = vadd.f32 %v1320, %v1370
        %1372 = vdwg.mxu0
        %v1373 = vmax.f32 %v1351, 0.0
        %v1374 = vmax.f32 %v1371, 0.0
        %vm1375 = vcmp.ge.s32.totalorder %v989, 32
        %vm1376 = vcmp.ge.s32.totalorder %v990, 32
        %vm1377 = vcmp.lt.s32.totalorder %v989, 224
        %vm1378 = vcmp.lt.s32.totalorder %v990, 224
        %vm1379 = vcmp.ge.s32.totalorder %v991, 2
        %vm1380 = vcmp.ge.s32.totalorder %v992, 2
        %vm1381 = vcmp.lt.s32.totalorder %v991, 14
        %vm1382 = vcmp.lt.s32.totalorder %v992, 14
        %1384 = vrot.lane.b32.xlu0 %v1374, 34
        %v1385 = vpop.permute.xlu0 %1384
        %1388 = vrot.lane.b32.xlu0 %v1373, 34
        %v1389 = vpop.permute.xlu0 %1388
        %vm1390 = vcmask 277504
        %v1391 = vsel %vm1390, %v1389, %v1385
        %v1394 = vsel %vm1390, %v1385, %v1389
        %vm1395 = vmand %vm1375, %vm1379
        %vm1396 = vmand %vm1376, %vm1380
        %v1397 = vsel %vm1395, 1, 0
        %v1398 = vsel %vm1396, 1, 0
        %vm1399 = vcmp.eq.s32.totalorder %v1397, 1
        %vm1400 = vcmp.eq.s32.totalorder %v1398, 1
        %v1401 = vsel %vm1399, %v1394, 0.0
        %v1402 = vsel %vm1400, %v1391, 0.0
        %1403 = vst [vmem:[#allocation2] sm:$0xf] %v1401
        %1404 = vst [vmem:[#allocation2 + $0x8] sm:$0xf] %v1402
        %1405 = vrot.lane.b32.xlu0 %v1374, 32
        %v1406 = vpop.permute.xlu0 %1405
        %1408 = vrot.lane.b32.xlu0 %v1373, 32
        %v1409 = vpop.permute.xlu0 %1408
        %vm1410 = vcmask 261120
        %v1411 = vsel %vm1410, %v1409, %v1406
        %v1414 = vsel %vm1410, %v1406, %v1409
        %v1415 = vsel %vm1375, 1, 0
        %v1416 = vsel %vm1376, 1, 0
        %vm1417 = vcmp.eq.s32.totalorder %v1415, 1
        %vm1418 = vcmp.eq.s32.totalorder %v1416, 1
        %v1419 = vsel %vm1417, %v1414, 0.0
        %v1420 = vsel %vm1418, %v1411, 0.0
        %v1423 = vrot.slane %v1419, 4
        %v1424 = vrot.slane %v1420, 4
        %1427 = vst [vmem:[#allocation2] sm:$0xf0] %v1423
        %1428 = vst [vmem:[#allocation2 + $0x8] sm:$0xf0] %v1424
        %1429 = vrot.lane.b32.xlu0 %v1374, 30
        %v1430 = vpop.permute.xlu0 %1429
        %1432 = vrot.lane.b32.xlu0 %v1373, 30
        %v1433 = vpop.permute.xlu0 %1432
        %vm1434 = vcmask 244736
        %v1435 = vsel %vm1434, %v1433, %v1430
        %v1438 = vsel %vm1434, %v1430, %v1433
        %vm1439 = vmand %vm1375, %vm1381
        %vm1440 = vmand %vm1376, %vm1382
        %v1441 = vsel %vm1439, 1, 0
        %v1442 = vsel %vm1440, 1, 0
        %vm1443 = vcmp.eq.s32.totalorder %v1441, 1
        %vm1444 = vcmp.eq.s32.totalorder %v1442, 1
        %v1445 = vsel %vm1443, %v1438, 0.0
        %v1446 = vsel %vm1444, %v1435, 0.0
        %1447 = vst [vmem:[#allocation2 + $0x10] sm:$0xf] %v1445
        %1448 = vst [vmem:[#allocation2 + $0x18] sm:$0xf] %v1446
        %1449 = vrot.lane.b32.xlu0 %v1374, 2
        %v1450 = vpop.permute.xlu0 %1449
        %1452 = vrot.lane.b32.xlu0 %v1373, 2
        %v1453 = vpop.permute.xlu0 %1452
        %vm1454 = vcmask 15360
        %v1455 = vsel %vm1454, %v1453, %v1450
        %v1458 = vsel %vm1454, %v1450, %v1453
        %v1459 = vsel %vm1379, 1, 0
        %v1460 = vsel %vm1380, 1, 0
        %vm1461 = vcmp.eq.s32.totalorder %v1459, 1
        %vm1462 = vcmp.eq.s32.totalorder %v1460, 1
        %v1463 = vsel %vm1461, %v1458, 0.0
        %v1464 = vsel %vm1462, %v1455, 0.0
        %v1467 = vrot.slane %v1463, 4
        %v1468 = vrot.slane %v1464, 4
        %1471 = vst [vmem:[#allocation2 + $0x10] sm:$0xf0] %v1467
        %1472 = vst [vmem:[#allocation2 + $0x18] sm:$0xf0] %v1468
        %1473 = vst [vmem:[#allocation2 + $0x20] sm:$0xf] %v1373
        %1474 = vst [vmem:[#allocation2 + $0x28] sm:$0xf] %v1374
        %1475 = vrot.lane.b32.xlu0 %v1373, 126
        %v1476 = vpop.permute.xlu0 %1475
        %1477 = vrot.lane.b32.xlu0 %v1374, 126
        %v1478 = vpop.permute.xlu0 %1477
        %vm1479 = vcmask 1031168
        %v1480 = vsel %vm1479, %v1476, %v1478
        %v1484 = vsel %vm1479, %v1478, %v1476
        %v1485 = vsel %vm1381, 1, 0
        %v1486 = vsel %vm1382, 1, 0
        %vm1487 = vcmp.eq.s32.totalorder %v1485, 1
        %vm1488 = vcmp.eq.s32.totalorder %v1486, 1
        %v1489 = vsel %vm1487, %v1480, 0.0
        %v1490 = vsel %vm1488, %v1484, 0.0
        %v1493 = vrot.slane %v1489, 4
        %v1494 = vrot.slane %v1490, 4
        %1497 = vst [vmem:[#allocation2 + $0x20] sm:$0xf0] %v1493
        %1498 = vst [vmem:[#allocation2 + $0x28] sm:$0xf0] %v1494
        %1499 = vrot.lane.b32.xlu0 %v1373, 98
        %v1500 = vpop.permute.xlu0 %1499
        %1501 = vrot.lane.b32.xlu0 %v1374, 98
        %v1502 = vpop.permute.xlu0 %1501
        %vm1503 = vcmask 801792
        %v1504 = vsel %vm1503, %v1500, %v1502
        %v1508 = vsel %vm1503, %v1502, %v1500
        %vm1509 = vmand %vm1377, %vm1379
        %vm1510 = vmand %vm1378, %vm1380
        %v1511 = vsel %vm1509, 1, 0
        %v1512 = vsel %vm1510, 1, 0
        %vm1513 = vcmp.eq.s32.totalorder %v1511, 1
        %vm1514 = vcmp.eq.s32.totalorder %v1512, 1
        %v1515 = vsel %vm1513, %v1504, 0.0
        %v1516 = vsel %vm1514, %v1508, 0.0
        %1517 = vst [vmem:[#allocation2 + $0x30] sm:$0xf] %v1515
        %1518 = vst [vmem:[#allocation2 + $0x38] sm:$0xf] %v1516
        %1519 = vrot.lane.b32.xlu0 %v1373, 96
        %v1520 = vpop.permute.xlu0 %1519
        %1521 = vrot.lane.b32.xlu0 %v1374, 96
        %v1522 = vpop.permute.xlu0 %1521
        %vm1523 = vcmask 785408
        %v1524 = vsel %vm1523, %v1520, %v1522
        %v1528 = vsel %vm1523, %v1522, %v1520
        %v1529 = vsel %vm1377, 1, 0
        %v1530 = vsel %vm1378, 1, 0
        %vm1531 = vcmp.eq.s32.totalorder %v1529, 1
        %vm1532 = vcmp.eq.s32.totalorder %v1530, 1
        %v1533 = vsel %vm1531, %v1524, 0.0
        %v1534 = vsel %vm1532, %v1528, 0.0
        %v1537 = vrot.slane %v1533, 4
        %v1538 = vrot.slane %v1534, 4
        %1541 = vst [vmem:[#allocation2 + $0x30] sm:$0xf0] %v1537
        %1542 = vst [vmem:[#allocation2 + $0x38] sm:$0xf0] %v1538
        %1543 = vrot.lane.b32.xlu0 %v1373, 94
        %v1544 = vpop.permute.xlu0 %1543
        %1545 = vrot.lane.b32.xlu0 %v1374, 94
        %v1546 = vpop.permute.xlu0 %1545
        %vm1547 = vcmask 769024
        %v1548 = vsel %vm1547, %v1544, %v1546
        %v1552 = vsel %vm1547, %v1546, %v1544
        %vm1553 = vmand %vm1377, %vm1381
        %vm1554 = vmand %vm1378, %vm1382
        %v1555 = vsel %vm1553, 1, 0
        %v1556 = vsel %vm1554, 1, 0
        %vm1557 = vcmp.eq.s32.totalorder %v1555, 1
        %vm1558 = vcmp.eq.s32.totalorder %v1556, 1
        %v1559 = vsel %vm1557, %v1548, 0.0
        %v1560 = vsel %vm1558, %v1552, 0.0
        %1561 = vst [vmem:[#allocation2 + $0x40] sm:$0xf] %v1559
        %1562 = vst [vmem:[#allocation2 + $0x48] sm:$0xf] %v1560
        %v1563 = vld [vmem:[%s11] sm:$0xff]
        %v1564 = vld [vmem:[%s11 + $0x8] sm:$0xff]
        %v1565 = vld [vmem:[#allocation2] sm:$0xff]
        %v1566 = vld [vmem:[#allocation2 + $0x8] sm:$0xff]
        %v1567 = vld [vmem:[#allocation2 + $0x10] sm:$0xff]
        %v1568 = vld [vmem:[#allocation2 + $0x18] sm:$0xff]
        %v1569 = vld [vmem:[#allocation2 + $0x20] sm:$0xff]
        %v1570 = vld [vmem:[#allocation2 + $0x28] sm:$0xff]
        %v1571 = vld [vmem:[#allocation2 + $0x30] sm:$0xff]
        %v1572 = vld [vmem:[#allocation2 + $0x38] sm:$0xff]
        %v1573 = vld [vmem:[#allocation2 + $0x40] sm:$0xf]
        %v1574 = vld [vmem:[#allocation2 + $0x48] sm:$0xf]
        %vm1575 = vcmask 293888
        %v1577 = vsel %vm1575, %v1563, 0
        %v1580 = vsel %vm1575, %v1564, 0
        %vm1582 = vcmask 1043456
        %v1584 = vsel %vm1582, %v1573, 0
        %v1587 = vsel %vm1582, %v1574, 0
        %1589 = vmatpush.msra.mxu0 0.0
        %1590 = vmatpush.msra.mxu0 0.0
        %1591 = vmatpush.msra.mxu0 0.0
        %1592 = vmatpush.msra.mxu0 0.0
        %1593 = vmatpush.msra.mxu0 0.0
        %1594 = vmatpush.msra.mxu0 0.0
        %1595 = vmatpush.msra.mxu0 0.0
        %1596 = vmatpush.msra.mxu0 0.0
        %1597 = vmatpush.msra.mxu0 0.0
        %1598 = vmatpush.msra.mxu0 0.0
        %1599 = vmatpush.msra.mxu0 0.0
        %1600 = vmatpush.msra.mxu0 %v1584
        %1601 = vmatpush.msra.mxu0 %v1571
        %1602 = vmatpush.msra.mxu0 %v1569
        %1603 = vmatpush.msra.mxu0 %v1567
        %1604 = vmatpush.msra.mxu0 %v1565
        %1605 = vmatmul.f32.gmra.mxu0 %v1577
        %v1606 = vpop.f32.mrf.mxu0
        %v1607 = vadd.f32 0.0, %v1606
        %1608 = vmatmul.f32.gmra.mxu0 %v1580
        %v1609 = vpop.f32.mrf.mxu0
        %v1610 = vadd.f32 0.0, %v1609
        %1611 = vdwg.mxu0
        %1612 = vmatpush.msra.mxu0 0.0
        %1613 = vmatpush.msra.mxu0 0.0
        %1614 = vmatpush.msra.mxu0 0.0
        %1615 = vmatpush.msra.mxu0 0.0
        %1616 = vmatpush.msra.mxu0 0.0
        %1617 = vmatpush.msra.mxu0 0.0
        %1618 = vmatpush.msra.mxu0 0.0
        %1619 = vmatpush.msra.mxu0 0.0
        %1620 = vmatpush.msra.mxu0 0.0
        %1621 = vmatpush.msra.mxu0 0.0
        %1622 = vmatpush.msra.mxu0 0.0
        %1623 = vmatpush.msra.mxu0 %v1587
        %1624 = vmatpush.msra.mxu0 %v1572
        %1625 = vmatpush.msra.mxu0 %v1570
        %1626 = vmatpush.msra.mxu0 %v1568
        %1627 = vmatpush.msra.mxu0 %v1566
        %1628 = vmatmul.f32.gmra.mxu0 %v1577
        %v1629 = vpop.f32.mrf.mxu0
        %v1630 = vadd.f32 0.0, %v1629
        %1631 = vmatmul.f32.gmra.mxu0 %v1580
        %v1632 = vpop.f32.mrf.mxu0
        %v1633 = vadd.f32 0.0, %v1632
        %1634 = vdwg.mxu0
        %v1635 = vadd.f32 %v1032, %v1607
        %v1636 = vadd.f32 %v1055, %v1630
        %v1637 = vadd.f32 %v1035, %v1610
        %v1638 = vadd.f32 %v1058, %v1633
        %v1639 = vld [vmem:[%s13] sm:$0x3]
        %v1640 = vld [vmem:[%s15] sm:$0x3]
        %1642 = vset.pattern.permute.xlu0 0
        %1643 = vperm.xlu0 %1642, %v1640
        %v1644 = vpop.permute.xlu0 %1643
        %v1647 = vsel %vm1007, %v1639, 0
        %1649 = vmatpush.msra.mxu0 0.0
        %1650 = vmatpush.msra.mxu0 0.0
        %1651 = vmatpush.msra.mxu0 0.0
        %1652 = vmatpush.msra.mxu0 0.0
        %1653 = vmatpush.msra.mxu0 0.0
        %1654 = vmatpush.msra.mxu0 0.0
        %1655 = vmatpush.msra.mxu0 0.0
        %1656 = vmatpush.msra.mxu0 0.0
        %1657 = vmatpush.msra.mxu0 0.0
        %1658 = vmatpush.msra.mxu0 0.0
        %1659 = vmatpush.msra.mxu0 0.0
        %1660 = vmatpush.msra.mxu0 0.0
        %1661 = vmatpush.msra.mxu0 0.0
        %1662 = vmatpush.msra.mxu0 0.0
        %1663 = vmatpush.msra.mxu0 %v986
        %1664 = vmatpush.msra.mxu0 %v984
        %1665 = vmatmul.f32.gmra.mxu0 %v1647
        %v1666 = vpop.f32.mrf.mxu0
        %v1667 = vadd.f32 %v1644, %v1666
        %1668 = vdwg.mxu0
        %1669 = vmatpush.msra.mxu0 0.0
        %1670 = vmatpush.msra.mxu0 0.0
        %1671 = vmatpush.msra.mxu0 0.0
        %1672 = vmatpush.msra.mxu0 0.0
        %1673 = vmatpush.msra.mxu0 0.0
        %1674 = vmatpush.msra.mxu0 0.0
        %1675 = vmatpush.msra.mxu0 0.0
        %1676 = vmatpush.msra.mxu0 0.0
        %1677 = vmatpush.msra.mxu0 0.0
        %1678 = vmatpush.msra.mxu0 0.0
        %1679 = vmatpush.msra.mxu0 0.0
        %1680 = vmatpush.msra.mxu0 0.0
        %1681 = vmatpush.msra.mxu0 0.0
        %1682 = vmatpush.msra.mxu0 0.0
        %1683 = vmatpush.msra.mxu0 %v987
        %1684 = vmatpush.msra.mxu0 %v985
        %1685 = vmatmul.f32.gmra.mxu0 %v1647
        %v1686 = vpop.f32.mrf.mxu0
        %v1687 = vadd.f32 %v1644, %v1686
        %1688 = vdwg.mxu0
        %1690 = vrot.lane.b32.xlu0 %v1687, 17
        %v1691 = vpop.permute.xlu0 %1690
        %1694 = vrot.lane.b32.xlu0 %v1667, 17
        %v1695 = vpop.permute.xlu0 %1694
        %v1696 = vsel %vm1125, %v1695, %v1691
        %v1699 = vsel %vm1125, %v1691, %v1695
        %v1700 = vsel %vm1134, %v1699, 0.0
        %v1701 = vsel %vm1135, %v1696, 0.0
        %1702 = vst [vmem:[#allocation2] sm:$0x3] %v1700
        %1703 = vst [vmem:[#allocation2 + $0x8] sm:$0x3] %v1701
        %1704 = vrot.lane.b32.xlu0 %v1687, 16
        %v1705 = vpop.permute.xlu0 %1704
        %1707 = vrot.lane.b32.xlu0 %v1667, 16
        %v1708 = vpop.permute.xlu0 %1707
        %v1709 = vsel %vm1007, %v1708, %v1705
        %v1712 = vsel %vm1007, %v1705, %v1708
        %v1713 = vsel %vm1151, %v1712, 0.0
        %v1714 = vsel %vm1152, %v1709, 0.0
        %v1717 = vrot.slane %v1713, 6
        %v1718 = vrot.slane %v1714, 6
        %1721 = vst [vmem:[#allocation2] sm:$0xc] %v1717
        %1722 = vst [vmem:[#allocation2 + $0x8] sm:$0xc] %v1718
        %1723 = vrot.lane.b32.xlu0 %v1687, 15
        %v1724 = vpop.permute.xlu0 %1723
        %1726 = vrot.lane.b32.xlu0 %v1667, 15
        %v1727 = vpop.permute.xlu0 %1726
        %v1728 = vsel %vm1168, %v1727, %v1724
        %v1731 = vsel %vm1168, %v1724, %v1727
        %v1732 = vsel %vm1177, %v1731, 0.0
        %v1733 = vsel %vm1178, %v1728, 0.0
        %v1736 = vrot.slane %v1732, 4
        %v1737 = vrot.slane %v1733, 4
        %1740 = vst [vmem:[#allocation2] sm:$0x30] %v1736
        %1741 = vst [vmem:[#allocation2 + $0x8] sm:$0x30] %v1737
        %1742 = vrot.lane.b32.xlu0 %v1687, 1
        %v1743 = vpop.permute.xlu0 %1742
        %1745 = vrot.lane.b32.xlu0 %v1667, 1
        %v1746 = vpop.permute.xlu0 %1745
        %v1747 = vsel %vm1194, %v1746, %v1743
        %v1750 = vsel %vm1194, %v1743, %v1746
        %v1751 = vsel %vm1201, %v1750, 0.0
        %v1752 = vsel %vm1202, %v1747, 0.0
        %v1755 = vrot.slane %v1751, 2
        %v1756 = vrot.slane %v1752, 2
        %1759 = vst [vmem:[#allocation2] sm:$0xc0] %v1755
        %1760 = vst [vmem:[#allocation2 + $0x8] sm:$0xc0] %v1756
        %1761 = vst [vmem:[#allocation2 + $0x10] sm:$0x3] %v1667
        %1762 = vst [vmem:[#allocation2 + $0x18] sm:$0x3] %v1687
        %1763 = vrot.lane.b32.xlu0 %v1667, 127
        %v1764 = vpop.permute.xlu0 %1763
        %1765 = vrot.lane.b32.xlu0 %v1687, 127
        %v1766 = vpop.permute.xlu0 %1765
        %v1767 = vsel %vm1219, %v1764, %v1766
        %v1771 = vsel %vm1219, %v1766, %v1764
        %v1772 = vsel %vm1227, %v1767, 0.0
        %v1773 = vsel %vm1228, %v1771, 0.0
        %v1776 = vrot.slane %v1772, 6
        %v1777 = vrot.slane %v1773, 6
        %1780 = vst [vmem:[#allocation2 + $0x10] sm:$0xc] %v1776
        %1781 = vst [vmem:[#allocation2 + $0x18] sm:$0xc] %v1777
        %1782 = vrot.lane.b32.xlu0 %v1667, 113
        %v1783 = vpop.permute.xlu0 %1782
        %1784 = vrot.lane.b32.xlu0 %v1687, 113
        %v1785 = vpop.permute.xlu0 %1784
        %v1786 = vsel %vm1243, %v1783, %v1785
        %v1790 = vsel %vm1243, %v1785, %v1783
        %v1791 = vsel %vm1253, %v1786, 0.0
        %v1792 = vsel %vm1254, %v1790, 0.0
        %v1795 = vrot.slane %v1791, 4
        %v1796 = vrot.slane %v1792, 4
        %1799 = vst [vmem:[#allocation2 + $0x10] sm:$0x30] %v1795
        %1800 = vst [vmem:[#allocation2 + $0x18] sm:$0x30] %v1796
        %1801 = vrot.lane.b32.xlu0 %v1667, 112
        %v1802 = vpop.permute.xlu0 %1801
        %1803 = vrot.lane.b32.xlu0 %v1687, 112
        %v1804 = vpop.permute.xlu0 %1803
        %v1805 = vsel %vm1269, %v1802, %v1804
        %v1809 = vsel %vm1269, %v1804, %v1802
        %v1810 = vsel %vm1277, %v1805, 0.0
        %v1811 = vsel %vm1278, %v1809, 0.0
        %v1814 = vrot.slane %v1810, 2
        %v1815 = vrot.slane %v1811, 2
        %1818 = vst [vmem:[#allocation2 + $0x10] sm:$0xc0] %v1814
        %1819 = vst [vmem:[#allocation2 + $0x18] sm:$0xc0] %v1815
        %1820 = vrot.lane.b32.xlu0 %v1667, 111
        %v1821 = vpop.permute.xlu0 %1820
        %1822 = vrot.lane.b32.xlu0 %v1687, 111
        %v1823 = vpop.permute.xlu0 %1822
        %v1824 = vsel %vm1293, %v1821, %v1823
        %v1828 = vsel %vm1293, %v1823, %v1821
        %v1829 = vsel %vm1303, %v1824, 0.0
        %v1830 = vsel %vm1304, %v1828, 0.0
        %1831 = vst [vmem:[#allocation2 + $0x20] sm:$0x3] %v1829
        %1832 = vst [vmem:[#allocation2 + $0x28] sm:$0x3] %v1830
        %v1833 = vld [vmem:[%s17] sm:$0xf]
        %v1834 = vld [vmem:[#allocation2] sm:$0xff]
        %v1835 = vld [vmem:[#allocation2 + $0x8] sm:$0xff]
        %v1836 = vld [vmem:[#allocation2 + $0x10] sm:$0xff]
        %v1837 = vld [vmem:[#allocation2 + $0x18] sm:$0xff]
        %v1838 = vld [vmem:[#allocation2 + $0x20] sm:$0x3]
        %v1839 = vld [vmem:[#allocation2 + $0x28] sm:$0x3]
        %v1840 = vld [vmem:[%s19] sm:$0xf]
        %1842 = vset.pattern.permute.xlu0 0
        %1843 = vperm.xlu0 %1842, %v1840
        %v1844 = vpop.permute.xlu0 %1843
        %v1847 = vsel %vm1322, %v1833, 0
        %v1850 = vsel %vm1326, %v1838, 0
        %v1853 = vsel %vm1326, %v1839, 0
        %1855 = vmatpush.msra.mxu0 0.0
        %1856 = vmatpush.msra.mxu0 0.0
        %1857 = vmatpush.msra.mxu0 0.0
        %1858 = vmatpush.msra.mxu0 0.0
        %1859 = vmatpush.msra.mxu0 0.0
        %1860 = vmatpush.msra.mxu0 0.0
        %1861 = vmatpush.msra.mxu0 0.0
        %1862 = vmatpush.msra.mxu0 0.0
        %1863 = vmatpush.msra.mxu0 0.0
        %1864 = vmatpush.msra.mxu0 0.0
        %1865 = vmatpush.msra.mxu0 0.0
        %1866 = vmatpush.msra.mxu0 0.0
        %1867 = vmatpush.msra.mxu0 0.0
        %1868 = vmatpush.msra.mxu0 %v1850
        %1869 = vmatpush.msra.mxu0 %v1836
        %1870 = vmatpush.msra.mxu0 %v1834
        %1871 = vmatmul.f32.gmra.mxu0 %v1847
        %v1872 = vpop.f32.mrf.mxu0
        %v1873 = vadd.f32 %v1844, %v1872
        %1874 = vdwg.mxu0
        %1875 = vmatpush.msra.mxu0 0.0
        %1876 = vmatpush.msra.mxu0 0.0
        %1877 = vmatpush.msra.mxu0 0.0
        %1878 = vmatpush.msra.mxu0 0.0
        %1879 = vmatpush.msra.mxu0 0.0
        %1880 = vmatpush.msra.mxu0 0.0
        %1881 = vmatpush.msra.mxu0 0.0
        %1882 = vmatpush.msra.mxu0 0.0
        %1883 = vmatpush.msra.mxu0 0.0
        %1884 = vmatpush.msra.mxu0 0.0
        %1885 = vmatpush.msra.mxu0 0.0
        %1886 = vmatpush.msra.mxu0 0.0
        %1887 = vmatpush.msra.mxu0 0.0
        %1888 = vmatpush.msra.mxu0 %v1853
        %1889 = vmatpush.msra.mxu0 %v1837
        %1890 = vmatpush.msra.mxu0 %v1835
        %1891 = vmatmul.f32.gmra.mxu0 %v1847
        %v1892 = vpop.f32.mrf.mxu0
        %v1893 = vadd.f32 %v1844, %v1892
        %1894 = vdwg.mxu0
        %v1895 = vmax.f32 %v1873, 0.0
        %v1896 = vmax.f32 %v1893, 0.0
        %vm1897 = vcmp.ge.s32.totalorder %v989, 48
        %vm1898 = vcmp.ge.s32.totalorder %v990, 48
        %vm1899 = vcmp.lt.s32.totalorder %v989, 208
        %vm1900 = vcmp.lt.s32.totalorder %v990, 208
        %vm1901 = vcmp.ge.s32.totalorder %v991, 3
        %vm1902 = vcmp.ge.s32.totalorder %v992, 3
        %vm1903 = vcmp.lt.s32.totalorder %v991, 13
        %vm1904 = vcmp.lt.s32.totalorder %v992, 13
        %1906 = vrot.lane.b32.xlu0 %v1896, 51
        %v1907 = vpop.permute.xlu0 %1906
        %1910 = vrot.lane.b32.xlu0 %v1895, 51
        %v1911 = vpop.permute.xlu0 %1910
        %vm1912 = vcmask 416768
        %v1913 = vsel %vm1912, %v1911, %v1907
        %v1916 = vsel %vm1912, %v1907, %v1911
        %vm1917 = vmand %vm1897, %vm1901
        %vm1918 = vmand %vm1898, %vm1902
        %v1919 = vsel %vm1917, 1, 0
        %v1920 = vsel %vm1918, 1, 0
        %vm1921 = vcmp.eq.s32.totalorder %v1919, 1
        %vm1922 = vcmp.eq.s32.totalorder %v1920, 1
        %v1923 = vsel %vm1921, %v1916, 0.0
        %v1924 = vsel %vm1922, %v1913, 0.0
        %1925 = vst [vmem:[#allocation2] sm:$0xf] %v1923
        %1926 = vst [vmem:[#allocation2 + $0x8] sm:$0xf] %v1924
        %1927 = vrot.lane.b32.xlu0 %v1896, 48
        %v1928 = vpop.permute.xlu0 %1927
        %1930 = vrot.lane.b32.xlu0 %v1895, 48
        %v1931 = vpop.permute.xlu0 %1930
        %vm1932 = vcmask 392192
        %v1933 = vsel %vm1932, %v1931, %v1928
        %v1936 = vsel %vm1932, %v1928, %v1931
        %v1937 = vsel %vm1897, 1, 0
        %v1938 = vsel %vm1898, 1, 0
        %vm1939 = vcmp.eq.s32.totalorder %v1937, 1
        %vm1940 = vcmp.eq.s32.totalorder %v1938, 1
        %v1941 = vsel %vm1939, %v1936, 0.0
        %v1942 = vsel %vm1940, %v1933, 0.0
        %v1945 = vrot.slane %v1941, 4
        %v1946 = vrot.slane %v1942, 4
        %1949 = vst [vmem:[#allocation2] sm:$0xf0] %v1945
        %1950 = vst [vmem:[#allocation2 + $0x8] sm:$0xf0] %v1946
        %1951 = vrot.lane.b32.xlu0 %v1896, 45
        %v1952 = vpop.permute.xlu0 %1951
        %1954 = vrot.lane.b32.xlu0 %v1895, 45
        %v1955 = vpop.permute.xlu0 %1954
        %vm1956 = vcmask 367616
        %v1957 = vsel %vm1956, %v1955, %v1952
        %v1960 = vsel %vm1956, %v1952, %v1955
        %vm1961 = vmand %vm1897, %vm1903
        %vm1962 = vmand %vm1898, %vm1904
        %v1963 = vsel %vm1961, 1, 0
        %v1964 = vsel %vm1962, 1, 0
        %vm1965 = vcmp.eq.s32.totalorder %v1963, 1
        %vm1966 = vcmp.eq.s32.totalorder %v1964, 1
        %v1967 = vsel %vm1965, %v1960, 0.0
        %v1968 = vsel %vm1966, %v1957, 0.0
        %1969 = vst [vmem:[#allocation2 + $0x10] sm:$0xf] %v1967
        %1970 = vst [vmem:[#allocation2 + $0x18] sm:$0xf] %v1968
        %1971 = vrot.lane.b32.xlu0 %v1896, 3
        %v1972 = vpop.permute.xlu0 %1971
        %1974 = vrot.lane.b32.xlu0 %v1895, 3
        %v1975 = vpop.permute.xlu0 %1974
        %vm1976 = vcmask 23552
        %v1977 = vsel %vm1976, %v1975, %v1972
        %v1980 = vsel %vm1976, %v1972, %v1975
        %v1981 = vsel %vm1901, 1, 0
        %v1982 = vsel %vm1902, 1, 0
        %vm1983 = vcmp.eq.s32.totalorder %v1981, 1
        %vm1984 = vcmp.eq.s32.totalorder %v1982, 1
        %v1985 = vsel %vm1983, %v1980, 0.0
        %v1986 = vsel %vm1984, %v1977, 0.0
        %v1989 = vrot.slane %v1985, 4
        %v1990 = vrot.slane %v1986, 4
        %1993 = vst [vmem:[#allocation2 + $0x10] sm:$0xf0] %v1989
        %1994 = vst [vmem:[#allocation2 + $0x18] sm:$0xf0] %v1990
        %1995 = vst [vmem:[#allocation2 + $0x20] sm:$0xf] %v1895
        %1996 = vst [vmem:[#allocation2 + $0x28] sm:$0xf] %v1896
        %1997 = vrot.lane.b32.xlu0 %v1895, 125
        %v1998 = vpop.permute.xlu0 %1997
        %1999 = vrot.lane.b32.xlu0 %v1896, 125
        %v2000 = vpop.permute.xlu0 %1999
        %vm2001 = vcmask 1022976
        %v2002 = vsel %vm2001, %v1998, %v2000
        %v2006 = vsel %vm2001, %v2000, %v1998
        %v2007 = vsel %vm1903, 1, 0
        %v2008 = vsel %vm1904, 1, 0
        %vm2009 = vcmp.eq.s32.totalorder %v2007, 1
        %vm2010 = vcmp.eq.s32.totalorder %v2008, 1
        %v2011 = vsel %vm2009, %v2002, 0.0
        %v2012 = vsel %vm2010, %v2006, 0.0
        %v2015 = vrot.slane %v2011, 4
        %v2016 = vrot.slane %v2012, 4
        %2019 = vst [vmem:[#allocation2 + $0x20] sm:$0xf0] %v2015
        %2020 = vst [vmem:[#allocation2 + $0x28] sm:$0xf0] %v2016
        %2021 = vrot.lane.b32.xlu0 %v1895, 83
        %v2022 = vpop.permute.xlu0 %2021
        %2023 = vrot.lane.b32.xlu0 %v1896, 83
        %v2024 = vpop.permute.xlu0 %2023
        %vm2025 = vcmask 678912
        %v2026 = vsel %vm2025, %v2022, %v2024
        %v2030 = vsel %vm2025, %v2024, %v2022
        %vm2031 = vmand %vm1899, %vm1901
        %vm2032 = vmand %vm1900, %vm1902
        %v2033 = vsel %vm2031, 1, 0
        %v2034 = vsel %vm2032, 1, 0
        %vm2035 = vcmp.eq.s32.totalorder %v2033, 1
        %vm2036 = vcmp.eq.s32.totalorder %v2034, 1
        %v2037 = vsel %vm2035, %v2026, 0.0
        %v2038 = vsel %vm2036, %v2030, 0.0
        %2039 = vst [vmem:[#allocation2 + $0x30] sm:$0xf] %v2037
        %2040 = vst [vmem:[#allocation2 + $0x38] sm:$0xf] %v2038
        %2041 = vrot.lane.b32.xlu0 %v1895, 80
        %v2042 = vpop.permute.xlu0 %2041
        %2043 = vrot.lane.b32.xlu0 %v1896, 80
        %v2044 = vpop.permute.xlu0 %2043
        %vm2045 = vcmask 654336
        %v2046 = vsel %vm2045, %v2042, %v2044
        %v2050 = vsel %vm2045, %v2044, %v2042
        %v2051 = vsel %vm1899, 1, 0
        %v2052 = vsel %vm1900, 1, 0
        %vm2053 = vcmp.eq.s32.totalorder %v2051, 1
        %vm2054 = vcmp.eq.s32.totalorder %v2052, 1
        %v2055 = vsel %vm2053, %v2046, 0.0
        %v2056 = vsel %vm2054, %v2050, 0.0
        %v2059 = vrot.slane %v2055, 4
        %v2060 = vrot.slane %v2056, 4
        %2063 = vst [vmem:[#allocation2 + $0x30] sm:$0xf0] %v2059
        %2064 = vst [vmem:[#allocation2 + $0x38] sm:$0xf0] %v2060
        %2065 = vrot.lane.b32.xlu0 %v1895, 77
        %v2066 = vpop.permute.xlu0 %2065
        %2067 = vrot.lane.b32.xlu0 %v1896, 77
        %v2068 = vpop.permute.xlu0 %2067
        %vm2069 = vcmask 629760
        %v2070 = vsel %vm2069, %v2066, %v2068
        %v2074 = vsel %vm2069, %v2068, %v2066
        %vm2075 = vmand %vm1899, %vm1903
        %vm2076 = vmand %vm1900, %vm1904
        %v2077 = vsel %vm2075, 1, 0
        %v2078 = vsel %vm2076, 1, 0
        %vm2079 = vcmp.eq.s32.totalorder %v2077, 1
        %vm2080 = vcmp.eq.s32.totalorder %v2078, 1
        %v2081 = vsel %vm2079, %v2070, 0.0
        %v2082 = vsel %vm2080, %v2074, 0.0
        %2083 = vst [vmem:[#allocation2 + $0x40] sm:$0xf] %v2081
        %2084 = vst [vmem:[#allocation2 + $0x48] sm:$0xf] %v2082
        %v2085 = vld [vmem:[%s21] sm:$0xff]
        %v2086 = vld [vmem:[%s21 + $0x8] sm:$0xff]
        %v2087 = vld [vmem:[#allocation2] sm:$0xff]
        %v2088 = vld [vmem:[#allocation2 + $0x8] sm:$0xff]
        %v2089 = vld [vmem:[#allocation2 + $0x10] sm:$0xff]
        %v2090 = vld [vmem:[#allocation2 + $0x18] sm:$0xff]
        %v2091 = vld [vmem:[#allocation2 + $0x20] sm:$0xff]
        %v2092 = vld [vmem:[#allocation2 + $0x28] sm:$0xff]
        %v2093 = vld [vmem:[#allocation2 + $0x30] sm:$0xff]
        %v2094 = vld [vmem:[#allocation2 + $0x38] sm:$0xff]
        %v2095 = vld [vmem:[#allocation2 + $0x40] sm:$0xf]
        %v2096 = vld [vmem:[#allocation2 + $0x48] sm:$0xf]
        %v2098 = vsel %vm1575, %v2085, 0
        %v2101 = vsel %vm1575, %v2086, 0
        %v2104 = vsel %vm1582, %v2095, 0
        %v2107 = vsel %vm1582, %v2096, 0
        %2109 = vmatpush.msra.mxu0 0.0
        %2110 = vmatpush.msra.mxu0 0.0
        %2111 = vmatpush.msra.mxu0 0.0
        %2112 = vmatpush.msra.mxu0 0.0
        %2113 = vmatpush.msra.mxu0 0.0
        %2114 = vmatpush.msra.mxu0 0.0
        %2115 = vmatpush.msra.mxu0 0.0
        %2116 = vmatpush.msra.mxu0 0.0
        %2117 = vmatpush.msra.mxu0 0.0
        %2118 = vmatpush.msra.mxu0 0.0
        %2119 = vmatpush.msra.mxu0 0.0
        %2120 = vmatpush.msra.mxu0 %v2104
        %2121 = vmatpush.msra.mxu0 %v2093
        %2122 = vmatpush.msra.mxu0 %v2091
        %2123 = vmatpush.msra.mxu0 %v2089
        %2124 = vmatpush.msra.mxu0 %v2087
        %2125 = vmatmul.f32.gmra.mxu0 %v2098
        %v2126 = vpop.f32.mrf.mxu0
        %v2127 = vadd.f32 0.0, %v2126
        %2128 = vmatmul.f32.gmra.mxu0 %v2101
        %v2129 = vpop.f32.mrf.mxu0
        %v2130 = vadd.f32 0.0, %v2129
        %2131 = vdwg.mxu0
        %2132 = vmatpush.msra.mxu0 0.0
        %2133 = vmatpush.msra.mxu0 0.0
        %2134 = vmatpush.msra.mxu0 0.0
        %2135 = vmatpush.msra.mxu0 0.0
        %2136 = vmatpush.msra.mxu0 0.0
        %2137 = vmatpush.msra.mxu0 0.0
        %2138 = vmatpush.msra.mxu0 0.0
        %2139 = vmatpush.msra.mxu0 0.0
        %2140 = vmatpush.msra.mxu0 0.0
        %2141 = vmatpush.msra.mxu0 0.0
        %2142 = vmatpush.msra.mxu0 0.0
        %2143 = vmatpush.msra.mxu0 %v2107
        %2144 = vmatpush.msra.mxu0 %v2094
        %2145 = vmatpush.msra.mxu0 %v2092
        %2146 = vmatpush.msra.mxu0 %v2090
        %2147 = vmatpush.msra.mxu0 %v2088
        %2148 = vmatmul.f32.gmra.mxu0 %v2098
        %v2149 = vpop.f32.mrf.mxu0
        %v2150 = vadd.f32 0.0, %v2149
        %2151 = vmatmul.f32.gmra.mxu0 %v2101
        %v2152 = vpop.f32.mrf.mxu0
        %v2153 = vadd.f32 0.0, %v2152
        %2154 = vdwg.mxu0
        %v2155 = vadd.f32 %v1635, %v2127
        %v2156 = vadd.f32 %v1636, %v2150
        %v2157 = vadd.f32 %v1637, %v2130
        %v2158 = vadd.f32 %v1638, %v2153
        %v2159 = vld [vmem:[%s23] sm:$0x3]
        %v2160 = vld [vmem:[%s25] sm:$0x3]
        %2162 = vset.pattern.permute.xlu0 0
        %2163 = vperm.xlu0 %2162, %v2160
        %v2164 = vpop.permute.xlu0 %2163
        %v2167 = vsel %vm1007, %v2159, 0
        %2169 = vmatpush.msra.mxu0 0.0
        %2170 = vmatpush.msra.mxu0 0.0
        %2171 = vmatpush.msra.mxu0 0.0
        %2172 = vmatpush.msra.mxu0 0.0
        %2173 = vmatpush.msra.mxu0 0.0
        %2174 = vmatpush.msra.mxu0 0.0
        %2175 = vmatpush.msra.mxu0 0.0
        %2176 = vmatpush.msra.mxu0 0.0
        %2177 = vmatpush.msra.mxu0 0.0
        %2178 = vmatpush.msra.mxu0 0.0
        %2179 = vmatpush.msra.mxu0 0.0
        %2180 = vmatpush.msra.mxu0 0.0
        %2181 = vmatpush.msra.mxu0 0.0
        %2182 = vmatpush.msra.mxu0 0.0
        %2183 = vmatpush.msra.mxu0 %v986
        %2184 = vmatpush.msra.mxu0 %v984
        %2185 = vmatmul.f32.gmra.mxu0 %v2167
        %v2186 = vpop.f32.mrf.mxu0
        %v2187 = vadd.f32 %v2164, %v2186
        %2188 = vdwg.mxu0
        %2189 = vmatpush.msra.mxu0 0.0
        %2190 = vmatpush.msra.mxu0 0.0
        %2191 = vmatpush.msra.mxu0 0.0
        %2192 = vmatpush.msra.mxu0 0.0
        %2193 = vmatpush.msra.mxu0 0.0
        %2194 = vmatpush.msra.mxu0 0.0
        %2195 = vmatpush.msra.mxu0 0.0
        %2196 = vmatpush.msra.mxu0 0.0
        %2197 = vmatpush.msra.mxu0 0.0
        %2198 = vmatpush.msra.mxu0 0.0
        %2199 = vmatpush.msra.mxu0 0.0
        %2200 = vmatpush.msra.mxu0 0.0
        %2201 = vmatpush.msra.mxu0 0.0
        %2202 = vmatpush.msra.mxu0 0.0
        %2203 = vmatpush.msra.mxu0 %v987
        %2204 = vmatpush.msra.mxu0 %v985
        %2205 = vmatmul.f32.gmra.mxu0 %v2167
        %v2206 = vpop.f32.mrf.mxu0
        %v2207 = vadd.f32 %v2164, %v2206
        %2208 = vdwg.mxu0
        %2210 = vrot.lane.b32.xlu0 %v2207, 17
        %v2211 = vpop.permute.xlu0 %2210
        %2214 = vrot.lane.b32.xlu0 %v2187, 17
        %v2215 = vpop.permute.xlu0 %2214
        %v2216 = vsel %vm1125, %v2215, %v2211
        %v2219 = vsel %vm1125, %v2211, %v2215
        %v2220 = vsel %vm1134, %v2219, 0.0
        %v2221 = vsel %vm1135, %v2216, 0.0
        %2222 = vst [vmem:[#allocation2] sm:$0x3] %v2220
        %2223 = vst [vmem:[#allocation2 + $0x8] sm:$0x3] %v2221
        %2224 = vrot.lane.b32.xlu0 %v2207, 16
        %v2225 = vpop.permute.xlu0 %2224
        %2227 = vrot.lane.b32.xlu0 %v2187, 16
        %v2228 = vpop.permute.xlu0 %2227
        %v2229 = vsel %vm1007, %v2228, %v2225
        %v2232 = vsel %vm1007, %v2225, %v2228
        %v2233 = vsel %vm1151, %v2232, 0.0
        %v2234 = vsel %vm1152, %v2229, 0.0
        %v2237 = vrot.slane %v2233, 6
        %v2238 = vrot.slane %v2234, 6
        %2241 = vst [vmem:[#allocation2] sm:$0xc] %v2237
        %2242 = vst [vmem:[#allocation2 + $0x8] sm:$0xc] %v2238
        %2243 = vrot.lane.b32.xlu0 %v2207, 15
        %v2244 = vpop.permute.xlu0 %2243
        %2246 = vrot.lane.b32.xlu0 %v2187, 15
        %v2247 = vpop.permute.xlu0 %2246
        %v2248 = vsel %vm1168, %v2247, %v2244
        %v2251 = vsel %vm1168, %v2244, %v2247
        %v2252 = vsel %vm1177, %v2251, 0.0
        %v2253 = vsel %vm1178, %v2248, 0.0
        %v2256 = vrot.slane %v2252, 4
        %v2257 = vrot.slane %v2253, 4
        %2260 = vst [vmem:[#allocation2] sm:$0x30] %v2256
        %2261 = vst [vmem:[#allocation2 + $0x8] sm:$0x30] %v2257
        %2262 = vrot.lane.b32.xlu0 %v2207, 1
        %v2263 = vpop.permute.xlu0 %2262
        %2265 = vrot.lane.b32.xlu0 %v2187, 1
        %v2266 = vpop.permute.xlu0 %2265
        %v2267 = vsel %vm1194, %v2266, %v2263
        %v2270 = vsel %vm1194, %v2263, %v2266
        %v2271 = vsel %vm1201, %v2270, 0.0
        %v2272 = vsel %vm1202, %v2267, 0.0
        %v2275 = vrot.slane %v2271, 2
        %v2276 = vrot.slane %v2272, 2
        %2279 = vst [vmem:[#allocation2] sm:$0xc0] %v2275
        %2280 = vst [vmem:[#allocation2 + $0x8] sm:$0xc0] %v2276
        %2281 = vst [vmem:[#allocation2 + $0x10] sm:$0x3] %v2187
        %2282 = vst [vmem:[#allocation2 + $0x18] sm:$0x3] %v2207
        %2283 = vrot.lane.b32.xlu0 %v2187, 127
        %v2284 = vpop.permute.xlu0 %2283
        %2285 = vrot.lane.b32.xlu0 %v2207, 127
        %v2286 = vpop.permute.xlu0 %2285
        %v2287 = vsel %vm1219, %v2284, %v2286
        %v2291 = vsel %vm1219, %v2286, %v2284
        %v2292 = vsel %vm1227, %v2287, 0.0
        %v2293 = vsel %vm1228, %v2291, 0.0
        %v2296 = vrot.slane %v2292, 6
        %v2297 = vrot.slane %v2293, 6
        %2300 = vst [vmem:[#allocation2 + $0x10] sm:$0xc] %v2296
        %2301 = vst [vmem:[#allocation2 + $0x18] sm:$0xc] %v2297
        %2302 = vrot.lane.b32.xlu0 %v2187, 113
        %v2303 = vpop.permute.xlu0 %2302
        %2304 = vrot.lane.b32.xlu0 %v2207, 113
        %v2305 = vpop.permute.xlu0 %2304
        %v2306 = vsel %vm1243, %v2303, %v2305
        %v2310 = vsel %vm1243, %v2305, %v2303
        %v2311 = vsel %vm1253, %v2306, 0.0
        %v2312 = vsel %vm1254, %v2310, 0.0
        %v2315 = vrot.slane %v2311, 4
        %v2316 = vrot.slane %v2312, 4
        %2319 = vst [vmem:[#allocation2 + $0x10] sm:$0x30] %v2315
        %2320 = vst [vmem:[#allocation2 + $0x18] sm:$0x30] %v2316
        %2321 = vrot.lane.b32.xlu0 %v2187, 112
        %v2322 = vpop.permute.xlu0 %2321
        %2323 = vrot.lane.b32.xlu0 %v2207, 112
        %v2324 = vpop.permute.xlu0 %2323
        %v2325 = vsel %vm1269, %v2322, %v2324
        %v2329 = vsel %vm1269, %v2324, %v2322
        %v2330 = vsel %vm1277, %v2325, 0.0
        %v2331 = vsel %vm1278, %v2329, 0.0
        %v2334 = vrot.slane %v2330, 2
        %v2335 = vrot.slane %v2331, 2
        %2338 = vst [vmem:[#allocation2 + $0x10] sm:$0xc0] %v2334
        %2339 = vst [vmem:[#allocation2 + $0x18] sm:$0xc0] %v2335
        %2340 = vrot.lane.b32.xlu0 %v2187, 111
        %v2341 = vpop.permute.xlu0 %2340
        %2342 = vrot.lane.b32.xlu0 %v2207, 111
        %v2343 = vpop.permute.xlu0 %2342
        %v2344 = vsel %vm1293, %v2341, %v2343
        %v2348 = vsel %vm1293, %v2343, %v2341
        %v2349 = vsel %vm1303, %v2344, 0.0
        %v2350 = vsel %vm1304, %v2348, 0.0
        %2351 = vst [vmem:[#allocation2 + $0x20] sm:$0x3] %v2349
        %2352 = vst [vmem:[#allocation2 + $0x28] sm:$0x3] %v2350
        %v2353 = vld [vmem:[%s27] sm:$0x7]
        %v2354 = vld [vmem:[#allocation2] sm:$0xff]
        %v2355 = vld [vmem:[#allocation2 + $0x8] sm:$0xff]
        %v2356 = vld [vmem:[#allocation2 + $0x10] sm:$0xff]
        %v2357 = vld [vmem:[#allocation2 + $0x18] sm:$0xff]
        %v2358 = vld [vmem:[#allocation2 + $0x20] sm:$0x3]
        %v2359 = vld [vmem:[#allocation2 + $0x28] sm:$0x3]
        %v2360 = vld [vmem:[%s29] sm:$0x7]
        %2362 = vset.pattern.permute.xlu0 0
        %2363 = vperm.xlu0 %2362, %v2360
        %v2364 = vpop.permute.xlu0 %2363
        %v2367 = vsel %vm1322, %v2353, 0
        %v2370 = vsel %vm1326, %v2358, 0
        %v2373 = vsel %vm1326, %v2359, 0
        %2375 = vmatpush.msra.mxu0 0.0
        %2376 = vmatpush.msra.mxu0 0.0
        %2377 = vmatpush.msra.mxu0 0.0
        %2378 = vmatpush.msra.mxu0 0.0
        %2379 = vmatpush.msra.mxu0 0.0
        %2380 = vmatpush.msra.mxu0 0.0
        %2381 = vmatpush.msra.mxu0 0.0
        %2382 = vmatpush.msra.mxu0 0.0
        %2383 = vmatpush.msra.mxu0 0.0
        %2384 = vmatpush.msra.mxu0 0.0
        %2385 = vmatpush.msra.mxu0 0.0
        %2386 = vmatpush.msra.mxu0 0.0
        %2387 = vmatpush.msra.mxu0 0.0
        %2388 = vmatpush.msra.mxu0 %v2370
        %2389 = vmatpush.msra.mxu0 %v2356
        %2390 = vmatpush.msra.mxu0 %v2354
        %2391 = vmatmul.f32.gmra.mxu0 %v2367
        %v2392 = vpop.f32.mrf.mxu0
        %v2393 = vadd.f32 %v2364, %v2392
        %2394 = vdwg.mxu0
        %2395 = vmatpush.msra.mxu0 0.0
        %2396 = vmatpush.msra.mxu0 0.0
        %2397 = vmatpush.msra.mxu0 0.0
        %2398 = vmatpush.msra.mxu0 0.0
        %2399 = vmatpush.msra.mxu0 0.0
        %2400 = vmatpush.msra.mxu0 0.0
        %2401 = vmatpush.msra.mxu0 0.0
        %2402 = vmatpush.msra.mxu0 0.0
        %2403 = vmatpush.msra.mxu0 0.0
        %2404 = vmatpush.msra.mxu0 0.0
        %2405 = vmatpush.msra.mxu0 0.0
        %2406 = vmatpush.msra.mxu0 0.0
        %2407 = vmatpush.msra.mxu0 0.0
        %2408 = vmatpush.msra.mxu0 %v2373
        %2409 = vmatpush.msra.mxu0 %v2357
        %2410 = vmatpush.msra.mxu0 %v2355
        %2411 = vmatmul.f32.gmra.mxu0 %v2367
        %v2412 = vpop.f32.mrf.mxu0
        %v2413 = vadd.f32 %v2364, %v2412
        %2414 = vdwg.mxu0
        %v2415 = vmax.f32 %v2393, 0.0
        %v2416 = vmax.f32 %v2413, 0.0
        %2418 = vrot.lane.b32.xlu0 %v2416, 17
        %v2419 = vpop.permute.xlu0 %2418
        %2422 = vrot.lane.b32.xlu0 %v2415, 17
        %v2423 = vpop.permute.xlu0 %2422
        %v2424 = vsel %vm1125, %v2423, %v2419
        %v2427 = vsel %vm1125, %v2419, %v2423
        %v2428 = vsel %vm1134, %v2427, 0.0
        %v2429 = vsel %vm1135, %v2424, 0.0
        %2430 = vst [vmem:[#allocation2] sm:$0x7] %v2428
        %2431 = vst [vmem:[#allocation2 + $0x8] sm:$0x7] %v2429
        %2432 = vrot.lane.b32.xlu0 %v2416, 16
        %v2433 = vpop.permute.xlu0 %2432
        %2435 = vrot.lane.b32.xlu0 %v2415, 16
        %v2436 = vpop.permute.xlu0 %2435
        %v2437 = vsel %vm1007, %v2436, %v2433
        %v2440 = vsel %vm1007, %v2433, %v2436
        %v2441 = vsel %vm1151, %v2440, 0.0
        %v2442 = vsel %vm1152, %v2437, 0.0
        %v2445 = vrot.slane %v2441, 5
        %v2446 = vrot.slane %v2442, 5
        %2449 = vst [vmem:[#allocation2] sm:$0x38] %v2445
        %2450 = vst [vmem:[#allocation2 + $0x8] sm:$0x38] %v2446
        %2451 = vrot.lane.b32.xlu0 %v2416, 15
        %v2452 = vpop.permute.xlu0 %2451
        %2454 = vrot.lane.b32.xlu0 %v2415, 15
        %v2455 = vpop.permute.xlu0 %2454
        %v2456 = vsel %vm1168, %v2455, %v2452
        %v2459 = vsel %vm1168, %v2452, %v2455
        %v2460 = vsel %vm1177, %v2459, 0.0
        %v2461 = vsel %vm1178, %v2456, 0.0
        %v2464 = vrot.slane %v2460, 2
        %v2465 = vrot.slane %v2461, 2
        %2468 = vst [vmem:[#allocation2] sm:$0xc0] %v2464
        %2469 = vst [vmem:[#allocation2 + $0x8] sm:$0xc0] %v2465
        %2470 = vst [vmem:[#allocation2 + $0x10] sm:$0x1] %v2464
        %2471 = vst [vmem:[#allocation2 + $0x18] sm:$0x1] %v2465
        %2472 = vrot.lane.b32.xlu0 %v2416, 1
        %v2473 = vpop.permute.xlu0 %2472
        %2475 = vrot.lane.b32.xlu0 %v2415, 1
        %v2476 = vpop.permute.xlu0 %2475
        %v2477 = vsel %vm1194, %v2476, %v2473
        %v2480 = vsel %vm1194, %v2473, %v2476
        %v2481 = vsel %vm1201, %v2480, 0.0
        %v2482 = vsel %vm1202, %v2477, 0.0
        %v2485 = vrot.slane %v2481, 7
        %v2486 = vrot.slane %v2482, 7
        %2489 = vst [vmem:[#allocation2 + $0x10] sm:$0xe] %v2485
        %2490 = vst [vmem:[#allocation2 + $0x18] sm:$0xe] %v2486
        %v2491 = vrot.slane %v2415, 4
        %v2492 = vrot.slane %v2416, 4
        %2495 = vst [vmem:[#allocation2 + $0x10] sm:$0x70] %v2491
        %2496 = vst [vmem:[#allocation2 + $0x18] sm:$0x70] %v2492
        %2497 = vrot.lane.b32.xlu0 %v2415, 127
        %v2498 = vpop.permute.xlu0 %2497
        %2499 = vrot.lane.b32.xlu0 %v2416, 127
        %v2500 = vpop.permute.xlu0 %2499
        %v2501 = vsel %vm1219, %v2498, %v2500
        %v2505 = vsel %vm1219, %v2500, %v2498
        %v2506 = vsel %vm1227, %v2501, 0.0
        %v2507 = vsel %vm1228, %v2505, 0.0
        %v2510 = vrot.slane %v2506, 1
        %v2511 = vrot.slane %v2507, 1
        %2514 = vst [vmem:[#allocation2 + $0x10] sm:$0x80] %v2510
        %2515 = vst [vmem:[#allocation2 + $0x18] sm:$0x80] %v2511
        %2516 = vst [vmem:[#allocation2 + $0x20] sm:$0x3] %v2510
        %2517 = vst [vmem:[#allocation2 + $0x28] sm:$0x3] %v2511
        %2518 = vrot.lane.b32.xlu0 %v2415, 113
        %v2519 = vpop.permute.xlu0 %2518
        %2520 = vrot.lane.b32.xlu0 %v2416, 113
        %v2521 = vpop.permute.xlu0 %2520
        %v2522 = vsel %vm1243, %v2519, %v2521
        %v2526 = vsel %vm1243, %v2521, %v2519
        %v2527 = vsel %vm1253, %v2522, 0.0
        %v2528 = vsel %vm1254, %v2526, 0.0
        %v2531 = vrot.slane %v2527, 6
        %v2532 = vrot.slane %v2528, 6
        %2535 = vst [vmem:[#allocation2 + $0x20] sm:$0x1c] %v2531
        %2536 = vst [vmem:[#allocation2 + $0x28] sm:$0x1c] %v2532
        %2537 = vrot.lane.b32.xlu0 %v2415, 112
        %v2538 = vpop.permute.xlu0 %2537
        %2539 = vrot.lane.b32.xlu0 %v2416, 112
        %v2540 = vpop.permute.xlu0 %2539
        %v2541 = vsel %vm1269, %v2538, %v2540
        %v2545 = vsel %vm1269, %v2540, %v2538
        %v2546 = vsel %vm1277, %v2541, 0.0
        %v2547 = vsel %vm1278, %v2545, 0.0
        %v2550 = vrot.slane %v2546, 3
        %v2551 = vrot.slane %v2547, 3
        %2554 = vst [vmem:[#allocation2 + $0x20] sm:$0xe0] %v2550
        %2555 = vst [vmem:[#allocation2 + $0x28] sm:$0xe0] %v2551
        %2556 = vrot.lane.b32.xlu0 %v2415, 111
        %v2557 = vpop.permute.xlu0 %2556
        %2558 = vrot.lane.b32.xlu0 %v2416, 111
        %v2559 = vpop.permute.xlu0 %2558
        %v2560 = vsel %vm1293, %v2557, %v2559
        %v2564 = vsel %vm1293, %v2559, %v2557
        %v2565 = vsel %vm1303, %v2560, 0.0
        %v2566 = vsel %vm1304, %v2564, 0.0
        %2567 = vst [vmem:[#allocation2 + $0x30] sm:$0x7] %v2565
        %2568 = vst [vmem:[#allocation2 + $0x38] sm:$0x7] %v2566
        %v2569 = vld [vmem:[%s31] sm:$0xf]
        %v2570 = vld [vmem:[#allocation2] sm:$0xff]
        %v2571 = vld [vmem:[#allocation2 + $0x8] sm:$0xff]
        %v2572 = vld [vmem:[#allocation2 + $0x10] sm:$0xff]
        %v2573 = vld [vmem:[#allocation2 + $0x18] sm:$0xff]
        %v2574 = vld [vmem:[#allocation2 + $0x20] sm:$0xff]
        %v2575 = vld [vmem:[#allocation2 + $0x28] sm:$0xff]
        %v2576 = vld [vmem:[#allocation2 + $0x30] sm:$0x7]
        %v2577 = vld [vmem:[#allocation2 + $0x38] sm:$0x7]
        %v2578 = vld [vmem:[%s33] sm:$0xf]
        %2580 = vset.pattern.permute.xlu0 0
        %2581 = vperm.xlu0 %2580, %v2578
        %v2582 = vpop.permute.xlu0 %2581
        %vm2584 = vcmask 220160
        %v2586 = vsel %vm2584, %v2569, 0
        %vm2588 = vcmask 1042432
        %v2590 = vsel %vm2588, %v2576, 0
        %v2593 = vsel %vm2588, %v2577, 0
        %2595 = vmatpush.msra.mxu0 0.0
        %2596 = vmatpush.msra.mxu0 0.0
        %2597 = vmatpush.msra.mxu0 0.0
        %2598 = vmatpush.msra.mxu0 0.0
        %2599 = vmatpush.msra.mxu0 0.0
        %2600 = vmatpush.msra.mxu0 0.0
        %2601 = vmatpush.msra.mxu0 0.0
        %2602 = vmatpush.msra.mxu0 0.0
        %2603 = vmatpush.msra.mxu0 0.0
        %2604 = vmatpush.msra.mxu0 0.0
        %2605 = vmatpush.msra.mxu0 0.0
        %2606 = vmatpush.msra.mxu0 0.0
        %2607 = vmatpush.msra.mxu0 %v2590
        %2608 = vmatpush.msra.mxu0 %v2574
        %2609 = vmatpush.msra.mxu0 %v2572
        %2610 = vmatpush.msra.mxu0 %v2570
        %2611 = vmatmul.f32.gmra.mxu0 %v2586
        %v2612 = vpop.f32.mrf.mxu0
        %v2613 = vadd.f32 %v2582, %v2612
        %2614 = vdwg.mxu0
        %2615 = vmatpush.msra.mxu0 0.0
        %2616 = vmatpush.msra.mxu0 0.0
        %2617 = vmatpush.msra.mxu0 0.0
        %2618 = vmatpush.msra.mxu0 0.0
        %2619 = vmatpush.msra.mxu0 0.0
        %2620 = vmatpush.msra.mxu0 0.0
        %2621 = vmatpush.msra.mxu0 0.0
        %2622 = vmatpush.msra.mxu0 0.0
        %2623 = vmatpush.msra.mxu0 0.0
        %2624 = vmatpush.msra.mxu0 0.0
        %2625 = vmatpush.msra.mxu0 0.0
        %2626 = vmatpush.msra.mxu0 0.0
        %2627 = vmatpush.msra.mxu0 %v2593
        %2628 = vmatpush.msra.mxu0 %v2575
        %2629 = vmatpush.msra.mxu0 %v2573
        %2630 = vmatpush.msra.mxu0 %v2571
        %2631 = vmatmul.f32.gmra.mxu0 %v2586
        %v2632 = vpop.f32.mrf.mxu0
        %v2633 = vadd.f32 %v2582, %v2632
        %2634 = vdwg.mxu0
        %v2635 = vmax.f32 %v2613, 0.0
        %v2636 = vmax.f32 %v2633, 0.0
        %vm2637 = vcmp.ge.s32.totalorder %v989, 80
        %vm2638 = vcmp.ge.s32.totalorder %v990, 80
        %vm2639 = vcmp.lt.s32.totalorder %v989, 176
        %vm2640 = vcmp.lt.s32.totalorder %v990, 176
        %vm2641 = vcmp.ge.s32.totalorder %v991, 5
        %vm2642 = vcmp.ge.s32.totalorder %v992, 5
        %vm2643 = vcmp.lt.s32.totalorder %v991, 11
        %vm2644 = vcmp.lt.s32.totalorder %v992, 11
        %2646 = vrot.lane.b32.xlu0 %v2636, 85
        %v2647 = vpop.permute.xlu0 %2646
        %2650 = vrot.lane.b32.xlu0 %v2635, 85
        %v2651 = vpop.permute.xlu0 %2650
        %vm2652 = vcmask 695296
        %v2653 = vsel %vm2652, %v2651, %v2647
        %v2656 = vsel %vm2652, %v2647, %v2651
        %vm2657 = vmand %vm2637, %vm2641
        %vm2658 = vmand %vm2638, %vm2642
        %v2659 = vsel %vm2657, 1, 0
        %v2660 = vsel %vm2658, 1, 0
        %vm2661 = vcmp.eq.s32.totalorder %v2659, 1
        %vm2662 = vcmp.eq.s32.totalorder %v2660, 1
        %v2663 = vsel %vm2661, %v2656, 0.0
        %v2664 = vsel %vm2662, %v2653, 0.0
        %2665 = vst [vmem:[#allocation2] sm:$0xf] %v2663
        %2666 = vst [vmem:[#allocation2 + $0x8] sm:$0xf] %v2664
        %2667 = vrot.lane.b32.xlu0 %v2636, 80
        %v2668 = vpop.permute.xlu0 %2667
        %2670 = vrot.lane.b32.xlu0 %v2635, 80
        %v2671 = vpop.permute.xlu0 %2670
        %v2672 = vsel %vm2045, %v2671, %v2668
        %v2675 = vsel %vm2045, %v2668, %v2671
        %v2676 = vsel %vm2637, 1, 0
        %v2677 = vsel %vm2638, 1, 0
        %vm2678 = vcmp.eq.s32.totalorder %v2676, 1
        %vm2679 = vcmp.eq.s32.totalorder %v2677, 1
        %v2680 = vsel %vm2678, %v2675, 0.0
        %v2681 = vsel %vm2679, %v2672, 0.0
        %v2684 = vrot.slane %v2680, 4
        %v2685 = vrot.slane %v2681, 4
        %2688 = vst [vmem:[#allocation2] sm:$0xf0] %v2684
        %2689 = vst [vmem:[#allocation2 + $0x8] sm:$0xf0] %v2685
        %2690 = vrot.lane.b32.xlu0 %v2636, 75
        %v2691 = vpop.permute.xlu0 %2690
        %2693 = vrot.lane.b32.xlu0 %v2635, 75
        %v2694 = vpop.permute.xlu0 %2693
        %vm2695 = vcmask 613376
        %v2696 = vsel %vm2695, %v2694, %v2691
        %v2699 = vsel %vm2695, %v2691, %v2694
        %vm2700 = vmand %vm2637, %vm2643
        %vm2701 = vmand %vm2638, %vm2644
        %v2702 = vsel %vm2700, 1, 0
        %v2703 = vsel %vm2701, 1, 0
        %vm2704 = vcmp.eq.s32.totalorder %v2702, 1
        %vm2705 = vcmp.eq.s32.totalorder %v2703, 1
        %v2706 = vsel %vm2704, %v2699, 0.0
        %v2707 = vsel %vm2705, %v2696, 0.0
        %2708 = vst [vmem:[#allocation2 + $0x10] sm:$0xf] %v2706
        %2709 = vst [vmem:[#allocation2 + $0x18] sm:$0xf] %v2707
        %2710 = vrot.lane.b32.xlu0 %v2636, 5
        %v2711 = vpop.permute.xlu0 %2710
        %2713 = vrot.lane.b32.xlu0 %v2635, 5
        %v2714 = vpop.permute.xlu0 %2713
        %vm2715 = vcmask 39936
        %v2716 = vsel %vm2715, %v2714, %v2711
        %v2719 = vsel %vm2715, %v2711, %v2714
        %v2720 = vsel %vm2641, 1, 0
        %v2721 = vsel %vm2642, 1, 0
        %vm2722 = vcmp.eq.s32.totalorder %v2720, 1
        %vm2723 = vcmp.eq.s32.totalorder %v2721, 1
        %v2724 = vsel %vm2722, %v2719, 0.0
        %v2725 = vsel %vm2723, %v2716, 0.0
        %v2728 = vrot.slane %v2724, 4
        %v2729 = vrot.slane %v2725, 4
        %2732 = vst [vmem:[#allocation2 + $0x10] sm:$0xf0] %v2728
        %2733 = vst [vmem:[#allocation2 + $0x18] sm:$0xf0] %v2729
        %2734 = vst [vmem:[#allocation2 + $0x20] sm:$0xf] %v2635
        %2735 = vst [vmem:[#allocation2 + $0x28] sm:$0xf] %v2636
        %2736 = vrot.lane.b32.xlu0 %v2635, 123
        %v2737 = vpop.permute.xlu0 %2736
        %2738 = vrot.lane.b32.xlu0 %v2636, 123
        %v2739 = vpop.permute.xlu0 %2738
        %vm2740 = vcmask 1006592
        %v2741 = vsel %vm2740, %v2737, %v2739
        %v2745 = vsel %vm2740, %v2739, %v2737
        %v2746 = vsel %vm2643, 1, 0
        %v2747 = vsel %vm2644, 1, 0
        %vm2748 = vcmp.eq.s32.totalorder %v2746, 1
        %vm2749 = vcmp.eq.s32.totalorder %v2747, 1
        %v2750 = vsel %vm2748, %v2741, 0.0
        %v2751 = vsel %vm2749, %v2745, 0.0
        %v2754 = vrot.slane %v2750, 4
        %v2755 = vrot.slane %v2751, 4
        %2758 = vst [vmem:[#allocation2 + $0x20] sm:$0xf0] %v2754
        %2759 = vst [vmem:[#allocation2 + $0x28] sm:$0xf0] %v2755
        %2760 = vrot.lane.b32.xlu0 %v2635, 53
        %v2761 = vpop.permute.xlu0 %2760
        %2762 = vrot.lane.b32.xlu0 %v2636, 53
        %v2763 = vpop.permute.xlu0 %2762
        %vm2764 = vcmask 433152
        %v2765 = vsel %vm2764, %v2761, %v2763
        %v2769 = vsel %vm2764, %v2763, %v2761
        %vm2770 = vmand %vm2639, %vm2641
        %vm2771 = vmand %vm2640, %vm2642
        %v2772 = vsel %vm2770, 1, 0
        %v2773 = vsel %vm2771, 1, 0
        %vm2774 = vcmp.eq.s32.totalorder %v2772, 1
        %vm2775 = vcmp.eq.s32.totalorder %v2773, 1
        %v2776 = vsel %vm2774, %v2765, 0.0
        %v2777 = vsel %vm2775, %v2769, 0.0
        %2778 = vst [vmem:[#allocation2 + $0x30] sm:$0xf] %v2776
        %2779 = vst [vmem:[#allocation2 + $0x38] sm:$0xf] %v2777
        %2780 = vrot.lane.b32.xlu0 %v2635, 48
        %v2781 = vpop.permute.xlu0 %2780
        %2782 = vrot.lane.b32.xlu0 %v2636, 48
        %v2783 = vpop.permute.xlu0 %2782
        %v2784 = vsel %vm1932, %v2781, %v2783
        %v2788 = vsel %vm1932, %v2783, %v2781
        %v2789 = vsel %vm2639, 1, 0
        %v2790 = vsel %vm2640, 1, 0
        %vm2791 = vcmp.eq.s32.totalorder %v2789, 1
        %vm2792 = vcmp.eq.s32.totalorder %v2790, 1
        %v2793 = vsel %vm2791, %v2784, 0.0
        %v2794 = vsel %vm2792, %v2788, 0.0
        %v2797 = vrot.slane %v2793, 4
        %v2798 = vrot.slane %v2794, 4
        %2801 = vst [vmem:[#allocation2 + $0x30] sm:$0xf0] %v2797
        %2802 = vst [vmem:[#allocation2 + $0x38] sm:$0xf0] %v2798
        %2803 = vrot.lane.b32.xlu0 %v2635, 43
        %v2804 = vpop.permute.xlu0 %2803
        %2805 = vrot.lane.b32.xlu0 %v2636, 43
        %v2806 = vpop.permute.xlu0 %2805
        %vm2807 = vcmask 351232
        %v2808 = vsel %vm2807, %v2804, %v2806
        %v2812 = vsel %vm2807, %v2806, %v2804
        %vm2813 = vmand %vm2639, %vm2643
        %vm2814 = vmand %vm2640, %vm2644
        %v2815 = vsel %vm2813, 1, 0
        %v2816 = vsel %vm2814, 1, 0
        %vm2817 = vcmp.eq.s32.totalorder %v2815, 1
        %vm2818 = vcmp.eq.s32.totalorder %v2816, 1
        %v2819 = vsel %vm2817, %v2808, 0.0
        %v2820 = vsel %vm2818, %v2812, 0.0
        %2821 = vst [vmem:[#allocation2 + $0x40] sm:$0xf] %v2819
        %2822 = vst [vmem:[#allocation2 + $0x48] sm:$0xf] %v2820
        %v2823 = vld [vmem:[#allocation6] sm:$0xff]
        %v2824 = vld [vmem:[#allocation6 + $0x8] sm:$0xff]
        %v2825 = vld [vmem:[#allocation2] sm:$0xff]
        %v2826 = vld [vmem:[#allocation2 + $0x8] sm:$0xff]
        %v2827 = vld [vmem:[#allocation2 + $0x10] sm:$0xff]
        %v2828 = vld [vmem:[#allocation2 + $0x18] sm:$0xff]
        %v2829 = vld [vmem:[#allocation2 + $0x20] sm:$0xff]
        %v2830 = vld [vmem:[#allocation2 + $0x28] sm:$0xff]
        %v2831 = vld [vmem:[#allocation2 + $0x30] sm:$0xff]
        %v2832 = vld [vmem:[#allocation2 + $0x38] sm:$0xff]
        %v2833 = vld [vmem:[#allocation2 + $0x40] sm:$0xf]
        %v2834 = vld [vmem:[#allocation2 + $0x48] sm:$0xf]
        %v2836 = vsel %vm1575, %v2823, 0
        %v2839 = vsel %vm1575, %v2824, 0
        %v2842 = vsel %vm1582, %v2833, 0
        %v2845 = vsel %vm1582, %v2834, 0
        %2847 = vmatpush.msra.mxu0 0.0
        %2848 = vmatpush.msra.mxu0 0.0
        %2849 = vmatpush.msra.mxu0 0.0
        %2850 = vmatpush.msra.mxu0 0.0
        %2851 = vmatpush.msra.mxu0 0.0
        %2852 = vmatpush.msra.mxu0 0.0
        %2853 = vmatpush.msra.mxu0 0.0
        %2854 = vmatpush.msra.mxu0 0.0
        %2855 = vmatpush.msra.mxu0 0.0
        %2856 = vmatpush.msra.mxu0 0.0
        %2857 = vmatpush.msra.mxu0 0.0
        %2858 = vmatpush.msra.mxu0 %v2842
        %2859 = vmatpush.msra.mxu0 %v2831
        %2860 = vmatpush.msra.mxu0 %v2829
        %2861 = vmatpush.msra.mxu0 %v2827
        %2862 = vmatpush.msra.mxu0 %v2825
        %2863 = vmatmul.f32.gmra.mxu0 %v2836
        %v2864 = vpop.f32.mrf.mxu0
        %v2865 = vadd.f32 0.0, %v2864
        %2866 = vmatmul.f32.gmra.mxu0 %v2839
        %v2867 = vpop.f32.mrf.mxu0
        %v2868 = vadd.f32 0.0, %v2867
        %2869 = vdwg.mxu0
        %2870 = vmatpush.msra.mxu0 0.0
        %2871 = vmatpush.msra.mxu0 0.0
        %2872 = vmatpush.msra.mxu0 0.0
        %2873 = vmatpush.msra.mxu0 0.0
        %2874 = vmatpush.msra.mxu0 0.0
        %2875 = vmatpush.msra.mxu0 0.0
        %2876 = vmatpush.msra.mxu0 0.0
        %2877 = vmatpush.msra.mxu0 0.0
        %2878 = vmatpush.msra.mxu0 0.0
        %2879 = vmatpush.msra.mxu0 0.0
        %2880 = vmatpush.msra.mxu0 0.0
        %2881 = vmatpush.msra.mxu0 %v2845
        %2882 = vmatpush.msra.mxu0 %v2832
        %2883 = vmatpush.msra.mxu0 %v2830
        %2884 = vmatpush.msra.mxu0 %v2828
        %2885 = vmatpush.msra.mxu0 %v2826
        %2886 = vmatmul.f32.gmra.mxu0 %v2836
        %v2887 = vpop.f32.mrf.mxu0
        %v2888 = vadd.f32 0.0, %v2887
        %2889 = vmatmul.f32.gmra.mxu0 %v2839
        %v2890 = vpop.f32.mrf.mxu0
        %v2891 = vadd.f32 0.0, %v2890
        %2892 = vdwg.mxu0
        %v2893 = vadd.f32 %v2155, %v2865
        %v2894 = vadd.f32 %v2156, %v2888
        %v2895 = vadd.f32 %v2157, %v2868
        %v2896 = vadd.f32 %v2158, %v2891
        %v2897 = vld [vmem:[%s37] sm:$0x3]
        %v2898 = vld [vmem:[%s39] sm:$0x3]
        %2900 = vset.pattern.permute.xlu0 0
        %2901 = vperm.xlu0 %2900, %v2898
        %v2902 = vpop.permute.xlu0 %2901
        %v2905 = vsel %vm1007, %v2897, 0
        %2907 = vmatpush.msra.mxu0 0.0
        %2908 = vmatpush.msra.mxu0 0.0
        %2909 = vmatpush.msra.mxu0 0.0
        %2910 = vmatpush.msra.mxu0 0.0
        %2911 = vmatpush.msra.mxu0 0.0
        %2912 = vmatpush.msra.mxu0 0.0
        %2913 = vmatpush.msra.mxu0 0.0
        %2914 = vmatpush.msra.mxu0 0.0
        %2915 = vmatpush.msra.mxu0 0.0
        %2916 = vmatpush.msra.mxu0 0.0
        %2917 = vmatpush.msra.mxu0 0.0
        %2918 = vmatpush.msra.mxu0 0.0
        %2919 = vmatpush.msra.mxu0 0.0
        %2920 = vmatpush.msra.mxu0 0.0
        %2921 = vmatpush.msra.mxu0 %v986
        %2922 = vmatpush.msra.mxu0 %v984
        %2923 = vmatmul.f32.gmra.mxu0 %v2905
        %v2924 = vpop.f32.mrf.mxu0
        %v2925 = vadd.f32 %v2902, %v2924
        %2926 = vdwg.mxu0
        %2927 = vmatpush.msra.mxu0 0.0
        %2928 = vmatpush.msra.mxu0 0.0
        %2929 = vmatpush.msra.mxu0 0.0
        %2930 = vmatpush.msra.mxu0 0.0
        %2931 = vmatpush.msra.mxu0 0.0
        %2932 = vmatpush.msra.mxu0 0.0
        %2933 = vmatpush.msra.mxu0 0.0
        %2934 = vmatpush.msra.mxu0 0.0
        %2935 = vmatpush.msra.mxu0 0.0
        %2936 = vmatpush.msra.mxu0 0.0
        %2937 = vmatpush.msra.mxu0 0.0
        %2938 = vmatpush.msra.mxu0 0.0
        %2939 = vmatpush.msra.mxu0 0.0
        %2940 = vmatpush.msra.mxu0 0.0
        %2941 = vmatpush.msra.mxu0 %v987
        %2942 = vmatpush.msra.mxu0 %v985
        %2943 = vmatmul.f32.gmra.mxu0 %v2905
        %v2944 = vpop.f32.mrf.mxu0
        %v2945 = vadd.f32 %v2902, %v2944
        %2946 = vdwg.mxu0
        %2948 = vrot.lane.b32.xlu0 %v2945, 17
        %v2949 = vpop.permute.xlu0 %2948
        %2952 = vrot.lane.b32.xlu0 %v2925, 17
        %v2953 = vpop.permute.xlu0 %2952
        %v2954 = vsel %vm1125, %v2953, %v2949
        %v2957 = vsel %vm1125, %v2949, %v2953
        %v2958 = vsel %vm1134, %v2957, 0.0
        %v2959 = vsel %vm1135, %v2954, 0.0
        %2960 = vst [vmem:[#allocation2] sm:$0x3] %v2958
        %2961 = vst [vmem:[#allocation2 + $0x8] sm:$0x3] %v2959
        %2962 = vrot.lane.b32.xlu0 %v2945, 16
        %v2963 = vpop.permute.xlu0 %2962
        %2965 = vrot.lane.b32.xlu0 %v2925, 16
        %v2966 = vpop.permute.xlu0 %2965
        %v2967 = vsel %vm1007, %v2966, %v2963
        %v2970 = vsel %vm1007, %v2963, %v2966
        %v2971 = vsel %vm1151, %v2970, 0.0
        %v2972 = vsel %vm1152, %v2967, 0.0
        %v2975 = vrot.slane %v2971, 6
        %v2976 = vrot.slane %v2972, 6
        %2979 = vst [vmem:[#allocation2] sm:$0xc] %v2975
        %2980 = vst [vmem:[#allocation2 + $0x8] sm:$0xc] %v2976
        %2981 = vrot.lane.b32.xlu0 %v2945, 15
        %v2982 = vpop.permute.xlu0 %2981
        %2984 = vrot.lane.b32.xlu0 %v2925, 15
        %v2985 = vpop.permute.xlu0 %2984
        %v2986 = vsel %vm1168, %v2985, %v2982
        %v2989 = vsel %vm1168, %v2982, %v2985
        %v2990 = vsel %vm1177, %v2989, 0.0
        %v2991 = vsel %vm1178, %v2986, 0.0
        %v2994 = vrot.slane %v2990, 4
        %v2995 = vrot.slane %v2991, 4
        %2998 = vst [vmem:[#allocation2] sm:$0x30] %v2994
        %2999 = vst [vmem:[#allocation2 + $0x8] sm:$0x30] %v2995
        %3000 = vrot.lane.b32.xlu0 %v2945, 1
        %v3001 = vpop.permute.xlu0 %3000
        %3003 = vrot.lane.b32.xlu0 %v2925, 1
        %v3004 = vpop.permute.xlu0 %3003
        %v3005 = vsel %vm1194, %v3004, %v3001
        %v3008 = vsel %vm1194, %v3001, %v3004
        %v3009 = vsel %vm1201, %v3008, 0.0
        %v3010 = vsel %vm1202, %v3005, 0.0
        %v3013 = vrot.slane %v3009, 2
        %v3014 = vrot.slane %v3010, 2
        %3017 = vst [vmem:[#allocation2] sm:$0xc0] %v3013
        %3018 = vst [vmem:[#allocation2 + $0x8] sm:$0xc0] %v3014
        %3019 = vst [vmem:[#allocation2 + $0x10] sm:$0x3] %v2925
        %3020 = vst [vmem:[#allocation2 + $0x18] sm:$0x3] %v2945
        %3021 = vrot.lane.b32.xlu0 %v2925, 127
        %v3022 = vpop.permute.xlu0 %3021
        %3023 = vrot.lane.b32.xlu0 %v2945, 127
        %v3024 = vpop.permute.xlu0 %3023
        %v3025 = vsel %vm1219, %v3022, %v3024
        %v3029 = vsel %vm1219, %v3024, %v3022
        %v3030 = vsel %vm1227, %v3025, 0.0
        %v3031 = vsel %vm1228, %v3029, 0.0
        %v3034 = vrot.slane %v3030, 6
        %v3035 = vrot.slane %v3031, 6
        %3038 = vst [vmem:[#allocation2 + $0x10] sm:$0xc] %v3034
        %3039 = vst [vmem:[#allocation2 + $0x18] sm:$0xc] %v3035
        %3040 = vrot.lane.b32.xlu0 %v2925, 113
        %v3041 = vpop.permute.xlu0 %3040
        %3042 = vrot.lane.b32.xlu0 %v2945, 113
        %v3043 = vpop.permute.xlu0 %3042
        %v3044 = vsel %vm1243, %v3041, %v3043
        %v3048 = vsel %vm1243, %v3043, %v3041
        %v3049 = vsel %vm1253, %v3044, 0.0
        %v3050 = vsel %vm1254, %v3048, 0.0
        %v3053 = vrot.slane %v3049, 4
        %v3054 = vrot.slane %v3050, 4
        %3057 = vst [vmem:[#allocation2 + $0x10] sm:$0x30] %v3053
        %3058 = vst [vmem:[#allocation2 + $0x18] sm:$0x30] %v3054
        %3059 = vrot.lane.b32.xlu0 %v2925, 112
        %v3060 = vpop.permute.xlu0 %3059
        %3061 = vrot.lane.b32.xlu0 %v2945, 112
        %v3062 = vpop.permute.xlu0 %3061
        %v3063 = vsel %vm1269, %v3060, %v3062
        %v3067 = vsel %vm1269, %v3062, %v3060
        %v3068 = vsel %vm1277, %v3063, 0.0
        %v3069 = vsel %vm1278, %v3067, 0.0
        %v3072 = vrot.slane %v3068, 2
        %v3073 = vrot.slane %v3069, 2
        %3076 = vst [vmem:[#allocation2 + $0x10] sm:$0xc0] %v3072
        %3077 = vst [vmem:[#allocation2 + $0x18] sm:$0xc0] %v3073
        %3078 = vrot.lane.b32.xlu0 %v2925, 111
        %v3079 = vpop.permute.xlu0 %3078
        %3080 = vrot.lane.b32.xlu0 %v2945, 111
        %v3081 = vpop.permute.xlu0 %3080
        %v3082 = vsel %vm1293, %v3079, %v3081
        %v3086 = vsel %vm1293, %v3081, %v3079
        %v3087 = vsel %vm1303, %v3082, 0.0
        %v3088 = vsel %vm1304, %v3086, 0.0
        %3089 = vst [vmem:[#allocation2 + $0x20] sm:$0x3] %v3087
        %3090 = vst [vmem:[#allocation2 + $0x28] sm:$0x3] %v3088
        %v3091 = vld [vmem:[%s41] sm:$0x7]
        %v3092 = vld [vmem:[#allocation2] sm:$0xff]
        %v3093 = vld [vmem:[#allocation2 + $0x8] sm:$0xff]
        %v3094 = vld [vmem:[#allocation2 + $0x10] sm:$0xff]
        %v3095 = vld [vmem:[#allocation2 + $0x18] sm:$0xff]
        %v3096 = vld [vmem:[#allocation2 + $0x20] sm:$0x3]
        %v3097 = vld [vmem:[#allocation2 + $0x28] sm:$0x3]
        %v3098 = vld [vmem:[%s43] sm:$0x7]
        %3100 = vset.pattern.permute.xlu0 0
        %3101 = vperm.xlu0 %3100, %v3098
        %v3102 = vpop.permute.xlu0 %3101
        %v3105 = vsel %vm1322, %v3091, 0
        %v3108 = vsel %vm1326, %v3096, 0
        %v3111 = vsel %vm1326, %v3097, 0
        %3113 = vmatpush.msra.mxu0 0.0
        %3114 = vmatpush.msra.mxu0 0.0
        %3115 = vmatpush.msra.mxu0 0.0
        %3116 = vmatpush.msra.mxu0 0.0
        %3117 = vmatpush.msra.mxu0 0.0
        %3118 = vmatpush.msra.mxu0 0.0
        %3119 = vmatpush.msra.mxu0 0.0
        %3120 = vmatpush.msra.mxu0 0.0
        %3121 = vmatpush.msra.mxu0 0.0
        %3122 = vmatpush.msra.mxu0 0.0
        %3123 = vmatpush.msra.mxu0 0.0
        %3124 = vmatpush.msra.mxu0 0.0
        %3125 = vmatpush.msra.mxu0 0.0
        %3126 = vmatpush.msra.mxu0 %v3108
        %3127 = vmatpush.msra.mxu0 %v3094
        %3128 = vmatpush.msra.mxu0 %v3092
        %3129 = vmatmul.f32.gmra.mxu0 %v3105
        %v3130 = vpop.f32.mrf.mxu0
        %v3131 = vadd.f32 %v3102, %v3130
        %3132 = vdwg.mxu0
        %3133 = vmatpush.msra.mxu0 0.0
        %3134 = vmatpush.msra.mxu0 0.0
        %3135 = vmatpush.msra.mxu0 0.0
        %3136 = vmatpush.msra.mxu0 0.0
        %3137 = vmatpush.msra.mxu0 0.0
        %3138 = vmatpush.msra.mxu0 0.0
        %3139 = vmatpush.msra.mxu0 0.0
        %3140 = vmatpush.msra.mxu0 0.0
        %3141 = vmatpush.msra.mxu0 0.0
        %3142 = vmatpush.msra.mxu0 0.0
        %3143 = vmatpush.msra.mxu0 0.0
        %3144 = vmatpush.msra.mxu0 0.0
        %3145 = vmatpush.msra.mxu0 0.0
        %3146 = vmatpush.msra.mxu0 %v3111
        %3147 = vmatpush.msra.mxu0 %v3095
        %3148 = vmatpush.msra.mxu0 %v3093
        %3149 = vmatmul.f32.gmra.mxu0 %v3105
        %v3150 = vpop.f32.mrf.mxu0
        %v3151 = vadd.f32 %v3102, %v3150
        %3152 = vdwg.mxu0
        %v3153 = vmax.f32 %v3131, 0.0
        %v3154 = vmax.f32 %v3151, 0.0
        %3156 = vrot.lane.b32.xlu0 %v3154, 17
        %v3157 = vpop.permute.xlu0 %3156
        %3160 = vrot.lane.b32.xlu0 %v3153, 17
        %v3161 = vpop.permute.xlu0 %3160
        %v3162 = vsel %vm1125, %v3161, %v3157
        %v3165 = vsel %vm1125, %v3157, %v3161
        %v3166 = vsel %vm1134, %v3165, 0.0
        %v3167 = vsel %vm1135, %v3162, 0.0
        %3168 = vst [vmem:[#allocation2] sm:$0x7] %v3166
        %3169 = vst [vmem:[#allocation2 + $0x8] sm:$0x7] %v3167
        %3170 = vrot.lane.b32.xlu0 %v3154, 16
        %v3171 = vpop.permute.xlu0 %3170
        %3173 = vrot.lane.b32.xlu0 %v3153, 16
        %v3174 = vpop.permute.xlu0 %3173
        %v3175 = vsel %vm1007, %v3174, %v3171
        %v3178 = vsel %vm1007, %v3171, %v3174
        %v3179 = vsel %vm1151, %v3178, 0.0
        %v3180 = vsel %vm1152, %v3175, 0.0
        %v3183 = vrot.slane %v3179, 5
        %v3184 = vrot.slane %v3180, 5
        %3187 = vst [vmem:[#allocation2] sm:$0x38] %v3183
        %3188 = vst [vmem:[#allocation2 + $0x8] sm:$0x38] %v3184
        %3189 = vrot.lane.b32.xlu0 %v3154, 15
        %v3190 = vpop.permute.xlu0 %3189
        %3192 = vrot.lane.b32.xlu0 %v3153, 15
        %v3193 = vpop.permute.xlu0 %3192
        %v3194 = vsel %vm1168, %v3193, %v3190
        %v3197 = vsel %vm1168, %v3190, %v3193
        %v3198 = vsel %vm1177, %v3197, 0.0
        %v3199 = vsel %vm1178, %v3194, 0.0
        %v3202 = vrot.slane %v3198, 2
        %v3203 = vrot.slane %v3199, 2
        %3206 = vst [vmem:[#allocation2] sm:$0xc0] %v3202
        %3207 = vst [vmem:[#allocation2 + $0x8] sm:$0xc0] %v3203
        %3208 = vst [vmem:[#allocation2 + $0x10] sm:$0x1] %v3202
        %3209 = vst [vmem:[#allocation2 + $0x18] sm:$0x1] %v3203
        %3210 = vrot.lane.b32.xlu0 %v3154, 1
        %v3211 = vpop.permute.xlu0 %3210
        %3213 = vrot.lane.b32.xlu0 %v3153, 1
        %v3214 = vpop.permute.xlu0 %3213
        %v3215 = vsel %vm1194, %v3214, %v3211
        %v3218 = vsel %vm1194, %v3211, %v3214
        %v3219 = vsel %vm1201, %v3218, 0.0
        %v3220 = vsel %vm1202, %v3215, 0.0
        %v3223 = vrot.slane %v3219, 7
        %v3224 = vrot.slane %v3220, 7
        %3227 = vst [vmem:[#allocation2 + $0x10] sm:$0xe] %v3223
        %3228 = vst [vmem:[#allocation2 + $0x18] sm:$0xe] %v3224
        %v3229 = vrot.slane %v3153, 4
        %v3230 = vrot.slane %v3154, 4
        %3233 = vst [vmem:[#allocation2 + $0x10] sm:$0x70] %v3229
        %3234 = vst [vmem:[#allocation2 + $0x18] sm:$0x70] %v3230
        %3235 = vrot.lane.b32.xlu0 %v3153, 127
        %v3236 = vpop.permute.xlu0 %3235
        %3237 = vrot.lane.b32.xlu0 %v3154, 127
        %v3238 = vpop.permute.xlu0 %3237
        %v3239 = vsel %vm1219, %v3236, %v3238
        %v3243 = vsel %vm1219, %v3238, %v3236
        %v3244 = vsel %vm1227, %v3239, 0.0
        %v3245 = vsel %vm1228, %v3243, 0.0
        %v3248 = vrot.slane %v3244, 1
        %v3249 = vrot.slane %v3245, 1
        %3252 = vst [vmem:[#allocation2 + $0x10] sm:$0x80] %v3248
        %3253 = vst [vmem:[#allocation2 + $0x18] sm:$0x80] %v3249
        %3254 = vst [vmem:[#allocation2 + $0x20] sm:$0x3] %v3248
        %3255 = vst [vmem:[#allocation2 + $0x28] sm:$0x3] %v3249
        %3256 = vrot.lane.b32.xlu0 %v3153, 113
        %v3257 = vpop.permute.xlu0 %3256
        %3258 = vrot.lane.b32.xlu0 %v3154, 113
        %v3259 = vpop.permute.xlu0 %3258
        %v3260 = vsel %vm1243, %v3257, %v3259
        %v3264 = vsel %vm1243, %v3259, %v3257
        %v3265 = vsel %vm1253, %v3260, 0.0
        %v3266 = vsel %vm1254, %v3264, 0.0
        %v3269 = vrot.slane %v3265, 6
        %v3270 = vrot.slane %v3266, 6
        %3273 = vst [vmem:[#allocation2 + $0x20] sm:$0x1c] %v3269
        %3274 = vst [vmem:[#allocation2 + $0x28] sm:$0x1c] %v3270
        %3275 = vrot.lane.b32.xlu0 %v3153, 112
        %v3276 = vpop.permute.xlu0 %3275
        %3277 = vrot.lane.b32.xlu0 %v3154, 112
        %v3278 = vpop.permute.xlu0 %3277
        %v3279 = vsel %vm1269, %v3276, %v3278
        %v3283 = vsel %vm1269, %v3278, %v3276
        %v3284 = vsel %vm1277, %v3279, 0.0
        %v3285 = vsel %vm1278, %v3283, 0.0
        %v3288 = vrot.slane %v3284, 3
        %v3289 = vrot.slane %v3285, 3
        %3292 = vst [vmem:[#allocation2 + $0x20] sm:$0xe0] %v3288
        %3293 = vst [vmem:[#allocation2 + $0x28] sm:$0xe0] %v3289
        %3294 = vrot.lane.b32.xlu0 %v3153, 111
        %v3295 = vpop.permute.xlu0 %3294
        %3296 = vrot.lane.b32.xlu0 %v3154, 111
        %v3297 = vpop.permute.xlu0 %3296
        %v3298 = vsel %vm1293, %v3295, %v3297
        %v3302 = vsel %vm1293, %v3297, %v3295
        %v3303 = vsel %vm1303, %v3298, 0.0
        %v3304 = vsel %vm1304, %v3302, 0.0
        %3305 = vst [vmem:[#allocation2 + $0x30] sm:$0x7] %v3303
        %3306 = vst [vmem:[#allocation2 + $0x38] sm:$0x7] %v3304
        %v3307 = vld [vmem:[%s45] sm:$0xf]
        %v3308 = vld [vmem:[#allocation2] sm:$0xff]
        %v3309 = vld [vmem:[#allocation2 + $0x8] sm:$0xff]
        %v3310 = vld [vmem:[#allocation2 + $0x10] sm:$0xff]
        %v3311 = vld [vmem:[#allocation2 + $0x18] sm:$0xff]
        %v3312 = vld [vmem:[#allocation2 + $0x20] sm:$0xff]
        %v3313 = vld [vmem:[#allocation2 + $0x28] sm:$0xff]
        %v3314 = vld [vmem:[#allocation2 + $0x30] sm:$0x7]
        %v3315 = vld [vmem:[#allocation2 + $0x38] sm:$0x7]
        %v3316 = vld [vmem:[%s47] sm:$0xf]
        %3318 = vset.pattern.permute.xlu0 0
        %3319 = vperm.xlu0 %3318, %v3316
        %v3320 = vpop.permute.xlu0 %3319
        %v3323 = vsel %vm2584, %v3307, 0
        %v3326 = vsel %vm2588, %v3314, 0
        %v3329 = vsel %vm2588, %v3315, 0
        %3331 = vmatpush.msra.mxu0 0.0
        %3332 = vmatpush.msra.mxu0 0.0
        %3333 = vmatpush.msra.mxu0 0.0
        %3334 = vmatpush.msra.mxu0 0.0
        %3335 = vmatpush.msra.mxu0 0.0
        %3336 = vmatpush.msra.mxu0 0.0
        %3337 = vmatpush.msra.mxu0 0.0
        %3338 = vmatpush.msra.mxu0 0.0
        %3339 = vmatpush.msra.mxu0 0.0
        %3340 = vmatpush.msra.mxu0 0.0
        %3341 = vmatpush.msra.mxu0 0.0
        %3342 = vmatpush.msra.mxu0 0.0
        %3343 = vmatpush.msra.mxu0 %v3326
        %3344 = vmatpush.msra.mxu0 %v3312
        %3345 = vmatpush.msra.mxu0 %v3310
        %3346 = vmatpush.msra.mxu0 %v3308
        %3347 = vmatmul.f32.gmra.mxu0 %v3323
        %v3348 = vpop.f32.mrf.mxu0
        %v3349 = vadd.f32 %v3320, %v3348
        %3350 = vdwg.mxu0
        %3351 = vmatpush.msra.mxu0 0.0
        %3352 = vmatpush.msra.mxu0 0.0
        %3353 = vmatpush.msra.mxu0 0.0
        %3354 = vmatpush.msra.mxu0 0.0
        %3355 = vmatpush.msra.mxu0 0.0
        %3356 = vmatpush.msra.mxu0 0.0
        %3357 = vmatpush.msra.mxu0 0.0
        %3358 = vmatpush.msra.mxu0 0.0
        %3359 = vmatpush.msra.mxu0 0.0
        %3360 = vmatpush.msra.mxu0 0.0
        %3361 = vmatpush.msra.mxu0 0.0
        %3362 = vmatpush.msra.mxu0 0.0
        %3363 = vmatpush.msra.mxu0 %v3329
        %3364 = vmatpush.msra.mxu0 %v3313
        %3365 = vmatpush.msra.mxu0 %v3311
        %3366 = vmatpush.msra.mxu0 %v3309
        %3367 = vmatmul.f32.gmra.mxu0 %v3323
        %v3368 = vpop.f32.mrf.mxu0
        %v3369 = vadd.f32 %v3320, %v3368
        %3370 = vdwg.mxu0
        %v3371 = vmax.f32 %v3349, 0.0
        %v3372 = vmax.f32 %v3369, 0.0
        %vm3373 = vcmp.ge.s32.totalorder %v989, 112
        %vm3374 = vcmp.ge.s32.totalorder %v990, 112
        %vm3375 = vcmp.lt.s32.totalorder %v989, 144
        %vm3376 = vcmp.lt.s32.totalorder %v990, 144
        %vm3377 = vcmp.ge.s32.totalorder %v991, 7
        %vm3378 = vcmp.ge.s32.totalorder %v992, 7
        %vm3379 = vcmp.lt.s32.totalorder %v991, 9
        %vm3380 = vcmp.lt.s32.totalorder %v992, 9
        %3382 = vrot.lane.b32.xlu0 %v3372, 119
        %v3383 = vpop.permute.xlu0 %3382
        %3386 = vrot.lane.b32.xlu0 %v3371, 119
        %v3387 = vpop.permute.xlu0 %3386
        %vm3388 = vcmask 973824
        %v3389 = vsel %vm3388, %v3387, %v3383
        %v3392 = vsel %vm3388, %v3383, %v3387
        %vm3393 = vmand %vm3373, %vm3377
        %vm3394 = vmand %vm3374, %vm3378
        %v3395 = vsel %vm3393, 1, 0
        %v3396 = vsel %vm3394, 1, 0
        %vm3397 = vcmp.eq.s32.totalorder %v3395, 1
        %vm3398 = vcmp.eq.s32.totalorder %v3396, 1
        %v3399 = vsel %vm3397, %v3392, 0.0
        %v3400 = vsel %vm3398, %v3389, 0.0
        %3401 = vst [vmem:[#allocation2] sm:$0xf] %v3399
        %3402 = vst [vmem:[#allocation2 + $0x8] sm:$0xf] %v3400
        %3403 = vrot.lane.b32.xlu0 %v3372, 112
        %v3404 = vpop.permute.xlu0 %3403
        %3406 = vrot.lane.b32.xlu0 %v3371, 112
        %v3407 = vpop.permute.xlu0 %3406
        %v3408 = vsel %vm1269, %v3407, %v3404
        %v3411 = vsel %vm1269, %v3404, %v3407
        %v3412 = vsel %vm3373, 1, 0
        %v3413 = vsel %vm3374, 1, 0
        %vm3414 = vcmp.eq.s32.totalorder %v3412, 1
        %vm3415 = vcmp.eq.s32.totalorder %v3413, 1
        %v3416 = vsel %vm3414, %v3411, 0.0
        %v3417 = vsel %vm3415, %v3408, 0.0
        %v3420 = vrot.slane %v3416, 4
        %v3421 = vrot.slane %v3417, 4
        %3424 = vst [vmem:[#allocation2] sm:$0xf0] %v3420
        %3425 = vst [vmem:[#allocation2 + $0x8] sm:$0xf0] %v3421
        %3426 = vrot.lane.b32.xlu0 %v3372, 105
        %v3427 = vpop.permute.xlu0 %3426
        %3429 = vrot.lane.b32.xlu0 %v3371, 105
        %v3430 = vpop.permute.xlu0 %3429
        %vm3431 = vcmask 859136
        %v3432 = vsel %vm3431, %v3430, %v3427
        %v3435 = vsel %vm3431, %v3427, %v3430
        %vm3436 = vmand %vm3373, %vm3379
        %vm3437 = vmand %vm3374, %vm3380
        %v3438 = vsel %vm3436, 1, 0
        %v3439 = vsel %vm3437, 1, 0
        %vm3440 = vcmp.eq.s32.totalorder %v3438, 1
        %vm3441 = vcmp.eq.s32.totalorder %v3439, 1
        %v3442 = vsel %vm3440, %v3435, 0.0
        %v3443 = vsel %vm3441, %v3432, 0.0
        %3444 = vst [vmem:[#allocation2 + $0x10] sm:$0xf] %v3442
        %3445 = vst [vmem:[#allocation2 + $0x18] sm:$0xf] %v3443
        %3446 = vrot.lane.b32.xlu0 %v3372, 7
        %v3447 = vpop.permute.xlu0 %3446
        %3449 = vrot.lane.b32.xlu0 %v3371, 7
        %v3450 = vpop.permute.xlu0 %3449
        %vm3451 = vcmask 56320
        %v3452 = vsel %vm3451, %v3450, %v3447
        %v3455 = vsel %vm3451, %v3447, %v3450
        %v3456 = vsel %vm3377, 1, 0
        %v3457 = vsel %vm3378, 1, 0
        %vm3458 = vcmp.eq.s32.totalorder %v3456, 1
        %vm3459 = vcmp.eq.s32.totalorder %v3457, 1
        %v3460 = vsel %vm3458, %v3455, 0.0
        %v3461 = vsel %vm3459, %v3452, 0.0
        %v3464 = vrot.slane %v3460, 4
        %v3465 = vrot.slane %v3461, 4
        %3468 = vst [vmem:[#allocation2 + $0x10] sm:$0xf0] %v3464
        %3469 = vst [vmem:[#allocation2 + $0x18] sm:$0xf0] %v3465
        %3470 = vst [vmem:[#allocation2 + $0x20] sm:$0xf] %v3371
        %3471 = vst [vmem:[#allocation2 + $0x28] sm:$0xf] %v3372
        %3472 = vrot.lane.b32.xlu0 %v3371, 121
        %v3473 = vpop.permute.xlu0 %3472
        %3474 = vrot.lane.b32.xlu0 %v3372, 121
        %v3475 = vpop.permute.xlu0 %3474
        %vm3476 = vcmask 990208
        %v3477 = vsel %vm3476, %v3473, %v3475
        %v3481 = vsel %vm3476, %v3475, %v3473
        %v3482 = vsel %vm3379, 1, 0
        %v3483 = vsel %vm3380, 1, 0
        %vm3484 = vcmp.eq.s32.totalorder %v3482, 1
        %vm3485 = vcmp.eq.s32.totalorder %v3483, 1
        %v3486 = vsel %vm3484, %v3477, 0.0
        %v3487 = vsel %vm3485, %v3481, 0.0
        %v3490 = vrot.slane %v3486, 4
        %v3491 = vrot.slane %v3487, 4
        %3494 = vst [vmem:[#allocation2 + $0x20] sm:$0xf0] %v3490
        %3495 = vst [vmem:[#allocation2 + $0x28] sm:$0xf0] %v3491
        %3496 = vrot.lane.b32.xlu0 %v3371, 23
        %v3497 = vpop.permute.xlu0 %3496
        %3498 = vrot.lane.b32.xlu0 %v3372, 23
        %v3499 = vpop.permute.xlu0 %3498
        %vm3500 = vcmask 187392
        %v3501 = vsel %vm3500, %v3497, %v3499
        %v3505 = vsel %vm3500, %v3499, %v3497
        %vm3506 = vmand %vm3375, %vm3377
        %vm3507 = vmand %vm3376, %vm3378
        %v3508 = vsel %vm3506, 1, 0
        %v3509 = vsel %vm3507, 1, 0
        %vm3510 = vcmp.eq.s32.totalorder %v3508, 1
        %vm3511 = vcmp.eq.s32.totalorder %v3509, 1
        %v3512 = vsel %vm3510, %v3501, 0.0
        %v3513 = vsel %vm3511, %v3505, 0.0
        %3514 = vst [vmem:[#allocation2 + $0x30] sm:$0xf] %v3512
        %3515 = vst [vmem:[#allocation2 + $0x38] sm:$0xf] %v3513
        %3516 = vrot.lane.b32.xlu0 %v3371, 16
        %v3517 = vpop.permute.xlu0 %3516
        %3518 = vrot.lane.b32.xlu0 %v3372, 16
        %v3519 = vpop.permute.xlu0 %3518
        %v3520 = vsel %vm1007, %v3517, %v3519
        %v3524 = vsel %vm1007, %v3519, %v3517
        %v3525 = vsel %vm3375, 1, 0
        %v3526 = vsel %vm3376, 1, 0
        %vm3527 = vcmp.eq.s32.totalorder %v3525, 1
        %vm3528 = vcmp.eq.s32.totalorder %v3526, 1
        %v3529 = vsel %vm3527, %v3520, 0.0
        %v3530 = vsel %vm3528, %v3524, 0.0
        %v3533 = vrot.slane %v3529, 4
        %v3534 = vrot.slane %v3530, 4
        %3537 = vst [vmem:[#allocation2 + $0x30] sm:$0xf0] %v3533
        %3538 = vst [vmem:[#allocation2 + $0x38] sm:$0xf0] %v3534
        %3539 = vrot.lane.b32.xlu0 %v3371, 9
        %v3540 = vpop.permute.xlu0 %3539
        %3541 = vrot.lane.b32.xlu0 %v3372, 9
        %v3542 = vpop.permute.xlu0 %3541
        %vm3543 = vcmask 72704
        %v3544 = vsel %vm3543, %v3540, %v3542
        %v3548 = vsel %vm3543, %v3542, %v3540
        %vm3549 = vmand %vm3375, %vm3379
        %vm3550 = vmand %vm3376, %vm3380
        %v3551 = vsel %vm3549, 1, 0
        %v3552 = vsel %vm3550, 1, 0
        %vm3553 = vcmp.eq.s32.totalorder %v3551, 1
        %vm3554 = vcmp.eq.s32.totalorder %v3552, 1
        %v3555 = vsel %vm3553, %v3544, 0.0
        %v3556 = vsel %vm3554, %v3548, 0.0
        %3557 = vst [vmem:[#allocation2 + $0x40] sm:$0xf] %v3555
        %3558 = vst [vmem:[#allocation2 + $0x48] sm:$0xf] %v3556
        %v3559 = vld [vmem:[%s49] sm:$0xff]
        %v3560 = vld [vmem:[%s49 + $0x8] sm:$0xff]
        %v3561 = vld [vmem:[#allocation2] sm:$0xff]
        %v3562 = vld [vmem:[#allocation2 + $0x8] sm:$0xff]
        %v3563 = vld [vmem:[#allocation2 + $0x10] sm:$0xff]
        %v3564 = vld [vmem:[#allocation2 + $0x18] sm:$0xff]
        %v3565 = vld [vmem:[#allocation2 + $0x20] sm:$0xff]
        %v3566 = vld [vmem:[#allocation2 + $0x28] sm:$0xff]
        %v3567 = vld [vmem:[#allocation2 + $0x30] sm:$0xff]
        %v3568 = vld [vmem:[#allocation2 + $0x38] sm:$0xff]
        %v3569 = vld [vmem:[#allocation2 + $0x40] sm:$0xf]
        %v3570 = vld [vmem:[#allocation2 + $0x48] sm:$0xf]
        %v3572 = vsel %vm1575, %v3559, 0
        %v3575 = vsel %vm1575, %v3560, 0
        %v3578 = vsel %vm1582, %v3569, 0
        %v3581 = vsel %vm1582, %v3570, 0
        %3583 = vmatpush.msra.mxu0 0.0
        %3584 = vmatpush.msra.mxu0 0.0
        %3585 = vmatpush.msra.mxu0 0.0
        %3586 = vmatpush.msra.mxu0 0.0
        %3587 = vmatpush.msra.mxu0 0.0
        %3588 = vmatpush.msra.mxu0 0.0
        %3589 = vmatpush.msra.mxu0 0.0
        %3590 = vmatpush.msra.mxu0 0.0
        %3591 = vmatpush.msra.mxu0 0.0
        %3592 = vmatpush.msra.mxu0 0.0
        %3593 = vmatpush.msra.mxu0 0.0
        %3594 = vmatpush.msra.mxu0 %v3578
        %3595 = vmatpush.msra.mxu0 %v3567
        %3596 = vmatpush.msra.mxu0 %v3565
        %3597 = vmatpush.msra.mxu0 %v3563
        %3598 = vmatpush.msra.mxu0 %v3561
        %3599 = vmatmul.f32.gmra.mxu0 %v3572
        %v3600 = vpop.f32.mrf.mxu0
        %v3601 = vadd.f32 0.0, %v3600
        %3602 = vmatmul.f32.gmra.mxu0 %v3575
        %v3603 = vpop.f32.mrf.mxu0
        %v3604 = vadd.f32 0.0, %v3603
        %3605 = vdwg.mxu0
        %3606 = vmatpush.msra.mxu0 0.0
        %3607 = vmatpush.msra.mxu0 0.0
        %3608 = vmatpush.msra.mxu0 0.0
        %3609 = vmatpush.msra.mxu0 0.0
        %3610 = vmatpush.msra.mxu0 0.0
        %3611 = vmatpush.msra.mxu0 0.0
        %3612 = vmatpush.msra.mxu0 0.0
        %3613 = vmatpush.msra.mxu0 0.0
        %3614 = vmatpush.msra.mxu0 0.0
        %3615 = vmatpush.msra.mxu0 0.0
        %3616 = vmatpush.msra.mxu0 0.0
        %3617 = vmatpush.msra.mxu0 %v3581
        %3618 = vmatpush.msra.mxu0 %v3568
        %3619 = vmatpush.msra.mxu0 %v3566
        %3620 = vmatpush.msra.mxu0 %v3564
        %3621 = vmatpush.msra.mxu0 %v3562
        %3622 = vmatmul.f32.gmra.mxu0 %v3572
        %v3623 = vpop.f32.mrf.mxu0
        %v3624 = vadd.f32 0.0, %v3623
        %3625 = vmatmul.f32.gmra.mxu0 %v3575
        %v3626 = vpop.f32.mrf.mxu0
        %v3627 = vadd.f32 0.0, %v3626
        %3628 = vdwg.mxu0
        %v3629 = vadd.f32 %v2893, %v3601
        %v3630 = vadd.f32 %v2894, %v3624
        %v3631 = vadd.f32 %v2895, %v3604
        %v3632 = vadd.f32 %v2896, %v3627
        %v3633 = vadd.f32 %v984, %v985
        %3634 = vadd.xlane.f32.xlu0 %v3633
        %v3635 = vpop.xlane.xlu0 %3634
        %v3636 = vadd.f32 %v986, %v987
        %3637 = vadd.xlane.f32.xlu0 %v3636
        %v3638 = vpop.xlane.xlu0 %3637
        %v3639 = vmul.f32 %v3635, 0.00390625
        %v3640 = vmul.f32 %v3638, 0.00390625
        %v3641 = vld [vmem:[%s51] sm:$0xf]
        %v3642 = vld [vmem:[%s53] sm:$0xf]
        %3644 = vset.pattern.permute.xlu0 0
        %3645 = vperm.xlu0 %3644, %v3642
        %v3646 = vpop.permute.xlu0 %3645
        %v3649 = vsel %vm1007, %v3641, 0
        %3651 = vmatpush.msra.mxu0 0.0
        %3652 = vmatpush.msra.mxu0 0.0
        %3653 = vmatpush.msra.mxu0 0.0
        %3654 = vmatpush.msra.mxu0 0.0
        %3655 = vmatpush.msra.mxu0 0.0
        %3656 = vmatpush.msra.mxu0 0.0
        %3657 = vmatpush.msra.mxu0 0.0
        %3658 = vmatpush.msra.mxu0 0.0
        %3659 = vmatpush.msra.mxu0 0.0
        %3660 = vmatpush.msra.mxu0 0.0
        %3661 = vmatpush.msra.mxu0 0.0
        %3662 = vmatpush.msra.mxu0 0.0
        %3663 = vmatpush.msra.mxu0 0.0
        %3664 = vmatpush.msra.mxu0 0.0
        %3665 = vmatpush.msra.mxu0 %v3640
        %3666 = vmatpush.msra.mxu0 %v3639
        %3667 = vmatmul.f32.gmra.mxu0 %v3649
        %v3668 = vpop.f32.mrf.mxu0
        %v3669 = vadd.f32 %v3646, %v3668
        %3670 = vdwg.mxu0
        %v3671 = vmax.f32 %v3669, 0.0
        %v3672 = vld [vmem:[%s55] sm:$0xff]
        %v3673 = vld [vmem:[%s55 + $0x8] sm:$0xff]
        %vm3674 = vcmask 31744
        %v3676 = vsel %vm3674, %v3672, 0
        %v3679 = vsel %vm3674, %v3673, 0
        %v3682 = vsel %vm1582, %v3671, 0
        %3684 = vmatpush.msra.mxu0 0.0
        %3685 = vmatpush.msra.mxu0 0.0
        %3686 = vmatpush.msra.mxu0 0.0
        %3687 = vmatpush.msra.mxu0 0.0
        %3688 = vmatpush.msra.mxu0 0.0
        %3689 = vmatpush.msra.mxu0 0.0
        %3690 = vmatpush.msra.mxu0 0.0
        %3691 = vmatpush.msra.mxu0 0.0
        %3692 = vmatpush.msra.mxu0 0.0
        %3693 = vmatpush.msra.mxu0 0.0
        %3694 = vmatpush.msra.mxu0 0.0
        %3695 = vmatpush.msra.mxu0 0.0
        %3696 = vmatpush.msra.mxu0 0.0
        %3697 = vmatpush.msra.mxu0 0.0
        %3698 = vmatpush.msra.mxu0 0.0
        %3699 = vmatpush.msra.mxu0 %v3682
        %3700 = vmatmul.f32.gmra.mxu0 %v3676
        %v3701 = vpop.f32.mrf.mxu0
        %v3702 = vadd.f32 0.0, %v3701
        %3703 = vmatmul.f32.gmra.mxu0 %v3679
        %v3704 = vpop.f32.mrf.mxu0
        %v3705 = vadd.f32 0.0, %v3704
        %3706 = vdwg.mxu0
        %v3707 = vadd.f32 %v3629, %v3702
        %v3708 = vadd.f32 %v3630, %v3702
        %v3709 = vadd.f32 %v3631, %v3705
        %v3710 = vadd.f32 %v3632, %v3705
        %3711 = vst [vmem:[%s983] sm:$0xff] %v3707
        %3712 = vst [vmem:[%s983 + $0x8] sm:$0xff] %v3708
        %3713 = vst [vmem:[%s983 + $0x10] sm:$0xff] %v3709
        %3714 = vst [vmem:[%s983 + $0x18] sm:$0xff] %v3710
        %s3715 = sand.u32 %s722, 1
        %s3716 = scalar_lea.sflag [#allocation5], %s3715
        %s3717 = sand.u32 %s722, 1
        %s3718 = smul.addr %s3717, 32
        %s3719 = scalar_lea.vmem [#allocation9], %s3718
        // Predicated region
        $region153: #{tpu_custom_call.1} parent=139 // pred_check
          %p3720 = pneg %p732
        $region154: #{tpu_custom_call.1} parent=139 // pred_check_branch
          %3722 = sbr.rel (%p3720) target = $region156
        $region155: #{tpu_custom_call.1} parent=139 // pred_region
          %3724 = vsyncadd %s3716, 0
          %s3725 = smul.addr %s79, 4
          %s3726 = smul.addr %s3725, 8
          %s3727 = scalar_lea.hbm %s61, %s3726
          %s3728 = sshll.u32 %s3719, 4
          %s3729 = int_to_ptr.vmem [resolvable:$true] %s3728
          %s3730 = sshll.u32 %s3727, 4
          %s3731 = int_to_ptr.hbm [resolvable:$true] %s3730
          %3736 = dma.vmem_to_hbm [thread:$0]  %s3729, 512, %s3731, %s3716, 256, 256, 16
        $region156: #{tpu_custom_call.1} parent=139 // pred_fallthru
          _
      $region140: #{tpu_custom_call.1} parent=5 // pred_fallthru
        _
      %p3737 = scmp.le.s32.totalorder 2, %s74
      // Predicated region
      $region157: #{tpu_custom_call.1} parent=5 // pred_check
        %p3738 = pneg %p3737
      $region158: #{tpu_custom_call.1} parent=5 // pred_check_branch
        %3740 = sbr.rel (%p3738) target = $region160
      $region159: #{tpu_custom_call.1} parent=5 // pred_region
        %s3741 = ssub.s32 %s74, 2
        // Predicated region
        $region161: #{tpu_custom_call.1} parent=159 // pred_check
          %p3742 = pneg %p738
        $region162: #{tpu_custom_call.1} parent=159 // pred_check_branch
          %3744 = sbr.rel (%p3742) target = $region164
        $region163: #{tpu_custom_call.1} parent=159 // pred_region
          %s3745 = sand.u32 %s723, 1
          %s3746 = scalar_lea.sflag [#allocation5], %s3745
          %s3747 = sand.u32 %s723, 1
          %s3748 = smul.addr %s3747, 32
          %s3749 = scalar_lea.vmem [#allocation9], %s3748
          %3751 = dma.done %s3746, 512
        $region164: #{tpu_custom_call.1} parent=159 // pred_fallthru
          _
      $region160: #{tpu_custom_call.1} parent=5 // pred_fallthru
        _
    $region6: #{tpu_custom_call.1} parent=1 // loop_footer
      %s78 = sadd.s32 1, %s74
    $region7: #{tpu_custom_call.1} parent=1 // loop_footer_branch
      %73 = sbr.rel target = $region3
    $region8: #{tpu_custom_call.1} parent=1 // loop_exit
      _
    %3752 = vsyncpa [#allocation4], 1
    %s3753 = scalar_lea.sflag [#allocation4], 1
    %3754 = vsyncpa %s3753, 1
    %3755 = vsyncpa [#allocation7], 1
    %3756 = vsyncpa [#allocation5], 1
    %s3757 = scalar_lea.sflag [#allocation5], 1
    %3758 = vsyncpa %s3757, 1

</llo_original>
